<compile_context>
chip_gen: v5e
topology: v5e:2x2
jax: 0.10.0
libtpu: 0.0.40
codegen_flags: <defaults>
</compile_context>

<pallas_src>
import functools

import jax
import jax.numpy as jnp
from jax.experimental import pallas as pl
from jax.experimental.pallas import tpu as pltpu


def _softplus(x):
    # Numerically-stable softplus (matches F.softplus semantics).
    return jnp.where(x > 0.0, x + jnp.log1p(jnp.exp(-x)), jnp.log1p(jnp.exp(x)))


def what_mlp_kernel(x_ref, w1_ref, b1_ref, w2_ref, b2_ref, w3_ref, b3_ref,
                    out_ref, *, z_what_dim):
    # Activations feed the MXU as bf16; accumulation & epilogue are f32.
    x = x_ref[...].astype(jnp.bfloat16)

    # Layer 1: Linear + ReLU
    h1 = jnp.dot(x, w1_ref[...], preferred_element_type=jnp.float32) + b1_ref[...]
    h1 = jnp.maximum(h1, 0.0).astype(jnp.bfloat16)

    # Layer 2: Linear + ReLU
    h2 = jnp.dot(h1, w2_ref[...], preferred_element_type=jnp.float32) + b2_ref[...]
    h2 = jnp.maximum(h2, 0.0).astype(jnp.bfloat16)

    # Merged output head: one full-width matmul over the padded 128-lane slab.
    out = jnp.dot(h2, w3_ref[...], preferred_element_type=jnp.float32) + b3_ref[...]

    # Epilogue (EUP/VPU — free relative to the DMA-bound critical path):
    # lanes [0, z_what_dim)              -> tanh   (loc head)
    # lanes [z_what_dim, 2*z_what_dim)   -> softplus + 1e-6 (scale head)
    # padded lanes are junk and trimmed in the wrapper.
    col = jax.lax.broadcasted_iota(jnp.int32, out.shape, dimension=1)
    out_ref[...] = jnp.where(col < z_what_dim, jnp.tanh(out), _softplus(out) + 1e-6)


def what_mlp(x, params, *, z_what_dim=50, block_b=256):
    """x: (B, in_dim). Returns (z_what_loc, z_what_scale), each (B, z_what_dim) f32."""
    w1, b1, w2, b2, w3, b3 = params
    B, in_dim = x.shape
    hid = w1.shape[1]
    head = w3.shape[1]  # 2*z_what_dim padded up to a multiple of 128

    # Pick a batch row tile: 256 rows when the batch is large (good pipelining,
    # lane/sublane aligned), otherwise a single full-batch block padded to the
    # sublane multiple. Fits easily in the 32 MiB scoped VMEM (and v7x's 64 MiB
    # physical): resident bf16 weights ~0.9 MB + double-buffered x/out tiles.
    if B >= block_b:
        bt = block_b
    else:
        bt = max(8, -(-B // 8) * 8)
    b_pad = -(-B // bt) * bt
    if b_pad != B:
        x = jnp.pad(x, ((0, b_pad - B), (0, 0)))
    grid = (b_pad // bt,)

    const2d = lambda i: (0, 0)
    out = pl.pallas_call(
        functools.partial(what_mlp_kernel, z_what_dim=z_what_dim),
        out_shape=jax.ShapeDtypeStruct((b_pad, head), jnp.float32),
        grid=grid,
        in_specs=[
            pl.BlockSpec((bt, in_dim), lambda i: (i, 0)),   # x tile (pipelined)
            pl.BlockSpec((in_dim, hid), const2d),           # weights: constant
            pl.BlockSpec((1, hid), const2d),                # index_map -> fetched
            pl.BlockSpec((hid, hid), const2d),              # once, VMEM-resident
            pl.BlockSpec((1, hid), const2d),
            pl.BlockSpec((hid, head), const2d),
            pl.BlockSpec((1, head), const2d),
        ],
        out_specs=pl.BlockSpec((bt, head), lambda i: (i, 0)),
        compiler_params=pltpu.CompilerParams(
            dimension_semantics=("parallel",),  # shards batch tiles over v7x's 2 TCs
        ),
    )(x, w1, b1, w2, b2, w3, b3)

    loc = out[:B, :z_what_dim]
    scale = out[:B, z_what_dim:2 * z_what_dim]
    return loc, scale


def init_params(key, in_dim=256, z_what_dim=50, hid_dim=512):
    """PyTorch-Linear-like uniform init, pre-packed for the kernel:
    bf16 weights (halve HBM traffic), f32 biases, merged+padded output head."""
    ks = jax.random.split(key, 6)

    def lin(kw, kb, fan_in, fan_out):
        bound = 1.0 / jnp.sqrt(fan_in)
        w = jax.random.uniform(kw, (fan_in, fan_out), jnp.float32, -bound, bound)
        b = jax.random.uniform(kb, (1, fan_out), jnp.float32, -bound, bound)
        return w, b

    out_dim = 2 * z_what_dim
    head = -(-out_dim // 128) * 128  # pad head to a full 128-lane tile

    w1, b1 = lin(ks[0], ks[1], in_dim, hid_dim)
    w2, b2 = lin(ks[2], ks[3], hid_dim, hid_dim)
    w3, b3 = lin(ks[4], ks[5], hid_dim, out_dim)
    w3 = jnp.pad(w3, ((0, 0), (0, head - out_dim)))
    b3 = jnp.pad(b3, ((0, 0), (0, head - out_dim)))

    # TODO(synk): int8 weights (dequant-on-the-fly) would further cut HBM bytes
    # on v5e/v6e, but is not a drop-in on v7x (no integer MXU) — left as bf16.
    return (w1.astype(jnp.bfloat16), b1,
            w2.astype(jnp.bfloat16), b2,
            w3.astype(jnp.bfloat16), b3)


if __name__ == "__main__":
    key = jax.random.PRNGKey(0)
    k_params, k_x = jax.random.split(key)

    in_dim, z_what_dim, hid_dim = 256, 50, 512
    B = 512  # fold glimpse/object dims into the batch at the call site

    params = init_params(k_params, in_dim=in_dim, z_what_dim=z_what_dim, hid_dim=hid_dim)
    x = jax.random.normal(k_x, (B, in_dim), jnp.float32)

    loc, scale = what_mlp(x, params, z_what_dim=z_what_dim)
    jax.block_until_ready((loc, scale))

    # Pure-JAX reference with the same bf16 weight/activation rounding.
    (w1, b1, w2, b2, w3, b3) = params
    xb = x.astype(jnp.bfloat16)
    h1 = jnp.maximum(jnp.dot(xb, w1, preferred_element_type=jnp.float32) + b1, 0.0)
    h1 = h1.astype(jnp.bfloat16)
    h2 = jnp.maximum(jnp.dot(h1, w2, preferred_element_type=jnp.float32) + b2, 0.0)
    h2 = h2.astype(jnp.bfloat16)
    out = jnp.dot(h2, w3, preferred_element_type=jnp.float32) + b3
    loc_ref = jnp.tanh(out[:, :z_what_dim])
    scale_ref = jax.nn.softplus(out[:, z_what_dim:2 * z_what_dim]) + 1e-6

    assert loc.shape == (B, z_what_dim) and scale.shape == (B, z_what_dim)
    assert jnp.allclose(loc, loc_ref, atol=1e-2), float(jnp.max(jnp.abs(loc - loc_ref)))
    assert jnp.allclose(scale, scale_ref, atol=1e-2), float(jnp.max(jnp.abs(scale - scale_ref)))

    print("KERNEL_OK")
</pallas_src>

<mosaic_0001>
module attributes {stable_mosaic.version = 11 : i64} {
  func.func @what_mlp_kernel(%arg0: i32, %arg1: memref<256x256xf32, #tpu.memory_space<vmem>>, %arg2: memref<256x512xbf16, #tpu.memory_space<vmem>>, %arg3: memref<1x512xf32, #tpu.memory_space<vmem>>, %arg4: memref<512x512xbf16, #tpu.memory_space<vmem>>, %arg5: memref<1x512xf32, #tpu.memory_space<vmem>>, %arg6: memref<512x128xbf16, #tpu.memory_space<vmem>>, %arg7: memref<1x128xf32, #tpu.memory_space<vmem>>, %arg8: memref<256x128xf32, #tpu.memory_space<vmem>>) attributes {dimension_semantics = [#tpu.dimension_semantics<parallel>], iteration_bounds = array<i64: 2>, scalar_prefetch = 0 : i64, scratch_operands = 0 : i64, tpu.core_type = #tpu.core_type<tc>, window_params = [{transform_indices = @transform_0, window_bounds = array<i64: 256, 256>}, {pipeline_mode = #tpu.pipeline_mode<synchronous>, transform_indices = @transform_1, window_bounds = array<i64: 256, 512>}, {pipeline_mode = #tpu.pipeline_mode<synchronous>, transform_indices = @transform_2, window_bounds = array<i64: 1, 512>}, {pipeline_mode = #tpu.pipeline_mode<synchronous>, transform_indices = @transform_3, window_bounds = array<i64: 512, 512>}, {pipeline_mode = #tpu.pipeline_mode<synchronous>, transform_indices = @transform_4, window_bounds = array<i64: 1, 512>}, {pipeline_mode = #tpu.pipeline_mode<synchronous>, transform_indices = @transform_5, window_bounds = array<i64: 512, 128>}, {pipeline_mode = #tpu.pipeline_mode<synchronous>, transform_indices = @transform_6, window_bounds = array<i64: 1, 128>}, {transform_indices = @transform_7, window_bounds = array<i64: 256, 128>}]} {
    %c0 = arith.constant 0 : index
    %c0_0 = arith.constant 0 : index
    %0 = vector.load %arg1[%c0, %c0_0] : memref<256x256xf32, #tpu.memory_space<vmem>>, vector<256x256xf32>
    %1 = arith.truncf %0 : vector<256x256xf32> to vector<256x256xbf16>
    %c0_1 = arith.constant 0 : index
    %c0_2 = arith.constant 0 : index
    %2 = vector.load %arg2[%c0_1, %c0_2] : memref<256x512xbf16, #tpu.memory_space<vmem>>, vector<256x512xbf16>
    %cst = arith.constant dense<0.000000e+00> : vector<256x512xf32>
    %3 = tpu.matmul %1, %2, %cst {dimension_numbers = #tpu.dot_dimension_numbers<[1], [0], [0], [1], [0, 0, 1, 1], [], []>} : vector<256x256xbf16>, vector<256x512xbf16>, vector<256x512xf32> -> vector<256x512xf32>
    %c0_3 = arith.constant 0 : index
    %c0_4 = arith.constant 0 : index
    %4 = vector.load %arg3[%c0_3, %c0_4] : memref<1x512xf32, #tpu.memory_space<vmem>>, vector<1x512xf32>
    %5 = vector.broadcast %4 : vector<1x512xf32> to vector<256x512xf32>
    %6 = arith.addf %3, %5 : vector<256x512xf32>
    %cst_5 = arith.constant 0.000000e+00 : f32
    %7 = vector.broadcast %cst_5 : f32 to vector<256x512xf32>
    %8 = arith.maximumf %6, %7 : vector<256x512xf32>
    %9 = arith.truncf %8 : vector<256x512xf32> to vector<256x512xbf16>
    %c0_6 = arith.constant 0 : index
    %c0_7 = arith.constant 0 : index
    %10 = vector.load %arg4[%c0_6, %c0_7] : memref<512x512xbf16, #tpu.memory_space<vmem>>, vector<512x512xbf16>
    %cst_8 = arith.constant dense<0.000000e+00> : vector<256x512xf32>
    %11 = tpu.matmul %9, %10, %cst_8 {dimension_numbers = #tpu.dot_dimension_numbers<[1], [0], [0], [1], [0, 0, 1, 1], [], []>} : vector<256x512xbf16>, vector<512x512xbf16>, vector<256x512xf32> -> vector<256x512xf32>
    %c0_9 = arith.constant 0 : index
    %c0_10 = arith.constant 0 : index
    %12 = vector.load %arg5[%c0_9, %c0_10] : memref<1x512xf32, #tpu.memory_space<vmem>>, vector<1x512xf32>
    %13 = vector.broadcast %12 : vector<1x512xf32> to vector<256x512xf32>
    %14 = arith.addf %11, %13 : vector<256x512xf32>
    %cst_11 = arith.constant 0.000000e+00 : f32
    %15 = vector.broadcast %cst_11 : f32 to vector<256x512xf32>
    %16 = arith.maximumf %14, %15 : vector<256x512xf32>
    %17 = arith.truncf %16 : vector<256x512xf32> to vector<256x512xbf16>
    %c0_12 = arith.constant 0 : index
    %c0_13 = arith.constant 0 : index
    %18 = vector.load %arg6[%c0_12, %c0_13] : memref<512x128xbf16, #tpu.memory_space<vmem>>, vector<512x128xbf16>
    %cst_14 = arith.constant dense<0.000000e+00> : vector<256x128xf32>
    %19 = tpu.matmul %17, %18, %cst_14 {dimension_numbers = #tpu.dot_dimension_numbers<[1], [0], [0], [1], [0, 0, 1, 1], [], []>} : vector<256x512xbf16>, vector<512x128xbf16>, vector<256x128xf32> -> vector<256x128xf32>
    %c0_15 = arith.constant 0 : index
    %c0_16 = arith.constant 0 : index
    %20 = vector.load %arg7[%c0_15, %c0_16] : memref<1x128xf32, #tpu.memory_space<vmem>>, vector<1x128xf32>
    %21 = vector.broadcast %20 : vector<1x128xf32> to vector<256x128xf32>
    %22 = arith.addf %19, %21 : vector<256x128xf32>
    %23 = tpu.iota {dimensions = array<i32: 1>} : vector<256x128xi32>
    %c50_i32 = arith.constant 50 : i32
    %24 = vector.broadcast %c50_i32 : i32 to vector<256x128xi32>
    %25 = arith.cmpi slt, %23, %24 : vector<256x128xi32>
    %26 = math.tanh %22 : vector<256x128xf32>
    %cst_17 = arith.constant 0.000000e+00 : f32
    %27 = vector.broadcast %cst_17 : f32 to vector<256x128xf32>
    %28 = arith.cmpf ogt, %22, %27 : vector<256x128xf32>
    %cst_18 = arith.constant 0.000000e+00 : f32
    %29 = vector.broadcast %cst_18 : f32 to vector<256x128xf32>
    %30 = arith.subf %29, %22 : vector<256x128xf32>
    %31 = math.exp %30 : vector<256x128xf32>
    %32 = math.log1p %31 : vector<256x128xf32>
    %33 = arith.addf %22, %32 : vector<256x128xf32>
    %34 = math.exp %22 : vector<256x128xf32>
    %35 = math.log1p %34 : vector<256x128xf32>
    %36 = arith.select %28, %33, %35 : vector<256x128xi1>, vector<256x128xf32>
    %cst_19 = arith.constant 9.99999997E-7 : f32
    %37 = vector.broadcast %cst_19 : f32 to vector<256x128xf32>
    %38 = arith.addf %36, %37 : vector<256x128xf32>
    %39 = arith.select %25, %26, %38 : vector<256x128xi1>, vector<256x128xf32>
    %c0_20 = arith.constant 0 : index
    %c0_21 = arith.constant 0 : index
    %40 = vector.load %arg8[%c0_20, %c0_21] : memref<256x128xf32, #tpu.memory_space<vmem>>, vector<256x128xf32>
    tpu.vector_store %arg8[%c0_20, %c0_21], %39 {strides = array<i32>} : memref<256x128xf32, #tpu.memory_space<vmem>>, vector<256x128xf32>,
    return
  }
  func.func @transform_0(%arg0: i32) -> (i32, i32) {
    %c0_i32 = arith.constant 0 : i32
    %c0_i32_0 = arith.constant 0 : i32
    return %arg0, %c0_i32 : i32, i32
  }
  func.func @transform_1(%arg0: i32) -> (i32, i32) {
    %c0_i32 = arith.constant 0 : i32
    %c0_i32_0 = arith.constant 0 : i32
    %c0_i32_1 = arith.constant 0 : i32
    return %c0_i32, %c0_i32_0 : i32, i32
  }
  func.func @transform_2(%arg0: i32) -> (i32, i32) {
    %c0_i32 = arith.constant 0 : i32
    %c0_i32_0 = arith.constant 0 : i32
    %c0_i32_1 = arith.constant 0 : i32
    return %c0_i32, %c0_i32_0 : i32, i32
  }
  func.func @transform_3(%arg0: i32) -> (i32, i32) {
    %c0_i32 = arith.constant 0 : i32
    %c0_i32_0 = arith.constant 0 : i32
    %c0_i32_1 = arith.constant 0 : i32
    return %c0_i32, %c0_i32_0 : i32, i32
  }
  func.func @transform_4(%arg0: i32) -> (i32, i32) {
    %c0_i32 = arith.constant 0 : i32
    %c0_i32_0 = arith.constant 0 : i32
    %c0_i32_1 = arith.constant 0 : i32
    return %c0_i32, %c0_i32_0 : i32, i32
  }
  func.func @transform_5(%arg0: i32) -> (i32, i32) {
    %c0_i32 = arith.constant 0 : i32
    %c0_i32_0 = arith.constant 0 : i32
    %c0_i32_1 = arith.constant 0 : i32
    return %c0_i32, %c0_i32_0 : i32, i32
  }
  func.func @transform_6(%arg0: i32) -> (i32, i32) {
    %c0_i32 = arith.constant 0 : i32
    %c0_i32_0 = arith.constant 0 : i32
    %c0_i32_1 = arith.constant 0 : i32
    return %c0_i32, %c0_i32_0 : i32, i32
  }
  func.func @transform_7(%arg0: i32) -> (i32, i32) {
    %c0_i32 = arith.constant 0 : i32
    %c0_i32_0 = arith.constant 0 : i32
    return %arg0, %c0_i32 : i32, i32
  }
}

</mosaic_0001>

<llo_original>
// kernel: tpu_custom_call.1
$region0: #{tpu_custom_call.1}
  #allocation0 [shape = 'u32[]', space=smem, size = 0x4, offset = 0x4, fixed_abs, tag = 'smem constant byte address 0x4 - core index']
  #allocation1 [shape = 'u32[72,128]{1,0:T(1,128)}', space=vmem, size = 0x9000, scoped, tag = 'internal scratch']
  %s0 = inlined_call_operand.hbm [shape: f32[512,256], index: 0, kind: input, shape index: {}]
  %s1 = inlined_call_operand.hbm [shape: bf16[256,512], index: 1, kind: input, shape index: {}]
  %s2 = inlined_call_operand.hbm [shape: f32[1,512], index: 2, kind: input, shape index: {}]
  %s3 = inlined_call_operand.hbm [shape: bf16[512,512], index: 3, kind: input, shape index: {}]
  %s4 = inlined_call_operand.hbm [shape: f32[1,512], index: 4, kind: input, shape index: {}]
  %s5 = inlined_call_operand.hbm [shape: bf16[512,128], index: 5, kind: input, shape index: {}]
  %s6 = inlined_call_operand.vmem [shape: f32[1,128], index: 6, kind: input, shape index: {}]
  %s7 = inlined_call_operand.hbm [shape: f32[512,128], index: 7, kind: output, shape index: {}]
  %s8 = sld [smem:[#allocation0]]
  $region85: #{tpu_custom_call.1} parent=0
    _
  %s10 = ssub.s32 1, %s8
  %s11 = scalar_select 0, %s10, %s8
  $region1: #{tpu_custom_call.1} parent=0
    #allocation2 [shape = 'u8[524288]{0}', space=vmem, size = 0x80000, scoped, tag = 'input window, operand 0']
    #allocation3 [shape = 's32[2]{0}', space=sflag, size = 0x8, scoped, tag = 'scoped memory for tpu_custom_call.1']
    #allocation4 [shape = 's32[2]{0}', space=sflag, size = 0x8, scoped, tag = 'scoped memory for tpu_custom_call.1']
    #allocation5 [shape = 'u8[262144]{0}', space=vmem, size = 0x40000, scoped, tag = 'input window, operand 1, single buffered']
    #allocation6 [shape = 's32[1]{0}', space=sflag, size = 0x4, scoped, tag = 'scoped memory for tpu_custom_call.1']
    #allocation7 [shape = 'u8[2048]{0}', space=vmem, size = 0x800, scoped, tag = 'input window, operand 2, single buffered']
    #allocation8 [shape = 'u8[524288]{0}', space=vmem, size = 0x80000, scoped, tag = 'input window, operand 3, single buffered']
    #allocation9 [shape = 's32[1]{0}', space=sflag, size = 0x4, scoped, tag = 'scoped memory for tpu_custom_call.1']
    #allocation10 [shape = 'u8[2048]{0}', space=vmem, size = 0x800, scoped, tag = 'input window, operand 4, single buffered']
    #allocation11 [shape = 'u8[131072]{0}', space=vmem, size = 0x20000, scoped, tag = 'input window, operand 5, single buffered']
    #allocation12 [shape = 's32[1]{0}', space=sflag, size = 0x4, scoped, tag = 'scoped memory for tpu_custom_call.1']
    #allocation13 [shape = 'u8[262144]{0}', space=vmem, size = 0x40000, scoped, tag = 'output window, operand 0']
    %12 = vsyncpa [#allocation3], 0
    %s13 = scalar_lea.sflag [#allocation3], 1
    %14 = vsyncpa %s13, 0
    %15 = vsyncpa [#allocation6], 0
    %16 = vsyncpa [#allocation9], 0
    %17 = vsyncpa [#allocation12], 0
    %18 = vsyncpa [#allocation4], 0
    %s19 = scalar_lea.sflag [#allocation4], 1
    %20 = vsyncpa %s19, 0
    loop: start=0, step=1, limit=4
    $region2: #{tpu_custom_call.1} parent=1 // loop_pre_header
      _
    $region3: #{tpu_custom_call.1} parent=1 // loop_header
      %s22 = sphi 0, %s26
      %p23 = scmp.ge.s32.totalorder %s22, 4
      %s32 = sphi 0, %s34
      %s35 = sphi 0, %s32
      %s36 = sphi 0, %s35
      %s52 = sphi 0, %s36
      %s56 = sphi 0, %s56
      %s58 = sphi 0, %s56
      %s59 = sphi 0, %s58
      %s73 = sphi 0, %s59
      %s77 = sphi 0, %s77
      %s79 = sphi 0, %s77
      %s80 = sphi 0, %s79
      %s94 = sphi 0, %s80
      %s98 = sphi 0, %s98
      %s100 = sphi 0, %s98
      %s101 = sphi 0, %s100
      %s115 = sphi 0, %s101
      %s119 = sphi 0, %s119
      %s121 = sphi 0, %s119
      %s122 = sphi 0, %s121
      %s136 = sphi 0, %s122
      %s140 = sphi 0, %s140
      %s142 = sphi 0, %s140
      %s143 = sphi 0, %s142
      %s157 = sphi 0, %s143
      %s161 = sphi 0, %s161
      %s163 = sphi 0, %s161
      %s164 = sphi 0, %s163
      %s178 = sphi 0, %s164
      %s184 = sphi 0, %s186
      %s187 = sphi 0, %s184
      %s188 = sphi 0, %s187
      %s204 = sphi 0, %s188
    $region4: #{tpu_custom_call.1} parent=1 // loop_header_branch
      %25 = sbr.rel (%p23) target = $region8
    $region5: #{tpu_custom_call.1} parent=1 // loop_body
      %s27 = ssub.s32 %s22, 1
      %s28 = ssub.s32 %s22, 2
      %s29 = sadd.s32 %s22, 1
      %s30 = ssub.s32 %s22, %s29
      %p31 = scmp.eq.s32.totalorder %s30, 0
      %s33 = sadd.s32 %s32, 1
      %s34 = scalar_select %p31, %s32, %s33
      %p37 = pneg %p31
      %p38 = scmp.eq.s32.totalorder %s22, 1
      %p39 = por %p37, %p38
      %p40 = scmp.ne.s32.totalorder %s32, %s35
      %p41 = scmp.eq.s32.totalorder %s22, 0
      %p42 = por %p40, %p41
      %p43 = scmp.ne.s32.totalorder %s32, %s35
      %p44 = scmp.eq.s32.totalorder %s27, 1
      %p45 = por %p43, %p44
      %p46 = scmp.ne.s32.totalorder %s35, %s36
      %p47 = scmp.eq.s32.totalorder %s27, 0
      %p48 = por %p46, %p47
      %p49 = scmp.ne.s32.totalorder %s35, %s36
      %p50 = scmp.eq.s32.totalorder %s28, 1
      %p51 = por %p49, %p50
      %p53 = scmp.ne.s32.totalorder %s36, %s52
      %p54 = scmp.eq.s32.totalorder %s28, 0
      %p55 = por %p53, %p54
      %s57 = sadd.s32 %s56, 1
      %p60 = scmp.eq.s32.totalorder %s22, 1
      %p61 = scmp.ne.s32.totalorder %s56, %s58
      %p62 = scmp.eq.s32.totalorder %s22, 0
      %p63 = por %p61, %p62
      %p64 = scmp.ne.s32.totalorder %s56, %s58
      %p65 = scmp.eq.s32.totalorder %s27, 1
      %p66 = por %p64, %p65
      %p67 = scmp.ne.s32.totalorder %s58, %s59
      %p68 = scmp.eq.s32.totalorder %s27, 0
      %p69 = por %p67, %p68
      %p70 = scmp.ne.s32.totalorder %s58, %s59
      %p71 = scmp.eq.s32.totalorder %s28, 1
      %p72 = por %p70, %p71
      %p74 = scmp.ne.s32.totalorder %s59, %s73
      %p75 = scmp.eq.s32.totalorder %s28, 0
      %p76 = por %p74, %p75
      %s78 = sadd.s32 %s77, 1
      %p81 = scmp.eq.s32.totalorder %s22, 1
      %p82 = scmp.ne.s32.totalorder %s77, %s79
      %p83 = scmp.eq.s32.totalorder %s22, 0
      %p84 = por %p82, %p83
      %p85 = scmp.ne.s32.totalorder %s77, %s79
      %p86 = scmp.eq.s32.totalorder %s27, 1
      %p87 = por %p85, %p86
      %p88 = scmp.ne.s32.totalorder %s79, %s80
      %p89 = scmp.eq.s32.totalorder %s27, 0
      %p90 = por %p88, %p89
      %p91 = scmp.ne.s32.totalorder %s79, %s80
      %p92 = scmp.eq.s32.totalorder %s28, 1
      %p93 = por %p91, %p92
      %p95 = scmp.ne.s32.totalorder %s80, %s94
      %p96 = scmp.eq.s32.totalorder %s28, 0
      %p97 = por %p95, %p96
      %s99 = sadd.s32 %s98, 1
      %p102 = scmp.eq.s32.totalorder %s22, 1
      %p103 = scmp.ne.s32.totalorder %s98, %s100
      %p104 = scmp.eq.s32.totalorder %s22, 0
      %p105 = por %p103, %p104
      %p106 = scmp.ne.s32.totalorder %s98, %s100
      %p107 = scmp.eq.s32.totalorder %s27, 1
      %p108 = por %p106, %p107
      %p109 = scmp.ne.s32.totalorder %s100, %s101
      %p110 = scmp.eq.s32.totalorder %s27, 0
      %p111 = por %p109, %p110
      %p112 = scmp.ne.s32.totalorder %s100, %s101
      %p113 = scmp.eq.s32.totalorder %s28, 1
      %p114 = por %p112, %p113
      %p116 = scmp.ne.s32.totalorder %s101, %s115
      %p117 = scmp.eq.s32.totalorder %s28, 0
      %p118 = por %p116, %p117
      %s120 = sadd.s32 %s119, 1
      %p123 = scmp.eq.s32.totalorder %s22, 1
      %p124 = scmp.ne.s32.totalorder %s119, %s121
      %p125 = scmp.eq.s32.totalorder %s22, 0
      %p126 = por %p124, %p125
      %p127 = scmp.ne.s32.totalorder %s119, %s121
      %p128 = scmp.eq.s32.totalorder %s27, 1
      %p129 = por %p127, %p128
      %p130 = scmp.ne.s32.totalorder %s121, %s122
      %p131 = scmp.eq.s32.totalorder %s27, 0
      %p132 = por %p130, %p131
      %p133 = scmp.ne.s32.totalorder %s121, %s122
      %p134 = scmp.eq.s32.totalorder %s28, 1
      %p135 = por %p133, %p134
      %p137 = scmp.ne.s32.totalorder %s122, %s136
      %p138 = scmp.eq.s32.totalorder %s28, 0
      %p139 = por %p137, %p138
      %s141 = sadd.s32 %s140, 1
      %p144 = scmp.eq.s32.totalorder %s22, 1
      %p145 = scmp.ne.s32.totalorder %s140, %s142
      %p146 = scmp.eq.s32.totalorder %s22, 0
      %p147 = por %p145, %p146
      %p148 = scmp.ne.s32.totalorder %s140, %s142
      %p149 = scmp.eq.s32.totalorder %s27, 1
      %p150 = por %p148, %p149
      %p151 = scmp.ne.s32.totalorder %s142, %s143
      %p152 = scmp.eq.s32.totalorder %s27, 0
      %p153 = por %p151, %p152
      %p154 = scmp.ne.s32.totalorder %s142, %s143
      %p155 = scmp.eq.s32.totalorder %s28, 1
      %p156 = por %p154, %p155
      %p158 = scmp.ne.s32.totalorder %s143, %s157
      %p159 = scmp.eq.s32.totalorder %s28, 0
      %p160 = por %p158, %p159
      %s162 = sadd.s32 %s161, 1
      %p165 = scmp.eq.s32.totalorder %s22, 1
      %p166 = scmp.ne.s32.totalorder %s161, %s163
      %p167 = scmp.eq.s32.totalorder %s22, 0
      %p168 = por %p166, %p167
      %p169 = scmp.ne.s32.totalorder %s161, %s163
      %p170 = scmp.eq.s32.totalorder %s27, 1
      %p171 = por %p169, %p170
      %p172 = scmp.ne.s32.totalorder %s163, %s164
      %p173 = scmp.eq.s32.totalorder %s27, 0
      %p174 = por %p172, %p173
      %p175 = scmp.ne.s32.totalorder %s163, %s164
      %p176 = scmp.eq.s32.totalorder %s28, 1
      %p177 = por %p175, %p176
      %p179 = scmp.ne.s32.totalorder %s164, %s178
      %p180 = scmp.eq.s32.totalorder %s28, 0
      %p181 = por %p179, %p180
      %s182 = ssub.s32 %s22, %s29
      %p183 = scmp.eq.s32.totalorder %s182, 0
      %s185 = sadd.s32 %s184, 1
      %s186 = scalar_select %p183, %s184, %s185
      %p189 = pneg %p183
      %p190 = scmp.eq.s32.totalorder %s22, 1
      %p191 = por %p189, %p190
      %p192 = scmp.ne.s32.totalorder %s184, %s187
      %p193 = scmp.eq.s32.totalorder %s22, 0
      %p194 = por %p192, %p193
      %p195 = scmp.ne.s32.totalorder %s184, %s187
      %p196 = scmp.eq.s32.totalorder %s27, 1
      %p197 = por %p195, %p196
      %p198 = scmp.ne.s32.totalorder %s187, %s188
      %p199 = scmp.eq.s32.totalorder %s27, 0
      %p200 = por %p198, %p199
      %p201 = scmp.ne.s32.totalorder %s187, %s188
      %p202 = scmp.eq.s32.totalorder %s28, 1
      %p203 = por %p201, %p202
      %p205 = scmp.ne.s32.totalorder %s188, %s204
      %p206 = scmp.eq.s32.totalorder %s28, 0
      %p207 = por %p205, %p206
      %p208 = scmp.le.s32.totalorder 1, %s22
      %p209 = scmp.lt.s32.totalorder %s22, 3
      %p210 = pnand %p208, %p209
      %p211 = pneg %p210
      // Predicated region
      $region9: #{tpu_custom_call.1} parent=5 // pred_check
        _
      $region10: #{tpu_custom_call.1} parent=5 // pred_check_branch
        %213 = sbr.rel (%p210) target = $region12
      $region11: #{tpu_custom_call.1} parent=5 // pred_region
        %s214 = ssub.s32 %s22, 1
        // Predicated region
        $region13: #{tpu_custom_call.1} parent=11 // pred_check
          %p215 = pneg %p69
        $region14: #{tpu_custom_call.1} parent=11 // pred_check_branch
          %217 = sbr.rel (%p215) target = $region16
        $region15: #{tpu_custom_call.1} parent=11 // pred_region
          %219 = vsyncadd [#allocation6], 0
          %s220 = sshll.u32 %s1, 4
          %s221 = int_to_ptr.hbm [resolvable:$true] %s220
          %s222 = sshll.u32 [#allocation5], 4
          %s223 = int_to_ptr.vmem [resolvable:$true] %s222
          %228 = dma.hbm_to_vmem [thread:$0]  %s221, 8192, %s223, [#allocation6], 256, 256, 16
        $region16: #{tpu_custom_call.1} parent=11 // pred_fallthru
          _
        // Predicated region
        $region17: #{tpu_custom_call.1} parent=11 // pred_check
          %p229 = pneg %p90
        $region18: #{tpu_custom_call.1} parent=11 // pred_check_branch
          %231 = sbr.rel (%p229) target = $region20
        $region19: #{tpu_custom_call.1} parent=11 // pred_region
          %233 = vsyncadd [#allocation6], 0
          %s235 = sshll.u32 %s2, 4
          %s236 = int_to_ptr.hbm [resolvable:$true] %s235
          %s237 = sshll.u32 [#allocation7], 4
          %s238 = int_to_ptr.vmem [resolvable:$true] %s237
          %240 = dma.hbm_to_vmem [thread:$0]  %s236, 64, %s238, [#allocation6]
        $region20: #{tpu_custom_call.1} parent=11 // pred_fallthru
          _
        // Predicated region
        $region21: #{tpu_custom_call.1} parent=11 // pred_check
          %p241 = pneg %p111
        $region22: #{tpu_custom_call.1} parent=11 // pred_check_branch
          %243 = sbr.rel (%p241) target = $region24
        $region23: #{tpu_custom_call.1} parent=11 // pred_region
          %245 = vsyncadd [#allocation9], 0
          %s246 = sshll.u32 %s3, 4
          %s247 = int_to_ptr.hbm [resolvable:$true] %s246
          %s248 = sshll.u32 [#allocation8], 4
          %s249 = int_to_ptr.vmem [resolvable:$true] %s248
          %254 = dma.hbm_to_vmem [thread:$0]  %s247, 16384, %s249, [#allocation9], 256, 256, 16
        $region24: #{tpu_custom_call.1} parent=11 // pred_fallthru
          _
        // Predicated region
        $region25: #{tpu_custom_call.1} parent=11 // pred_check
          %p255 = pneg %p132
        $region26: #{tpu_custom_call.1} parent=11 // pred_check_branch
          %257 = sbr.rel (%p255) target = $region28
        $region27: #{tpu_custom_call.1} parent=11 // pred_region
          %259 = vsyncadd [#allocation9], 0
          %s261 = sshll.u32 %s4, 4
          %s262 = int_to_ptr.hbm [resolvable:$true] %s261
          %s263 = sshll.u32 [#allocation10], 4
          %s264 = int_to_ptr.vmem [resolvable:$true] %s263
          %266 = dma.hbm_to_vmem [thread:$0]  %s262, 64, %s264, [#allocation9]
        $region28: #{tpu_custom_call.1} parent=11 // pred_fallthru
          _
        // Predicated region
        $region29: #{tpu_custom_call.1} parent=11 // pred_check
          %p267 = pneg %p153
        $region30: #{tpu_custom_call.1} parent=11 // pred_check_branch
          %269 = sbr.rel (%p267) target = $region32
        $region31: #{tpu_custom_call.1} parent=11 // pred_region
          %271 = vsyncadd [#allocation12], 0
          %s272 = sshll.u32 %s5, 4
          %s273 = int_to_ptr.hbm [resolvable:$true] %s272
          %s274 = sshll.u32 [#allocation11], 4
          %s275 = int_to_ptr.vmem [resolvable:$true] %s274
          %280 = dma.hbm_to_vmem [thread:$0]  %s273, 4096, %s275, [#allocation12], 64, 64, 4
        $region32: #{tpu_custom_call.1} parent=11 // pred_fallthru
          _
        // Predicated region
        $region33: #{tpu_custom_call.1} parent=11 // pred_check
          %p281 = pneg %p174
        $region34: #{tpu_custom_call.1} parent=11 // pred_check_branch
          %283 = sbr.rel (%p281) target = $region36
        $region35: #{tpu_custom_call.1} parent=11 // pred_region
          _
        $region36: #{tpu_custom_call.1} parent=11 // pred_fallthru
          _
      $region12: #{tpu_custom_call.1} parent=5 // pred_fallthru
        _
      %p284 = scmp.lt.s32.totalorder %s22, 2
      // Predicated region
      $region37: #{tpu_custom_call.1} parent=5 // pred_check
        %p285 = pneg %p284
      $region38: #{tpu_custom_call.1} parent=5 // pred_check_branch
        %287 = sbr.rel (%p285) target = $region40
      $region39: #{tpu_custom_call.1} parent=5 // pred_region
        // Predicated region
        $region41: #{tpu_custom_call.1} parent=39 // pred_check
          %p288 = pneg %p42
        $region42: #{tpu_custom_call.1} parent=39 // pred_check_branch
          %290 = sbr.rel (%p288) target = $region44
        $region43: #{tpu_custom_call.1} parent=39 // pred_region
          %s291 = sand.u32 %s32, 1
          %s292 = scalar_lea.sflag [#allocation3], %s291
          %s293 = sand.u32 %s32, 1
          %s294 = smul.addr %s293, 512
          %s295 = scalar_lea.vmem [#allocation2], %s294
          %s296 = smul.u32 32, %s22
          %298 = vsyncadd %s292, 0
          %s299 = smul.addr %s296, 2
          %s300 = smul.addr %s299, 8
          %s301 = scalar_lea.hbm %s0, %s300
          %s302 = sshll.u32 %s301, 4
          %s303 = int_to_ptr.hbm [resolvable:$true] %s302
          %s304 = sshll.u32 %s295, 4
          %s305 = int_to_ptr.vmem [resolvable:$true] %s304
          %310 = dma.hbm_to_vmem [thread:$0]  %s303, 8192, %s305, %s292, 256, 256, 16
        $region44: #{tpu_custom_call.1} parent=39 // pred_fallthru
          _
      $region40: #{tpu_custom_call.1} parent=5 // pred_fallthru
        _
      %p311 = scmp.le.s32.totalorder 1, %s22
      %p312 = scmp.lt.s32.totalorder %s22, 3
      %p313 = pnand %p311, %p312
      %p314 = pneg %p313
      // Predicated region
      $region45: #{tpu_custom_call.1} parent=5 // pred_check
        _
      $region46: #{tpu_custom_call.1} parent=5 // pred_check_branch
        %316 = sbr.rel (%p313) target = $region48
      $region47: #{tpu_custom_call.1} parent=5 // pred_region
        %s317 = ssub.s32 %s22, 1
        %s318 = sand.u32 %s35, 1
        %s319 = scalar_lea.sflag [#allocation3], %s318
        %s320 = sand.u32 %s35, 1
        %s321 = smul.addr %s320, 512
        %s322 = scalar_lea.vmem [#allocation2], %s321
        // Predicated region
        $region49: #{tpu_custom_call.1} parent=47 // pred_check
          %p323 = pneg %p48
        $region50: #{tpu_custom_call.1} parent=47 // pred_check_branch
          %325 = sbr.rel (%p323) target = $region52
        $region51: #{tpu_custom_call.1} parent=47 // pred_region
          %327 = dma.done %s319, 8192
        $region52: #{tpu_custom_call.1} parent=47 // pred_fallthru
          _
        // Predicated region
        $region53: #{tpu_custom_call.1} parent=47 // pred_check
          %p328 = pneg %p69
        $region54: #{tpu_custom_call.1} parent=47 // pred_check_branch
          %330 = sbr.rel (%p328) target = $region56
        $region55: #{tpu_custom_call.1} parent=47 // pred_region
          %332 = dma.done [#allocation6], 8192
        $region56: #{tpu_custom_call.1} parent=47 // pred_fallthru
          _
        // Predicated region
        $region57: #{tpu_custom_call.1} parent=47 // pred_check
          %p333 = pneg %p90
        $region58: #{tpu_custom_call.1} parent=47 // pred_check_branch
          %335 = sbr.rel (%p333) target = $region60
        $region59: #{tpu_custom_call.1} parent=47 // pred_region
          %337 = dma.done [#allocation6], 64
        $region60: #{tpu_custom_call.1} parent=47 // pred_fallthru
          _
        // Predicated region
        $region61: #{tpu_custom_call.1} parent=47 // pred_check
          %p338 = pneg %p111
        $region62: #{tpu_custom_call.1} parent=47 // pred_check_branch
          %340 = sbr.rel (%p338) target = $region64
        $region63: #{tpu_custom_call.1} parent=47 // pred_region
          %342 = dma.done [#allocation9], 16384
        $region64: #{tpu_custom_call.1} parent=47 // pred_fallthru
          _
        // Predicated region
        $region65: #{tpu_custom_call.1} parent=47 // pred_check
          %p343 = pneg %p132
        $region66: #{tpu_custom_call.1} parent=47 // pred_check_branch
          %345 = sbr.rel (%p343) target = $region68
        $region67: #{tpu_custom_call.1} parent=47 // pred_region
          %347 = dma.done [#allocation9], 64
        $region68: #{tpu_custom_call.1} parent=47 // pred_fallthru
          _
        // Predicated region
        $region69: #{tpu_custom_call.1} parent=47 // pred_check
          %p348 = pneg %p153
        $region70: #{tpu_custom_call.1} parent=47 // pred_check_branch
          %350 = sbr.rel (%p348) target = $region72
        $region71: #{tpu_custom_call.1} parent=47 // pred_region
          %352 = dma.done [#allocation12], 4096
        $region72: #{tpu_custom_call.1} parent=47 // pred_fallthru
          _
        %s353 = sand.u32 %s35, 1
        %s354 = scalar_lea.sflag [#allocation3], %s353
        %s355 = sand.u32 %s35, 1
        %s356 = smul.addr %s355, 512
        %s357 = scalar_lea.vmem [#allocation2], %s356
        %p358 = pneg %p48
        %p359 = pneg %p45
        %p360 = pneg %p69
        %p361 = pneg %p66
        %p362 = pneg %p90
        %p363 = pneg %p87
        %p364 = pneg %p111
        %p365 = pneg %p108
        %p366 = pneg %p132
        %p367 = pneg %p129
        %p368 = pneg %p153
        %p369 = pneg %p150
        %p370 = pneg %p174
        %p371 = pneg %p171
        %p372 = pneg %p200
        %p373 = pneg %p197
        %s374 = sand.u32 %s187, 1
        %s375 = scalar_lea.sflag [#allocation4], %s374
        %s376 = sand.u32 %s187, 1
        %s377 = smul.addr %s376, 256
        %s378 = scalar_lea.vmem [#allocation13], %s377
        %s379 = smul.u32 32, %s27
        %s380 = smul.u32 32, %s27
        %v381 = vld [vmem:[%s322] sm:$0xff]
        %v382 = vld [vmem:[%s322 + $0x8] sm:$0xff]
        %v383 = vld [vmem:[%s322 + $0x10] sm:$0xff]
        %v384 = vld [vmem:[%s322 + $0x18] sm:$0xff]
        %v385 = vld [vmem:[%s322 + $0x20] sm:$0xff]
        %v386 = vld [vmem:[%s322 + $0x28] sm:$0xff]
        %v387 = vld [vmem:[%s322 + $0x30] sm:$0xff]
        %v388 = vld [vmem:[%s322 + $0x38] sm:$0xff]
        %v389 = vld [vmem:[%s322 + $0x40] sm:$0xff]
        %v390 = vld [vmem:[%s322 + $0x48] sm:$0xff]
        %v391 = vld [vmem:[%s322 + $0x50] sm:$0xff]
        %v392 = vld [vmem:[%s322 + $0x58] sm:$0xff]
        %v393 = vld [vmem:[%s322 + $0x60] sm:$0xff]
        %v394 = vld [vmem:[%s322 + $0x68] sm:$0xff]
        %v395 = vld [vmem:[%s322 + $0x70] sm:$0xff]
        %v396 = vld [vmem:[%s322 + $0x78] sm:$0xff]
        %v397 = vld [vmem:[%s322 + $0x80] sm:$0xff]
        %v398 = vld [vmem:[%s322 + $0x88] sm:$0xff]
        %v399 = vld [vmem:[%s322 + $0x90] sm:$0xff]
        %v400 = vld [vmem:[%s322 + $0x98] sm:$0xff]
        %v401 = vld [vmem:[%s322 + $0xa0] sm:$0xff]
        %v402 = vld [vmem:[%s322 + $0xa8] sm:$0xff]
        %v403 = vld [vmem:[%s322 + $0xb0] sm:$0xff]
        %v404 = vld [vmem:[%s322 + $0xb8] sm:$0xff]
        %v405 = vld [vmem:[%s322 + $0xc0] sm:$0xff]
        %v406 = vld [vmem:[%s322 + $0xc8] sm:$0xff]
        %v407 = vld [vmem:[%s322 + $0xd0] sm:$0xff]
        %v408 = vld [vmem:[%s322 + $0xd8] sm:$0xff]
        %v409 = vld [vmem:[%s322 + $0xe0] sm:$0xff]
        %v410 = vld [vmem:[%s322 + $0xe8] sm:$0xff]
        %v411 = vld [vmem:[%s322 + $0xf0] sm:$0xff]
        %v412 = vld [vmem:[%s322 + $0xf8] sm:$0xff]
        %v413 = vld [vmem:[%s322 + $0x100] sm:$0xff]
        %v414 = vld [vmem:[%s322 + $0x108] sm:$0xff]
        %v415 = vld [vmem:[%s322 + $0x110] sm:$0xff]
        %v416 = vld [vmem:[%s322 + $0x118] sm:$0xff]
        %v417 = vld [vmem:[%s322 + $0x120] sm:$0xff]
        %v418 = vld [vmem:[%s322 + $0x128] sm:$0xff]
        %v419 = vld [vmem:[%s322 + $0x130] sm:$0xff]
        %v420 = vld [vmem:[%s322 + $0x138] sm:$0xff]
        %v421 = vld [vmem:[%s322 + $0x140] sm:$0xff]
        %v422 = vld [vmem:[%s322 + $0x148] sm:$0xff]
        %v423 = vld [vmem:[%s322 + $0x150] sm:$0xff]
        %v424 = vld [vmem:[%s322 + $0x158] sm:$0xff]
        %v425 = vld [vmem:[%s322 + $0x160] sm:$0xff]
        %v426 = vld [vmem:[%s322 + $0x168] sm:$0xff]
        %v427 = vld [vmem:[%s322 + $0x170] sm:$0xff]
        %v428 = vld [vmem:[%s322 + $0x178] sm:$0xff]
        %v429 = vld [vmem:[%s322 + $0x180] sm:$0xff]
        %v430 = vld [vmem:[%s322 + $0x188] sm:$0xff]
        %v431 = vld [vmem:[%s322 + $0x190] sm:$0xff]
        %v432 = vld [vmem:[%s322 + $0x198] sm:$0xff]
        %v433 = vld [vmem:[%s322 + $0x1a0] sm:$0xff]
        %v434 = vld [vmem:[%s322 + $0x1a8] sm:$0xff]
        %v435 = vld [vmem:[%s322 + $0x1b0] sm:$0xff]
        %v436 = vld [vmem:[%s322 + $0x1b8] sm:$0xff]
        %v437 = vld [vmem:[%s322 + $0x1c0] sm:$0xff]
        %v438 = vld [vmem:[%s322 + $0x1c8] sm:$0xff]
        %v439 = vld [vmem:[%s322 + $0x1d0] sm:$0xff]
        %v440 = vld [vmem:[%s322 + $0x1d8] sm:$0xff]
        %v441 = vld [vmem:[%s322 + $0x1e0] sm:$0xff]
        %v442 = vld [vmem:[%s322 + $0x1e8] sm:$0xff]
        %v443 = vld [vmem:[%s322 + $0x1f0] sm:$0xff]
        %v444 = vld [vmem:[%s322 + $0x1f8] sm:$0xff]
        %v445 = vpack.c.bf16 %v383, %v381
        %v446 = vpack.c.bf16 %v384, %v382
        %v447 = vpack.c.bf16 %v387, %v385
        %v448 = vpack.c.bf16 %v388, %v386
        %v449 = vpack.c.bf16 %v391, %v389
        %v450 = vpack.c.bf16 %v392, %v390
        %v451 = vpack.c.bf16 %v395, %v393
        %v452 = vpack.c.bf16 %v396, %v394
        %v453 = vpack.c.bf16 %v399, %v397
        %v454 = vpack.c.bf16 %v400, %v398
        %v455 = vpack.c.bf16 %v403, %v401
        %v456 = vpack.c.bf16 %v404, %v402
        %v457 = vpack.c.bf16 %v407, %v405
        %v458 = vpack.c.bf16 %v408, %v406
        %v459 = vpack.c.bf16 %v411, %v409
        %v460 = vpack.c.bf16 %v412, %v410
        %v461 = vpack.c.bf16 %v415, %v413
        %v462 = vpack.c.bf16 %v416, %v414
        %v463 = vpack.c.bf16 %v419, %v417
        %v464 = vpack.c.bf16 %v420, %v418
        %v465 = vpack.c.bf16 %v423, %v421
        %v466 = vpack.c.bf16 %v424, %v422
        %v467 = vpack.c.bf16 %v427, %v425
        %v468 = vpack.c.bf16 %v428, %v426
        %v469 = vpack.c.bf16 %v431, %v429
        %v470 = vpack.c.bf16 %v432, %v430
        %v471 = vpack.c.bf16 %v435, %v433
        %v472 = vpack.c.bf16 %v436, %v434
        %v473 = vpack.c.bf16 %v439, %v437
        %v474 = vpack.c.bf16 %v440, %v438
        %v475 = vpack.c.bf16 %v443, %v441
        %v476 = vpack.c.bf16 %v444, %v442
        %v477 = vld [vmem:[#allocation5] sm:$0xff]
        %v478 = vld [vmem:[#allocation5 + $0x8] sm:$0xff]
        %v479 = vld [vmem:[#allocation5 + $0x10] sm:$0xff]
        %v480 = vld [vmem:[#allocation5 + $0x18] sm:$0xff]
        %v481 = vld [vmem:[#allocation5 + $0x20] sm:$0xff]
        %v482 = vld [vmem:[#allocation5 + $0x28] sm:$0xff]
        %v483 = vld [vmem:[#allocation5 + $0x30] sm:$0xff]
        %v484 = vld [vmem:[#allocation5 + $0x38] sm:$0xff]
        %v485 = vld [vmem:[#allocation5 + $0x40] sm:$0xff]
        %v486 = vld [vmem:[#allocation5 + $0x48] sm:$0xff]
        %v487 = vld [vmem:[#allocation5 + $0x50] sm:$0xff]
        %v488 = vld [vmem:[#allocation5 + $0x58] sm:$0xff]
        %v489 = vld [vmem:[#allocation5 + $0x60] sm:$0xff]
        %v490 = vld [vmem:[#allocation5 + $0x68] sm:$0xff]
        %v491 = vld [vmem:[#allocation5 + $0x70] sm:$0xff]
        %v492 = vld [vmem:[#allocation5 + $0x78] sm:$0xff]
        %v493 = vld [vmem:[#allocation5 + $0x80] sm:$0xff]
        %v494 = vld [vmem:[#allocation5 + $0x88] sm:$0xff]
        %v495 = vld [vmem:[#allocation5 + $0x90] sm:$0xff]
        %v496 = vld [vmem:[#allocation5 + $0x98] sm:$0xff]
        %v497 = vld [vmem:[#allocation5 + $0xa0] sm:$0xff]
        %v498 = vld [vmem:[#allocation5 + $0xa8] sm:$0xff]
        %v499 = vld [vmem:[#allocation5 + $0xb0] sm:$0xff]
        %v500 = vld [vmem:[#allocation5 + $0xb8] sm:$0xff]
        %v501 = vld [vmem:[#allocation5 + $0xc0] sm:$0xff]
        %v502 = vld [vmem:[#allocation5 + $0xc8] sm:$0xff]
        %v503 = vld [vmem:[#allocation5 + $0xd0] sm:$0xff]
        %v504 = vld [vmem:[#allocation5 + $0xd8] sm:$0xff]
        %v505 = vld [vmem:[#allocation5 + $0xe0] sm:$0xff]
        %v506 = vld [vmem:[#allocation5 + $0xe8] sm:$0xff]
        %v507 = vld [vmem:[#allocation5 + $0xf0] sm:$0xff]
        %v508 = vld [vmem:[#allocation5 + $0xf8] sm:$0xff]
        %v509 = vld [vmem:[#allocation5 + $0x100] sm:$0xff]
        %v510 = vld [vmem:[#allocation5 + $0x108] sm:$0xff]
        %v511 = vld [vmem:[#allocation5 + $0x110] sm:$0xff]
        %v512 = vld [vmem:[#allocation5 + $0x118] sm:$0xff]
        %v513 = vld [vmem:[#allocation5 + $0x120] sm:$0xff]
        %v514 = vld [vmem:[#allocation5 + $0x128] sm:$0xff]
        %v515 = vld [vmem:[#allocation5 + $0x130] sm:$0xff]
        %v516 = vld [vmem:[#allocation5 + $0x138] sm:$0xff]
        %v517 = vld [vmem:[#allocation5 + $0x140] sm:$0xff]
        %v518 = vld [vmem:[#allocation5 + $0x148] sm:$0xff]
        %v519 = vld [vmem:[#allocation5 + $0x150] sm:$0xff]
        %v520 = vld [vmem:[#allocation5 + $0x158] sm:$0xff]
        %v521 = vld [vmem:[#allocation5 + $0x160] sm:$0xff]
        %v522 = vld [vmem:[#allocation5 + $0x168] sm:$0xff]
        %v523 = vld [vmem:[#allocation5 + $0x170] sm:$0xff]
        %v524 = vld [vmem:[#allocation5 + $0x178] sm:$0xff]
        %v525 = vld [vmem:[#allocation5 + $0x180] sm:$0xff]
        %v526 = vld [vmem:[#allocation5 + $0x188] sm:$0xff]
        %v527 = vld [vmem:[#allocation5 + $0x190] sm:$0xff]
        %v528 = vld [vmem:[#allocation5 + $0x198] sm:$0xff]
        %v529 = vld [vmem:[#allocation5 + $0x1a0] sm:$0xff]
        %v530 = vld [vmem:[#allocation5 + $0x1a8] sm:$0xff]
        %v531 = vld [vmem:[#allocation5 + $0x1b0] sm:$0xff]
        %v532 = vld [vmem:[#allocation5 + $0x1b8] sm:$0xff]
        %v533 = vld [vmem:[#allocation5 + $0x1c0] sm:$0xff]
        %v534 = vld [vmem:[#allocation5 + $0x1c8] sm:$0xff]
        %v535 = vld [vmem:[#allocation5 + $0x1d0] sm:$0xff]
        %v536 = vld [vmem:[#allocation5 + $0x1d8] sm:$0xff]
        %v537 = vld [vmem:[#allocation5 + $0x1e0] sm:$0xff]
        %v538 = vld [vmem:[#allocation5 + $0x1e8] sm:$0xff]
        %v539 = vld [vmem:[#allocation5 + $0x1f0] sm:$0xff]
        %v540 = vld [vmem:[#allocation5 + $0x1f8] sm:$0xff]
        %v541 = vld [vmem:[#allocation7] sm:$0xf]
        %v543 = vperm.slane %v541, 0
        %v544 = vperm.slane %v541, 1
        %v545 = vperm.slane %v541, 2
        %v546 = vperm.slane %v541, 3
        %v615 = vunpack.c.l.b16 %v477
        %v616 = vunpack.c.h.b16 %v477
        %v617 = vunpack.c.l.b16 %v478
        %v618 = vunpack.c.h.b16 %v478
        %v619 = vunpack.c.l.b16 %v479
        %v620 = vunpack.c.h.b16 %v479
        %v621 = vunpack.c.l.b16 %v480
        %v622 = vunpack.c.h.b16 %v480
        %v623 = vunpack.c.l.b16 %v481
        %v624 = vunpack.c.h.b16 %v481
        %v625 = vunpack.c.l.b16 %v482
        %v626 = vunpack.c.h.b16 %v482
        %v627 = vunpack.c.l.b16 %v483
        %v628 = vunpack.c.h.b16 %v483
        %v629 = vunpack.c.l.b16 %v484
        %v630 = vunpack.c.h.b16 %v484
        %v631 = vunpack.c.l.b16 %v485
        %v632 = vunpack.c.h.b16 %v485
        %v633 = vunpack.c.l.b16 %v486
        %v634 = vunpack.c.h.b16 %v486
        %v635 = vunpack.c.l.b16 %v487
        %v636 = vunpack.c.h.b16 %v487
        %v637 = vunpack.c.l.b16 %v488
        %v638 = vunpack.c.h.b16 %v488
        %v639 = vunpack.c.l.b16 %v489
        %v640 = vunpack.c.h.b16 %v489
        %v641 = vunpack.c.l.b16 %v490
        %v642 = vunpack.c.h.b16 %v490
        %v643 = vunpack.c.l.b16 %v491
        %v644 = vunpack.c.h.b16 %v491
        %v645 = vunpack.c.l.b16 %v492
        %v646 = vunpack.c.h.b16 %v492
        %v647 = vunpack.c.l.b16 %v493
        %v648 = vunpack.c.h.b16 %v493
        %v649 = vunpack.c.l.b16 %v494
        %v650 = vunpack.c.h.b16 %v494
        %v651 = vunpack.c.l.b16 %v495
        %v652 = vunpack.c.h.b16 %v495
        %v653 = vunpack.c.l.b16 %v496
        %v654 = vunpack.c.h.b16 %v496
        %v655 = vunpack.c.l.b16 %v497
        %v656 = vunpack.c.h.b16 %v497
        %v657 = vunpack.c.l.b16 %v498
        %v658 = vunpack.c.h.b16 %v498
        %v659 = vunpack.c.l.b16 %v499
        %v660 = vunpack.c.h.b16 %v499
        %v661 = vunpack.c.l.b16 %v500
        %v662 = vunpack.c.h.b16 %v500
        %v663 = vunpack.c.l.b16 %v501
        %v664 = vunpack.c.h.b16 %v501
        %v665 = vunpack.c.l.b16 %v502
        %v666 = vunpack.c.h.b16 %v502
        %v667 = vunpack.c.l.b16 %v503
        %v668 = vunpack.c.h.b16 %v503
        %v669 = vunpack.c.l.b16 %v504
        %v670 = vunpack.c.h.b16 %v504
        %v671 = vunpack.c.l.b16 %v505
        %v672 = vunpack.c.h.b16 %v505
        %v673 = vunpack.c.l.b16 %v506
        %v674 = vunpack.c.h.b16 %v506
        %v675 = vunpack.c.l.b16 %v507
        %v676 = vunpack.c.h.b16 %v507
        %v677 = vunpack.c.l.b16 %v508
        %v678 = vunpack.c.h.b16 %v508
        %v679 = vunpack.c.l.b16 %v509
        %v680 = vunpack.c.h.b16 %v509
        %v681 = vunpack.c.l.b16 %v510
        %v682 = vunpack.c.h.b16 %v510
        %v683 = vunpack.c.l.b16 %v511
        %v684 = vunpack.c.h.b16 %v511
        %v685 = vunpack.c.l.b16 %v512
        %v686 = vunpack.c.h.b16 %v512
        %v687 = vunpack.c.l.b16 %v513
        %v688 = vunpack.c.h.b16 %v513
        %v689 = vunpack.c.l.b16 %v514
        %v690 = vunpack.c.h.b16 %v514
        %v691 = vunpack.c.l.b16 %v515
        %v692 = vunpack.c.h.b16 %v515
        %v693 = vunpack.c.l.b16 %v516
        %v694 = vunpack.c.h.b16 %v516
        %v695 = vunpack.c.l.b16 %v517
        %v696 = vunpack.c.h.b16 %v517
        %v697 = vunpack.c.l.b16 %v518
        %v698 = vunpack.c.h.b16 %v518
        %v699 = vunpack.c.l.b16 %v519
        %v700 = vunpack.c.h.b16 %v519
        %v701 = vunpack.c.l.b16 %v520
        %v702 = vunpack.c.h.b16 %v520
        %v703 = vunpack.c.l.b16 %v521
        %v704 = vunpack.c.h.b16 %v521
        %v705 = vunpack.c.l.b16 %v522
        %v706 = vunpack.c.h.b16 %v522
        %v707 = vunpack.c.l.b16 %v523
        %v708 = vunpack.c.h.b16 %v523
        %v709 = vunpack.c.l.b16 %v524
        %v710 = vunpack.c.h.b16 %v524
        %v711 = vunpack.c.l.b16 %v525
        %v712 = vunpack.c.h.b16 %v525
        %v713 = vunpack.c.l.b16 %v526
        %v714 = vunpack.c.h.b16 %v526
        %v715 = vunpack.c.l.b16 %v527
        %v716 = vunpack.c.h.b16 %v527
        %v717 = vunpack.c.l.b16 %v528
        %v718 = vunpack.c.h.b16 %v528
        %v719 = vunpack.c.l.b16 %v529
        %v720 = vunpack.c.h.b16 %v529
        %v721 = vunpack.c.l.b16 %v530
        %v722 = vunpack.c.h.b16 %v530
        %v723 = vunpack.c.l.b16 %v531
        %v724 = vunpack.c.h.b16 %v531
        %v725 = vunpack.c.l.b16 %v532
        %v726 = vunpack.c.h.b16 %v532
        %v727 = vunpack.c.l.b16 %v533
        %v728 = vunpack.c.h.b16 %v533
        %v729 = vunpack.c.l.b16 %v534
        %v730 = vunpack.c.h.b16 %v534
        %v731 = vunpack.c.l.b16 %v535
        %v732 = vunpack.c.h.b16 %v535
        %v733 = vunpack.c.l.b16 %v536
        %v734 = vunpack.c.h.b16 %v536
        %v735 = vunpack.c.l.b16 %v537
        %v736 = vunpack.c.h.b16 %v537
        %v737 = vunpack.c.l.b16 %v538
        %v738 = vunpack.c.h.b16 %v538
        %v739 = vunpack.c.l.b16 %v539
        %v740 = vunpack.c.h.b16 %v539
        %v741 = vunpack.c.l.b16 %v540
        %v742 = vunpack.c.h.b16 %v540
        %v743 = vpack.c.b16 %v619, %v615
        %v744 = vpack.c.b16 %v620, %v616
        %v745 = vpack.c.b16 %v621, %v617
        %v746 = vpack.c.b16 %v622, %v618
        %v747 = vpack.c.b16 %v627, %v623
        %v748 = vpack.c.b16 %v628, %v624
        %v749 = vpack.c.b16 %v629, %v625
        %v750 = vpack.c.b16 %v630, %v626
        %v751 = vpack.c.b16 %v635, %v631
        %v752 = vpack.c.b16 %v636, %v632
        %v753 = vpack.c.b16 %v637, %v633
        %v754 = vpack.c.b16 %v638, %v634
        %v755 = vpack.c.b16 %v643, %v639
        %v756 = vpack.c.b16 %v644, %v640
        %v757 = vpack.c.b16 %v645, %v641
        %v758 = vpack.c.b16 %v646, %v642
        %v759 = vpack.c.b16 %v651, %v647
        %v760 = vpack.c.b16 %v652, %v648
        %v761 = vpack.c.b16 %v653, %v649
        %v762 = vpack.c.b16 %v654, %v650
        %v763 = vpack.c.b16 %v659, %v655
        %v764 = vpack.c.b16 %v660, %v656
        %v765 = vpack.c.b16 %v661, %v657
        %v766 = vpack.c.b16 %v662, %v658
        %v767 = vpack.c.b16 %v667, %v663
        %v768 = vpack.c.b16 %v668, %v664
        %v769 = vpack.c.b16 %v669, %v665
        %v770 = vpack.c.b16 %v670, %v666
        %v771 = vpack.c.b16 %v675, %v671
        %v772 = vpack.c.b16 %v676, %v672
        %v773 = vpack.c.b16 %v677, %v673
        %v774 = vpack.c.b16 %v678, %v674
        %v775 = vpack.c.b16 %v683, %v679
        %v776 = vpack.c.b16 %v684, %v680
        %v777 = vpack.c.b16 %v685, %v681
        %v778 = vpack.c.b16 %v686, %v682
        %v779 = vpack.c.b16 %v691, %v687
        %v780 = vpack.c.b16 %v692, %v688
        %v781 = vpack.c.b16 %v693, %v689
        %v782 = vpack.c.b16 %v694, %v690
        %v783 = vpack.c.b16 %v699, %v695
        %v784 = vpack.c.b16 %v700, %v696
        %v785 = vpack.c.b16 %v701, %v697
        %v786 = vpack.c.b16 %v702, %v698
        %v787 = vpack.c.b16 %v707, %v703
        %v788 = vpack.c.b16 %v708, %v704
        %v789 = vpack.c.b16 %v709, %v705
        %v790 = vpack.c.b16 %v710, %v706
        %v791 = vpack.c.b16 %v715, %v711
        %v792 = vpack.c.b16 %v716, %v712
        %v793 = vpack.c.b16 %v717, %v713
        %v794 = vpack.c.b16 %v718, %v714
        %v795 = vpack.c.b16 %v723, %v719
        %v796 = vpack.c.b16 %v724, %v720
        %v797 = vpack.c.b16 %v725, %v721
        %v798 = vpack.c.b16 %v726, %v722
        %v799 = vpack.c.b16 %v731, %v727
        %v800 = vpack.c.b16 %v732, %v728
        %v801 = vpack.c.b16 %v733, %v729
        %v802 = vpack.c.b16 %v734, %v730
        %v803 = vpack.c.b16 %v739, %v735
        %v804 = vpack.c.b16 %v740, %v736
        %v805 = vpack.c.b16 %v741, %v737
        %v806 = vpack.c.b16 %v742, %v738
        %871 = vmatpush.bf16.msra.mxu0 %v771
        %872 = vmatpush.bf16.msra.mxu0 %v767
        %873 = vmatpush.bf16.msra.mxu0 %v763
        %874 = vmatpush.bf16.msra.mxu0 %v759
        %875 = vmatpush.bf16.msra.mxu0 %v755
        %876 = vmatpush.bf16.msra.mxu0 %v751
        %877 = vmatpush.bf16.msra.mxu0 %v747
        %878 = vmatpush.bf16.msra.mxu0 %v743
        %879 = vmatmul.bf16.gmra.mxu0 %v445
        %v880 = vpop.f32.mrf.mxu0
        %v881 = vadd.f32 %v543, %v880
        %v882 = vpop.f32.mrf.mxu0
        %v883 = vadd.f32 %v543, %v882
        %884 = vmatmul.bf16.gmra.mxu0 %v447
        %v885 = vpop.f32.mrf.mxu0
        %v886 = vadd.f32 %v543, %v885
        %v887 = vpop.f32.mrf.mxu0
        %v888 = vadd.f32 %v543, %v887
        %889 = vmatmul.bf16.gmra.mxu0 %v449
        %v890 = vpop.f32.mrf.mxu0
        %v891 = vadd.f32 %v543, %v890
        %v892 = vpop.f32.mrf.mxu0
        %v893 = vadd.f32 %v543, %v892
        %894 = vmatmul.bf16.gmra.mxu0 %v451
        %v895 = vpop.f32.mrf.mxu0
        %v896 = vadd.f32 %v543, %v895
        %v897 = vpop.f32.mrf.mxu0
        %v898 = vadd.f32 %v543, %v897
        %899 = vmatmul.bf16.gmra.mxu0 %v453
        %v900 = vpop.f32.mrf.mxu0
        %v901 = vadd.f32 %v543, %v900
        %v902 = vpop.f32.mrf.mxu0
        %v903 = vadd.f32 %v543, %v902
        %904 = vmatmul.bf16.gmra.mxu0 %v455
        %v905 = vpop.f32.mrf.mxu0
        %v906 = vadd.f32 %v543, %v905
        %v907 = vpop.f32.mrf.mxu0
        %v908 = vadd.f32 %v543, %v907
        %909 = vmatmul.bf16.gmra.mxu0 %v457
        %v910 = vpop.f32.mrf.mxu0
        %v911 = vadd.f32 %v543, %v910
        %v912 = vpop.f32.mrf.mxu0
        %v913 = vadd.f32 %v543, %v912
        %914 = vmatmul.bf16.gmra.mxu0 %v459
        %v915 = vpop.f32.mrf.mxu0
        %v916 = vadd.f32 %v543, %v915
        %v917 = vpop.f32.mrf.mxu0
        %v918 = vadd.f32 %v543, %v917
        %919 = vmatmul.bf16.gmra.mxu0 %v461
        %v920 = vpop.f32.mrf.mxu0
        %v921 = vadd.f32 %v543, %v920
        %v922 = vpop.f32.mrf.mxu0
        %v923 = vadd.f32 %v543, %v922
        %924 = vmatmul.bf16.gmra.mxu0 %v463
        %v925 = vpop.f32.mrf.mxu0
        %v926 = vadd.f32 %v543, %v925
        %v927 = vpop.f32.mrf.mxu0
        %v928 = vadd.f32 %v543, %v927
        %929 = vmatmul.bf16.gmra.mxu0 %v465
        %v930 = vpop.f32.mrf.mxu0
        %v931 = vadd.f32 %v543, %v930
        %v932 = vpop.f32.mrf.mxu0
        %v933 = vadd.f32 %v543, %v932
        %934 = vmatmul.bf16.gmra.mxu0 %v467
        %v935 = vpop.f32.mrf.mxu0
        %v936 = vadd.f32 %v543, %v935
        %v937 = vpop.f32.mrf.mxu0
        %v938 = vadd.f32 %v543, %v937
        %939 = vmatmul.bf16.gmra.mxu0 %v469
        %v940 = vpop.f32.mrf.mxu0
        %v941 = vadd.f32 %v543, %v940
        %v942 = vpop.f32.mrf.mxu0
        %v943 = vadd.f32 %v543, %v942
        %944 = vmatmul.bf16.gmra.mxu0 %v471
        %v945 = vpop.f32.mrf.mxu0
        %v946 = vadd.f32 %v543, %v945
        %v947 = vpop.f32.mrf.mxu0
        %v948 = vadd.f32 %v543, %v947
        %949 = vmatmul.bf16.gmra.mxu0 %v473
        %v950 = vpop.f32.mrf.mxu0
        %v951 = vadd.f32 %v543, %v950
        %v952 = vpop.f32.mrf.mxu0
        %v953 = vadd.f32 %v543, %v952
        %954 = vmatmul.bf16.gmra.mxu0 %v475
        %v955 = vpop.f32.mrf.mxu0
        %v956 = vadd.f32 %v543, %v955
        %v957 = vpop.f32.mrf.mxu0
        %v958 = vadd.f32 %v543, %v957
        %959 = vdwg.mxu0
        %960 = vmatpush.bf16.msra.mxu0 %v803
        %961 = vmatpush.bf16.msra.mxu0 %v799
        %962 = vmatpush.bf16.msra.mxu0 %v795
        %963 = vmatpush.bf16.msra.mxu0 %v791
        %964 = vmatpush.bf16.msra.mxu0 %v787
        %965 = vmatpush.bf16.msra.mxu0 %v783
        %966 = vmatpush.bf16.msra.mxu0 %v779
        %967 = vmatpush.bf16.msra.mxu0 %v775
        %968 = vmatmul.bf16.gmra.mxu0 %v446
        %v969 = vpop.f32.mrf.mxu0
        %v970 = vadd.f32 %v881, %v969
        %v971 = vpop.f32.mrf.mxu0
        %v972 = vadd.f32 %v883, %v971
        %973 = vmatmul.bf16.gmra.mxu0 %v448
        %v974 = vpop.f32.mrf.mxu0
        %v975 = vadd.f32 %v886, %v974
        %v976 = vpop.f32.mrf.mxu0
        %v977 = vadd.f32 %v888, %v976
        %978 = vmatmul.bf16.gmra.mxu0 %v450
        %v979 = vpop.f32.mrf.mxu0
        %v980 = vadd.f32 %v891, %v979
        %v981 = vpop.f32.mrf.mxu0
        %v982 = vadd.f32 %v893, %v981
        %983 = vmatmul.bf16.gmra.mxu0 %v452
        %v984 = vpop.f32.mrf.mxu0
        %v985 = vadd.f32 %v896, %v984
        %v986 = vpop.f32.mrf.mxu0
        %v987 = vadd.f32 %v898, %v986
        %988 = vmatmul.bf16.gmra.mxu0 %v454
        %v989 = vpop.f32.mrf.mxu0
        %v990 = vadd.f32 %v901, %v989
        %v991 = vpop.f32.mrf.mxu0
        %v992 = vadd.f32 %v903, %v991
        %993 = vmatmul.bf16.gmra.mxu0 %v456
        %v994 = vpop.f32.mrf.mxu0
        %v995 = vadd.f32 %v906, %v994
        %v996 = vpop.f32.mrf.mxu0
        %v997 = vadd.f32 %v908, %v996
        %998 = vmatmul.bf16.gmra.mxu0 %v458
        %v999 = vpop.f32.mrf.mxu0
        %v1000 = vadd.f32 %v911, %v999
        %v1001 = vpop.f32.mrf.mxu0
        %v1002 = vadd.f32 %v913, %v1001
        %1003 = vmatmul.bf16.gmra.mxu0 %v460
        %v1004 = vpop.f32.mrf.mxu0
        %v1005 = vadd.f32 %v916, %v1004
        %v1006 = vpop.f32.mrf.mxu0
        %v1007 = vadd.f32 %v918, %v1006
        %1008 = vmatmul.bf16.gmra.mxu0 %v462
        %v1009 = vpop.f32.mrf.mxu0
        %v1010 = vadd.f32 %v921, %v1009
        %v1011 = vpop.f32.mrf.mxu0
        %v1012 = vadd.f32 %v923, %v1011
        %1013 = vmatmul.bf16.gmra.mxu0 %v464
        %v1014 = vpop.f32.mrf.mxu0
        %v1015 = vadd.f32 %v926, %v1014
        %v1016 = vpop.f32.mrf.mxu0
        %v1017 = vadd.f32 %v928, %v1016
        %1018 = vmatmul.bf16.gmra.mxu0 %v466
        %v1019 = vpop.f32.mrf.mxu0
        %v1020 = vadd.f32 %v931, %v1019
        %v1021 = vpop.f32.mrf.mxu0
        %v1022 = vadd.f32 %v933, %v1021
        %1023 = vmatmul.bf16.gmra.mxu0 %v468
        %v1024 = vpop.f32.mrf.mxu0
        %v1025 = vadd.f32 %v936, %v1024
        %v1026 = vpop.f32.mrf.mxu0
        %v1027 = vadd.f32 %v938, %v1026
        %1028 = vmatmul.bf16.gmra.mxu0 %v470
        %v1029 = vpop.f32.mrf.mxu0
        %v1030 = vadd.f32 %v941, %v1029
        %v1031 = vpop.f32.mrf.mxu0
        %v1032 = vadd.f32 %v943, %v1031
        %1033 = vmatmul.bf16.gmra.mxu0 %v472
        %v1034 = vpop.f32.mrf.mxu0
        %v1035 = vadd.f32 %v946, %v1034
        %v1036 = vpop.f32.mrf.mxu0
        %v1037 = vadd.f32 %v948, %v1036
        %1038 = vmatmul.bf16.gmra.mxu0 %v474
        %v1039 = vpop.f32.mrf.mxu0
        %v1040 = vadd.f32 %v951, %v1039
        %v1041 = vpop.f32.mrf.mxu0
        %v1042 = vadd.f32 %v953, %v1041
        %1043 = vmatmul.bf16.gmra.mxu0 %v476
        %v1044 = vpop.f32.mrf.mxu0
        %v1045 = vadd.f32 %v956, %v1044
        %v1046 = vpop.f32.mrf.mxu0
        %v1047 = vadd.f32 %v958, %v1046
        %1048 = vdwg.mxu0
        %1049 = vmatpush.bf16.msra.mxu0 %v772
        %1050 = vmatpush.bf16.msra.mxu0 %v768
        %1051 = vmatpush.bf16.msra.mxu0 %v764
        %1052 = vmatpush.bf16.msra.mxu0 %v760
        %1053 = vmatpush.bf16.msra.mxu0 %v756
        %1054 = vmatpush.bf16.msra.mxu0 %v752
        %1055 = vmatpush.bf16.msra.mxu0 %v748
        %1056 = vmatpush.bf16.msra.mxu0 %v744
        %1057 = vmatmul.bf16.gmra.mxu0 %v445
        %v1058 = vpop.f32.mrf.mxu0
        %v1059 = vadd.f32 %v544, %v1058
        %v1060 = vpop.f32.mrf.mxu0
        %v1061 = vadd.f32 %v544, %v1060
        %1062 = vmatmul.bf16.gmra.mxu0 %v447
        %v1063 = vpop.f32.mrf.mxu0
        %v1064 = vadd.f32 %v544, %v1063
        %v1065 = vpop.f32.mrf.mxu0
        %v1066 = vadd.f32 %v544, %v1065
        %1067 = vmatmul.bf16.gmra.mxu0 %v449
        %v1068 = vpop.f32.mrf.mxu0
        %v1069 = vadd.f32 %v544, %v1068
        %v1070 = vpop.f32.mrf.mxu0
        %v1071 = vadd.f32 %v544, %v1070
        %1072 = vmatmul.bf16.gmra.mxu0 %v451
        %v1073 = vpop.f32.mrf.mxu0
        %v1074 = vadd.f32 %v544, %v1073
        %v1075 = vpop.f32.mrf.mxu0
        %v1076 = vadd.f32 %v544, %v1075
        %1077 = vmatmul.bf16.gmra.mxu0 %v453
        %v1078 = vpop.f32.mrf.mxu0
        %v1079 = vadd.f32 %v544, %v1078
        %v1080 = vpop.f32.mrf.mxu0
        %v1081 = vadd.f32 %v544, %v1080
        %1082 = vmatmul.bf16.gmra.mxu0 %v455
        %v1083 = vpop.f32.mrf.mxu0
        %v1084 = vadd.f32 %v544, %v1083
        %v1085 = vpop.f32.mrf.mxu0
        %v1086 = vadd.f32 %v544, %v1085
        %1087 = vmatmul.bf16.gmra.mxu0 %v457
        %v1088 = vpop.f32.mrf.mxu0
        %v1089 = vadd.f32 %v544, %v1088
        %v1090 = vpop.f32.mrf.mxu0
        %v1091 = vadd.f32 %v544, %v1090
        %1092 = vmatmul.bf16.gmra.mxu0 %v459
        %v1093 = vpop.f32.mrf.mxu0
        %v1094 = vadd.f32 %v544, %v1093
        %v1095 = vpop.f32.mrf.mxu0
        %v1096 = vadd.f32 %v544, %v1095
        %1097 = vmatmul.bf16.gmra.mxu0 %v461
        %v1098 = vpop.f32.mrf.mxu0
        %v1099 = vadd.f32 %v544, %v1098
        %v1100 = vpop.f32.mrf.mxu0
        %v1101 = vadd.f32 %v544, %v1100
        %1102 = vmatmul.bf16.gmra.mxu0 %v463
        %v1103 = vpop.f32.mrf.mxu0
        %v1104 = vadd.f32 %v544, %v1103
        %v1105 = vpop.f32.mrf.mxu0
        %v1106 = vadd.f32 %v544, %v1105
        %1107 = vmatmul.bf16.gmra.mxu0 %v465
        %v1108 = vpop.f32.mrf.mxu0
        %v1109 = vadd.f32 %v544, %v1108
        %v1110 = vpop.f32.mrf.mxu0
        %v1111 = vadd.f32 %v544, %v1110
        %1112 = vmatmul.bf16.gmra.mxu0 %v467
        %v1113 = vpop.f32.mrf.mxu0
        %v1114 = vadd.f32 %v544, %v1113
        %v1115 = vpop.f32.mrf.mxu0
        %v1116 = vadd.f32 %v544, %v1115
        %1117 = vmatmul.bf16.gmra.mxu0 %v469
        %v1118 = vpop.f32.mrf.mxu0
        %v1119 = vadd.f32 %v544, %v1118
        %v1120 = vpop.f32.mrf.mxu0
        %v1121 = vadd.f32 %v544, %v1120
        %1122 = vmatmul.bf16.gmra.mxu0 %v471
        %v1123 = vpop.f32.mrf.mxu0
        %v1124 = vadd.f32 %v544, %v1123
        %v1125 = vpop.f32.mrf.mxu0
        %v1126 = vadd.f32 %v544, %v1125
        %1127 = vmatmul.bf16.gmra.mxu0 %v473
        %v1128 = vpop.f32.mrf.mxu0
        %v1129 = vadd.f32 %v544, %v1128
        %v1130 = vpop.f32.mrf.mxu0
        %v1131 = vadd.f32 %v544, %v1130
        %1132 = vmatmul.bf16.gmra.mxu0 %v475
        %v1133 = vpop.f32.mrf.mxu0
        %v1134 = vadd.f32 %v544, %v1133
        %v1135 = vpop.f32.mrf.mxu0
        %v1136 = vadd.f32 %v544, %v1135
        %1137 = vdwg.mxu0
        %1138 = vmatpush.bf16.msra.mxu0 %v804
        %1139 = vmatpush.bf16.msra.mxu0 %v800
        %1140 = vmatpush.bf16.msra.mxu0 %v796
        %1141 = vmatpush.bf16.msra.mxu0 %v792
        %1142 = vmatpush.bf16.msra.mxu0 %v788
        %1143 = vmatpush.bf16.msra.mxu0 %v784
        %1144 = vmatpush.bf16.msra.mxu0 %v780
        %1145 = vmatpush.bf16.msra.mxu0 %v776
        %1146 = vmatmul.bf16.gmra.mxu0 %v446
        %v1147 = vpop.f32.mrf.mxu0
        %v1148 = vadd.f32 %v1059, %v1147
        %v1149 = vpop.f32.mrf.mxu0
        %v1150 = vadd.f32 %v1061, %v1149
        %1151 = vmatmul.bf16.gmra.mxu0 %v448
        %v1152 = vpop.f32.mrf.mxu0
        %v1153 = vadd.f32 %v1064, %v1152
        %v1154 = vpop.f32.mrf.mxu0
        %v1155 = vadd.f32 %v1066, %v1154
        %1156 = vmatmul.bf16.gmra.mxu0 %v450
        %v1157 = vpop.f32.mrf.mxu0
        %v1158 = vadd.f32 %v1069, %v1157
        %v1159 = vpop.f32.mrf.mxu0
        %v1160 = vadd.f32 %v1071, %v1159
        %1161 = vmatmul.bf16.gmra.mxu0 %v452
        %v1162 = vpop.f32.mrf.mxu0
        %v1163 = vadd.f32 %v1074, %v1162
        %v1164 = vpop.f32.mrf.mxu0
        %v1165 = vadd.f32 %v1076, %v1164
        %1166 = vmatmul.bf16.gmra.mxu0 %v454
        %v1167 = vpop.f32.mrf.mxu0
        %v1168 = vadd.f32 %v1079, %v1167
        %v1169 = vpop.f32.mrf.mxu0
        %v1170 = vadd.f32 %v1081, %v1169
        %1171 = vmatmul.bf16.gmra.mxu0 %v456
        %v1172 = vpop.f32.mrf.mxu0
        %v1173 = vadd.f32 %v1084, %v1172
        %v1174 = vpop.f32.mrf.mxu0
        %v1175 = vadd.f32 %v1086, %v1174
        %1176 = vmatmul.bf16.gmra.mxu0 %v458
        %v1177 = vpop.f32.mrf.mxu0
        %v1178 = vadd.f32 %v1089, %v1177
        %v1179 = vpop.f32.mrf.mxu0
        %v1180 = vadd.f32 %v1091, %v1179
        %1181 = vmatmul.bf16.gmra.mxu0 %v460
        %v1182 = vpop.f32.mrf.mxu0
        %v1183 = vadd.f32 %v1094, %v1182
        %v1184 = vpop.f32.mrf.mxu0
        %v1185 = vadd.f32 %v1096, %v1184
        %1186 = vmatmul.bf16.gmra.mxu0 %v462
        %v1187 = vpop.f32.mrf.mxu0
        %v1188 = vadd.f32 %v1099, %v1187
        %v1189 = vpop.f32.mrf.mxu0
        %v1190 = vadd.f32 %v1101, %v1189
        %1191 = vmatmul.bf16.gmra.mxu0 %v464
        %v1192 = vpop.f32.mrf.mxu0
        %v1193 = vadd.f32 %v1104, %v1192
        %v1194 = vpop.f32.mrf.mxu0
        %v1195 = vadd.f32 %v1106, %v1194
        %1196 = vmatmul.bf16.gmra.mxu0 %v466
        %v1197 = vpop.f32.mrf.mxu0
        %v1198 = vadd.f32 %v1109, %v1197
        %v1199 = vpop.f32.mrf.mxu0
        %v1200 = vadd.f32 %v1111, %v1199
        %1201 = vmatmul.bf16.gmra.mxu0 %v468
        %v1202 = vpop.f32.mrf.mxu0
        %v1203 = vadd.f32 %v1114, %v1202
        %v1204 = vpop.f32.mrf.mxu0
        %v1205 = vadd.f32 %v1116, %v1204
        %1206 = vmatmul.bf16.gmra.mxu0 %v470
        %v1207 = vpop.f32.mrf.mxu0
        %v1208 = vadd.f32 %v1119, %v1207
        %v1209 = vpop.f32.mrf.mxu0
        %v1210 = vadd.f32 %v1121, %v1209
        %1211 = vmatmul.bf16.gmra.mxu0 %v472
        %v1212 = vpop.f32.mrf.mxu0
        %v1213 = vadd.f32 %v1124, %v1212
        %v1214 = vpop.f32.mrf.mxu0
        %v1215 = vadd.f32 %v1126, %v1214
        %1216 = vmatmul.bf16.gmra.mxu0 %v474
        %v1217 = vpop.f32.mrf.mxu0
        %v1218 = vadd.f32 %v1129, %v1217
        %v1219 = vpop.f32.mrf.mxu0
        %v1220 = vadd.f32 %v1131, %v1219
        %1221 = vmatmul.bf16.gmra.mxu0 %v476
        %v1222 = vpop.f32.mrf.mxu0
        %v1223 = vadd.f32 %v1134, %v1222
        %v1224 = vpop.f32.mrf.mxu0
        %v1225 = vadd.f32 %v1136, %v1224
        %1226 = vdwg.mxu0
        %1227 = vmatpush.bf16.msra.mxu0 %v773
        %1228 = vmatpush.bf16.msra.mxu0 %v769
        %1229 = vmatpush.bf16.msra.mxu0 %v765
        %1230 = vmatpush.bf16.msra.mxu0 %v761
        %1231 = vmatpush.bf16.msra.mxu0 %v757
        %1232 = vmatpush.bf16.msra.mxu0 %v753
        %1233 = vmatpush.bf16.msra.mxu0 %v749
        %1234 = vmatpush.bf16.msra.mxu0 %v745
        %1235 = vmatmul.bf16.gmra.mxu0 %v445
        %v1236 = vpop.f32.mrf.mxu0
        %v1237 = vadd.f32 %v545, %v1236
        %v1238 = vpop.f32.mrf.mxu0
        %v1239 = vadd.f32 %v545, %v1238
        %1240 = vmatmul.bf16.gmra.mxu0 %v447
        %v1241 = vpop.f32.mrf.mxu0
        %v1242 = vadd.f32 %v545, %v1241
        %v1243 = vpop.f32.mrf.mxu0
        %v1244 = vadd.f32 %v545, %v1243
        %1245 = vmatmul.bf16.gmra.mxu0 %v449
        %v1246 = vpop.f32.mrf.mxu0
        %v1247 = vadd.f32 %v545, %v1246
        %v1248 = vpop.f32.mrf.mxu0
        %v1249 = vadd.f32 %v545, %v1248
        %1250 = vmatmul.bf16.gmra.mxu0 %v451
        %v1251 = vpop.f32.mrf.mxu0
        %v1252 = vadd.f32 %v545, %v1251
        %v1253 = vpop.f32.mrf.mxu0
        %v1254 = vadd.f32 %v545, %v1253
        %1255 = vmatmul.bf16.gmra.mxu0 %v453
        %v1256 = vpop.f32.mrf.mxu0
        %v1257 = vadd.f32 %v545, %v1256
        %v1258 = vpop.f32.mrf.mxu0
        %v1259 = vadd.f32 %v545, %v1258
        %1260 = vmatmul.bf16.gmra.mxu0 %v455
        %v1261 = vpop.f32.mrf.mxu0
        %v1262 = vadd.f32 %v545, %v1261
        %v1263 = vpop.f32.mrf.mxu0
        %v1264 = vadd.f32 %v545, %v1263
        %1265 = vmatmul.bf16.gmra.mxu0 %v457
        %v1266 = vpop.f32.mrf.mxu0
        %v1267 = vadd.f32 %v545, %v1266
        %v1268 = vpop.f32.mrf.mxu0
        %v1269 = vadd.f32 %v545, %v1268
        %1270 = vmatmul.bf16.gmra.mxu0 %v459
        %v1271 = vpop.f32.mrf.mxu0
        %v1272 = vadd.f32 %v545, %v1271
        %v1273 = vpop.f32.mrf.mxu0
        %v1274 = vadd.f32 %v545, %v1273
        %1275 = vmatmul.bf16.gmra.mxu0 %v461
        %v1276 = vpop.f32.mrf.mxu0
        %v1277 = vadd.f32 %v545, %v1276
        %v1278 = vpop.f32.mrf.mxu0
        %v1279 = vadd.f32 %v545, %v1278
        %1280 = vmatmul.bf16.gmra.mxu0 %v463
        %v1281 = vpop.f32.mrf.mxu0
        %v1282 = vadd.f32 %v545, %v1281
        %v1283 = vpop.f32.mrf.mxu0
        %v1284 = vadd.f32 %v545, %v1283
        %1285 = vmatmul.bf16.gmra.mxu0 %v465
        %v1286 = vpop.f32.mrf.mxu0
        %v1287 = vadd.f32 %v545, %v1286
        %v1288 = vpop.f32.mrf.mxu0
        %v1289 = vadd.f32 %v545, %v1288
        %1290 = vmatmul.bf16.gmra.mxu0 %v467
        %v1291 = vpop.f32.mrf.mxu0
        %v1292 = vadd.f32 %v545, %v1291
        %v1293 = vpop.f32.mrf.mxu0
        %v1294 = vadd.f32 %v545, %v1293
        %1295 = vmatmul.bf16.gmra.mxu0 %v469
        %v1296 = vpop.f32.mrf.mxu0
        %v1297 = vadd.f32 %v545, %v1296
        %v1298 = vpop.f32.mrf.mxu0
        %v1299 = vadd.f32 %v545, %v1298
        %1300 = vmatmul.bf16.gmra.mxu0 %v471
        %v1301 = vpop.f32.mrf.mxu0
        %v1302 = vadd.f32 %v545, %v1301
        %v1303 = vpop.f32.mrf.mxu0
        %v1304 = vadd.f32 %v545, %v1303
        %1305 = vmatmul.bf16.gmra.mxu0 %v473
        %v1306 = vpop.f32.mrf.mxu0
        %v1307 = vadd.f32 %v545, %v1306
        %v1308 = vpop.f32.mrf.mxu0
        %v1309 = vadd.f32 %v545, %v1308
        %1310 = vmatmul.bf16.gmra.mxu0 %v475
        %v1311 = vpop.f32.mrf.mxu0
        %v1312 = vadd.f32 %v545, %v1311
        %v1313 = vpop.f32.mrf.mxu0
        %v1314 = vadd.f32 %v545, %v1313
        %1315 = vdwg.mxu0
        %1316 = vmatpush.bf16.msra.mxu0 %v805
        %1317 = vmatpush.bf16.msra.mxu0 %v801
        %1318 = vmatpush.bf16.msra.mxu0 %v797
        %1319 = vmatpush.bf16.msra.mxu0 %v793
        %1320 = vmatpush.bf16.msra.mxu0 %v789
        %1321 = vmatpush.bf16.msra.mxu0 %v785
        %1322 = vmatpush.bf16.msra.mxu0 %v781
        %1323 = vmatpush.bf16.msra.mxu0 %v777
        %1324 = vmatmul.bf16.gmra.mxu0 %v446
        %v1325 = vpop.f32.mrf.mxu0
        %v1326 = vadd.f32 %v1237, %v1325
        %v1327 = vpop.f32.mrf.mxu0
        %v1328 = vadd.f32 %v1239, %v1327
        %1329 = vmatmul.bf16.gmra.mxu0 %v448
        %v1330 = vpop.f32.mrf.mxu0
        %v1331 = vadd.f32 %v1242, %v1330
        %v1332 = vpop.f32.mrf.mxu0
        %v1333 = vadd.f32 %v1244, %v1332
        %1334 = vmatmul.bf16.gmra.mxu0 %v450
        %v1335 = vpop.f32.mrf.mxu0
        %v1336 = vadd.f32 %v1247, %v1335
        %v1337 = vpop.f32.mrf.mxu0
        %v1338 = vadd.f32 %v1249, %v1337
        %1339 = vmatmul.bf16.gmra.mxu0 %v452
        %v1340 = vpop.f32.mrf.mxu0
        %v1341 = vadd.f32 %v1252, %v1340
        %v1342 = vpop.f32.mrf.mxu0
        %v1343 = vadd.f32 %v1254, %v1342
        %1344 = vmatmul.bf16.gmra.mxu0 %v454
        %v1345 = vpop.f32.mrf.mxu0
        %v1346 = vadd.f32 %v1257, %v1345
        %v1347 = vpop.f32.mrf.mxu0
        %v1348 = vadd.f32 %v1259, %v1347
        %1349 = vmatmul.bf16.gmra.mxu0 %v456
        %v1350 = vpop.f32.mrf.mxu0
        %v1351 = vadd.f32 %v1262, %v1350
        %v1352 = vpop.f32.mrf.mxu0
        %v1353 = vadd.f32 %v1264, %v1352
        %1354 = vmatmul.bf16.gmra.mxu0 %v458
        %v1355 = vpop.f32.mrf.mxu0
        %v1356 = vadd.f32 %v1267, %v1355
        %v1357 = vpop.f32.mrf.mxu0
        %v1358 = vadd.f32 %v1269, %v1357
        %1359 = vmatmul.bf16.gmra.mxu0 %v460
        %v1360 = vpop.f32.mrf.mxu0
        %v1361 = vadd.f32 %v1272, %v1360
        %v1362 = vpop.f32.mrf.mxu0
        %v1363 = vadd.f32 %v1274, %v1362
        %1364 = vmatmul.bf16.gmra.mxu0 %v462
        %v1365 = vpop.f32.mrf.mxu0
        %v1366 = vadd.f32 %v1277, %v1365
        %v1367 = vpop.f32.mrf.mxu0
        %v1368 = vadd.f32 %v1279, %v1367
        %1369 = vmatmul.bf16.gmra.mxu0 %v464
        %v1370 = vpop.f32.mrf.mxu0
        %v1371 = vadd.f32 %v1282, %v1370
        %v1372 = vpop.f32.mrf.mxu0
        %v1373 = vadd.f32 %v1284, %v1372
        %1374 = vmatmul.bf16.gmra.mxu0 %v466
        %v1375 = vpop.f32.mrf.mxu0
        %v1376 = vadd.f32 %v1287, %v1375
        %v1377 = vpop.f32.mrf.mxu0
        %v1378 = vadd.f32 %v1289, %v1377
        %1379 = vmatmul.bf16.gmra.mxu0 %v468
        %v1380 = vpop.f32.mrf.mxu0
        %v1381 = vadd.f32 %v1292, %v1380
        %v1382 = vpop.f32.mrf.mxu0
        %v1383 = vadd.f32 %v1294, %v1382
        %1384 = vmatmul.bf16.gmra.mxu0 %v470
        %v1385 = vpop.f32.mrf.mxu0
        %v1386 = vadd.f32 %v1297, %v1385
        %v1387 = vpop.f32.mrf.mxu0
        %v1388 = vadd.f32 %v1299, %v1387
        %1389 = vmatmul.bf16.gmra.mxu0 %v472
        %v1390 = vpop.f32.mrf.mxu0
        %v1391 = vadd.f32 %v1302, %v1390
        %v1392 = vpop.f32.mrf.mxu0
        %v1393 = vadd.f32 %v1304, %v1392
        %1394 = vmatmul.bf16.gmra.mxu0 %v474
        %v1395 = vpop.f32.mrf.mxu0
        %v1396 = vadd.f32 %v1307, %v1395
        %v1397 = vpop.f32.mrf.mxu0
        %v1398 = vadd.f32 %v1309, %v1397
        %1399 = vmatmul.bf16.gmra.mxu0 %v476
        %v1400 = vpop.f32.mrf.mxu0
        %v1401 = vadd.f32 %v1312, %v1400
        %v1402 = vpop.f32.mrf.mxu0
        %v1403 = vadd.f32 %v1314, %v1402
        %1404 = vdwg.mxu0
        %1405 = vmatpush.bf16.msra.mxu0 %v774
        %1406 = vmatpush.bf16.msra.mxu0 %v770
        %1407 = vmatpush.bf16.msra.mxu0 %v766
        %1408 = vmatpush.bf16.msra.mxu0 %v762
        %1409 = vmatpush.bf16.msra.mxu0 %v758
        %1410 = vmatpush.bf16.msra.mxu0 %v754
        %1411 = vmatpush.bf16.msra.mxu0 %v750
        %1412 = vmatpush.bf16.msra.mxu0 %v746
        %1413 = vmatmul.bf16.gmra.mxu0 %v445
        %v1414 = vpop.f32.mrf.mxu0
        %v1415 = vadd.f32 %v546, %v1414
        %v1416 = vpop.f32.mrf.mxu0
        %v1417 = vadd.f32 %v546, %v1416
        %1418 = vmatmul.bf16.gmra.mxu0 %v447
        %v1419 = vpop.f32.mrf.mxu0
        %v1420 = vadd.f32 %v546, %v1419
        %v1421 = vpop.f32.mrf.mxu0
        %v1422 = vadd.f32 %v546, %v1421
        %1423 = vmatmul.bf16.gmra.mxu0 %v449
        %v1424 = vpop.f32.mrf.mxu0
        %v1425 = vadd.f32 %v546, %v1424
        %v1426 = vpop.f32.mrf.mxu0
        %v1427 = vadd.f32 %v546, %v1426
        %1428 = vmatmul.bf16.gmra.mxu0 %v451
        %v1429 = vpop.f32.mrf.mxu0
        %v1430 = vadd.f32 %v546, %v1429
        %v1431 = vpop.f32.mrf.mxu0
        %v1432 = vadd.f32 %v546, %v1431
        %1433 = vmatmul.bf16.gmra.mxu0 %v453
        %v1434 = vpop.f32.mrf.mxu0
        %v1435 = vadd.f32 %v546, %v1434
        %v1436 = vpop.f32.mrf.mxu0
        %v1437 = vadd.f32 %v546, %v1436
        %1438 = vmatmul.bf16.gmra.mxu0 %v455
        %v1439 = vpop.f32.mrf.mxu0
        %v1440 = vadd.f32 %v546, %v1439
        %v1441 = vpop.f32.mrf.mxu0
        %v1442 = vadd.f32 %v546, %v1441
        %1443 = vmatmul.bf16.gmra.mxu0 %v457
        %v1444 = vpop.f32.mrf.mxu0
        %v1445 = vadd.f32 %v546, %v1444
        %v1446 = vpop.f32.mrf.mxu0
        %v1447 = vadd.f32 %v546, %v1446
        %1448 = vmatmul.bf16.gmra.mxu0 %v459
        %v1449 = vpop.f32.mrf.mxu0
        %v1450 = vadd.f32 %v546, %v1449
        %v1451 = vpop.f32.mrf.mxu0
        %v1452 = vadd.f32 %v546, %v1451
        %1453 = vmatmul.bf16.gmra.mxu0 %v461
        %v1454 = vpop.f32.mrf.mxu0
        %v1455 = vadd.f32 %v546, %v1454
        %v1456 = vpop.f32.mrf.mxu0
        %v1457 = vadd.f32 %v546, %v1456
        %1458 = vmatmul.bf16.gmra.mxu0 %v463
        %v1459 = vpop.f32.mrf.mxu0
        %v1460 = vadd.f32 %v546, %v1459
        %v1461 = vpop.f32.mrf.mxu0
        %v1462 = vadd.f32 %v546, %v1461
        %1463 = vmatmul.bf16.gmra.mxu0 %v465
        %v1464 = vpop.f32.mrf.mxu0
        %v1465 = vadd.f32 %v546, %v1464
        %v1466 = vpop.f32.mrf.mxu0
        %v1467 = vadd.f32 %v546, %v1466
        %1468 = vmatmul.bf16.gmra.mxu0 %v467
        %v1469 = vpop.f32.mrf.mxu0
        %v1470 = vadd.f32 %v546, %v1469
        %v1471 = vpop.f32.mrf.mxu0
        %v1472 = vadd.f32 %v546, %v1471
        %1473 = vmatmul.bf16.gmra.mxu0 %v469
        %v1474 = vpop.f32.mrf.mxu0
        %v1475 = vadd.f32 %v546, %v1474
        %v1476 = vpop.f32.mrf.mxu0
        %v1477 = vadd.f32 %v546, %v1476
        %1478 = vmatmul.bf16.gmra.mxu0 %v471
        %v1479 = vpop.f32.mrf.mxu0
        %v1480 = vadd.f32 %v546, %v1479
        %v1481 = vpop.f32.mrf.mxu0
        %v1482 = vadd.f32 %v546, %v1481
        %1483 = vmatmul.bf16.gmra.mxu0 %v473
        %v1484 = vpop.f32.mrf.mxu0
        %v1485 = vadd.f32 %v546, %v1484
        %v1486 = vpop.f32.mrf.mxu0
        %v1487 = vadd.f32 %v546, %v1486
        %1488 = vmatmul.bf16.gmra.mxu0 %v475
        %v1489 = vpop.f32.mrf.mxu0
        %v1490 = vadd.f32 %v546, %v1489
        %v1491 = vpop.f32.mrf.mxu0
        %v1492 = vadd.f32 %v546, %v1491
        %1493 = vdwg.mxu0
        %1494 = vmatpush.bf16.msra.mxu0 %v806
        %1495 = vmatpush.bf16.msra.mxu0 %v802
        %1496 = vmatpush.bf16.msra.mxu0 %v798
        %1497 = vmatpush.bf16.msra.mxu0 %v794
        %1498 = vmatpush.bf16.msra.mxu0 %v790
        %1499 = vmatpush.bf16.msra.mxu0 %v786
        %1500 = vmatpush.bf16.msra.mxu0 %v782
        %1501 = vmatpush.bf16.msra.mxu0 %v778
        %1502 = vmatmul.bf16.gmra.mxu0 %v446
        %v1503 = vpop.f32.mrf.mxu0
        %v1504 = vadd.f32 %v1415, %v1503
        %v1505 = vpop.f32.mrf.mxu0
        %v1506 = vadd.f32 %v1417, %v1505
        %1507 = vmatmul.bf16.gmra.mxu0 %v448
        %v1508 = vpop.f32.mrf.mxu0
        %v1509 = vadd.f32 %v1420, %v1508
        %v1510 = vpop.f32.mrf.mxu0
        %v1511 = vadd.f32 %v1422, %v1510
        %1512 = vmatmul.bf16.gmra.mxu0 %v450
        %v1513 = vpop.f32.mrf.mxu0
        %v1514 = vadd.f32 %v1425, %v1513
        %v1515 = vpop.f32.mrf.mxu0
        %v1516 = vadd.f32 %v1427, %v1515
        %1517 = vmatmul.bf16.gmra.mxu0 %v452
        %v1518 = vpop.f32.mrf.mxu0
        %v1519 = vadd.f32 %v1430, %v1518
        %v1520 = vpop.f32.mrf.mxu0
        %v1521 = vadd.f32 %v1432, %v1520
        %1522 = vmatmul.bf16.gmra.mxu0 %v454
        %v1523 = vpop.f32.mrf.mxu0
        %v1524 = vadd.f32 %v1435, %v1523
        %v1525 = vpop.f32.mrf.mxu0
        %v1526 = vadd.f32 %v1437, %v1525
        %1527 = vmatmul.bf16.gmra.mxu0 %v456
        %v1528 = vpop.f32.mrf.mxu0
        %v1529 = vadd.f32 %v1440, %v1528
        %v1530 = vpop.f32.mrf.mxu0
        %v1531 = vadd.f32 %v1442, %v1530
        %1532 = vmatmul.bf16.gmra.mxu0 %v458
        %v1533 = vpop.f32.mrf.mxu0
        %v1534 = vadd.f32 %v1445, %v1533
        %v1535 = vpop.f32.mrf.mxu0
        %v1536 = vadd.f32 %v1447, %v1535
        %1537 = vmatmul.bf16.gmra.mxu0 %v460
        %v1538 = vpop.f32.mrf.mxu0
        %v1539 = vadd.f32 %v1450, %v1538
        %v1540 = vpop.f32.mrf.mxu0
        %v1541 = vadd.f32 %v1452, %v1540
        %1542 = vmatmul.bf16.gmra.mxu0 %v462
        %v1543 = vpop.f32.mrf.mxu0
        %v1544 = vadd.f32 %v1455, %v1543
        %v1545 = vpop.f32.mrf.mxu0
        %v1546 = vadd.f32 %v1457, %v1545
        %1547 = vmatmul.bf16.gmra.mxu0 %v464
        %v1548 = vpop.f32.mrf.mxu0
        %v1549 = vadd.f32 %v1460, %v1548
        %v1550 = vpop.f32.mrf.mxu0
        %v1551 = vadd.f32 %v1462, %v1550
        %1552 = vmatmul.bf16.gmra.mxu0 %v466
        %v1553 = vpop.f32.mrf.mxu0
        %v1554 = vadd.f32 %v1465, %v1553
        %v1555 = vpop.f32.mrf.mxu0
        %v1556 = vadd.f32 %v1467, %v1555
        %1557 = vmatmul.bf16.gmra.mxu0 %v468
        %v1558 = vpop.f32.mrf.mxu0
        %v1559 = vadd.f32 %v1470, %v1558
        %v1560 = vpop.f32.mrf.mxu0
        %v1561 = vadd.f32 %v1472, %v1560
        %1562 = vmatmul.bf16.gmra.mxu0 %v470
        %v1563 = vpop.f32.mrf.mxu0
        %v1564 = vadd.f32 %v1475, %v1563
        %v1565 = vpop.f32.mrf.mxu0
        %v1566 = vadd.f32 %v1477, %v1565
        %1567 = vmatmul.bf16.gmra.mxu0 %v472
        %v1568 = vpop.f32.mrf.mxu0
        %v1569 = vadd.f32 %v1480, %v1568
        %v1570 = vpop.f32.mrf.mxu0
        %v1571 = vadd.f32 %v1482, %v1570
        %1572 = vmatmul.bf16.gmra.mxu0 %v474
        %v1573 = vpop.f32.mrf.mxu0
        %v1574 = vadd.f32 %v1485, %v1573
        %v1575 = vpop.f32.mrf.mxu0
        %v1576 = vadd.f32 %v1487, %v1575
        %1577 = vmatmul.bf16.gmra.mxu0 %v476
        %v1578 = vpop.f32.mrf.mxu0
        %v1579 = vadd.f32 %v1490, %v1578
        %v1580 = vpop.f32.mrf.mxu0
        %v1581 = vadd.f32 %v1492, %v1580
        %1582 = vdwg.mxu0
        %v1583 = vmax.f32 %v970, 0.0
        %v1584 = vmax.f32 %v1148, 0.0
        %v1585 = vmax.f32 %v1326, 0.0
        %v1586 = vmax.f32 %v1504, 0.0
        %v1587 = vmax.f32 %v972, 0.0
        %v1588 = vmax.f32 %v1150, 0.0
        %v1589 = vmax.f32 %v1328, 0.0
        %v1590 = vmax.f32 %v1506, 0.0
        %v1591 = vmax.f32 %v975, 0.0
        %v1592 = vmax.f32 %v1153, 0.0
        %v1593 = vmax.f32 %v1331, 0.0
        %v1594 = vmax.f32 %v1509, 0.0
        %v1595 = vmax.f32 %v977, 0.0
        %v1596 = vmax.f32 %v1155, 0.0
        %v1597 = vmax.f32 %v1333, 0.0
        %v1598 = vmax.f32 %v1511, 0.0
        %v1599 = vmax.f32 %v980, 0.0
        %v1600 = vmax.f32 %v1158, 0.0
        %v1601 = vmax.f32 %v1336, 0.0
        %v1602 = vmax.f32 %v1514, 0.0
        %v1603 = vmax.f32 %v982, 0.0
        %v1604 = vmax.f32 %v1160, 0.0
        %v1605 = vmax.f32 %v1338, 0.0
        %v1606 = vmax.f32 %v1516, 0.0
        %v1607 = vmax.f32 %v985, 0.0
        %v1608 = vmax.f32 %v1163, 0.0
        %v1609 = vmax.f32 %v1341, 0.0
        %v1610 = vmax.f32 %v1519, 0.0
        %v1611 = vmax.f32 %v987, 0.0
        %v1612 = vmax.f32 %v1165, 0.0
        %v1613 = vmax.f32 %v1343, 0.0
        %v1614 = vmax.f32 %v1521, 0.0
        %v1615 = vmax.f32 %v990, 0.0
        %v1616 = vmax.f32 %v1168, 0.0
        %v1617 = vmax.f32 %v1346, 0.0
        %v1618 = vmax.f32 %v1524, 0.0
        %v1619 = vmax.f32 %v992, 0.0
        %v1620 = vmax.f32 %v1170, 0.0
        %v1621 = vmax.f32 %v1348, 0.0
        %v1622 = vmax.f32 %v1526, 0.0
        %v1623 = vmax.f32 %v995, 0.0
        %v1624 = vmax.f32 %v1173, 0.0
        %v1625 = vmax.f32 %v1351, 0.0
        %v1626 = vmax.f32 %v1529, 0.0
        %v1627 = vmax.f32 %v997, 0.0
        %v1628 = vmax.f32 %v1175, 0.0
        %v1629 = vmax.f32 %v1353, 0.0
        %v1630 = vmax.f32 %v1531, 0.0
        %v1631 = vmax.f32 %v1000, 0.0
        %v1632 = vmax.f32 %v1178, 0.0
        %v1633 = vmax.f32 %v1356, 0.0
        %v1634 = vmax.f32 %v1534, 0.0
        %v1635 = vmax.f32 %v1002, 0.0
        %v1636 = vmax.f32 %v1180, 0.0
        %v1637 = vmax.f32 %v1358, 0.0
        %v1638 = vmax.f32 %v1536, 0.0
        %v1639 = vmax.f32 %v1005, 0.0
        %v1640 = vmax.f32 %v1183, 0.0
        %v1641 = vmax.f32 %v1361, 0.0
        %v1642 = vmax.f32 %v1539, 0.0
        %v1643 = vmax.f32 %v1007, 0.0
        %v1644 = vmax.f32 %v1185, 0.0
        %v1645 = vmax.f32 %v1363, 0.0
        %v1646 = vmax.f32 %v1541, 0.0
        %v1647 = vmax.f32 %v1010, 0.0
        %v1648 = vmax.f32 %v1188, 0.0
        %v1649 = vmax.f32 %v1366, 0.0
        %v1650 = vmax.f32 %v1544, 0.0
        %v1651 = vmax.f32 %v1012, 0.0
        %v1652 = vmax.f32 %v1190, 0.0
        %v1653 = vmax.f32 %v1368, 0.0
        %v1654 = vmax.f32 %v1546, 0.0
        %v1655 = vmax.f32 %v1015, 0.0
        %v1656 = vmax.f32 %v1193, 0.0
        %v1657 = vmax.f32 %v1371, 0.0
        %v1658 = vmax.f32 %v1549, 0.0
        %v1659 = vmax.f32 %v1017, 0.0
        %v1660 = vmax.f32 %v1195, 0.0
        %v1661 = vmax.f32 %v1373, 0.0
        %v1662 = vmax.f32 %v1551, 0.0
        %v1663 = vmax.f32 %v1020, 0.0
        %v1664 = vmax.f32 %v1198, 0.0
        %v1665 = vmax.f32 %v1376, 0.0
        %v1666 = vmax.f32 %v1554, 0.0
        %v1667 = vmax.f32 %v1022, 0.0
        %v1668 = vmax.f32 %v1200, 0.0
        %v1669 = vmax.f32 %v1378, 0.0
        %v1670 = vmax.f32 %v1556, 0.0
        %v1671 = vmax.f32 %v1025, 0.0
        %v1672 = vmax.f32 %v1203, 0.0
        %v1673 = vmax.f32 %v1381, 0.0
        %v1674 = vmax.f32 %v1559, 0.0
        %v1675 = vmax.f32 %v1027, 0.0
        %v1676 = vmax.f32 %v1205, 0.0
        %v1677 = vmax.f32 %v1383, 0.0
        %v1678 = vmax.f32 %v1561, 0.0
        %v1679 = vmax.f32 %v1030, 0.0
        %v1680 = vmax.f32 %v1208, 0.0
        %v1681 = vmax.f32 %v1386, 0.0
        %v1682 = vmax.f32 %v1564, 0.0
        %v1683 = vmax.f32 %v1032, 0.0
        %v1684 = vmax.f32 %v1210, 0.0
        %v1685 = vmax.f32 %v1388, 0.0
        %v1686 = vmax.f32 %v1566, 0.0
        %v1687 = vmax.f32 %v1035, 0.0
        %v1688 = vmax.f32 %v1213, 0.0
        %v1689 = vmax.f32 %v1391, 0.0
        %v1690 = vmax.f32 %v1569, 0.0
        %v1691 = vmax.f32 %v1037, 0.0
        %v1692 = vmax.f32 %v1215, 0.0
        %v1693 = vmax.f32 %v1393, 0.0
        %v1694 = vmax.f32 %v1571, 0.0
        %v1695 = vmax.f32 %v1040, 0.0
        %v1696 = vmax.f32 %v1218, 0.0
        %v1697 = vmax.f32 %v1396, 0.0
        %v1698 = vmax.f32 %v1574, 0.0
        %v1699 = vmax.f32 %v1042, 0.0
        %v1700 = vmax.f32 %v1220, 0.0
        %v1701 = vmax.f32 %v1398, 0.0
        %v1702 = vmax.f32 %v1576, 0.0
        %v1703 = vmax.f32 %v1045, 0.0
        %v1704 = vmax.f32 %v1223, 0.0
        %v1705 = vmax.f32 %v1401, 0.0
        %v1706 = vmax.f32 %v1579, 0.0
        %v1707 = vmax.f32 %v1047, 0.0
        %v1708 = vmax.f32 %v1225, 0.0
        %v1709 = vmax.f32 %v1403, 0.0
        %v1710 = vmax.f32 %v1581, 0.0
        %v1711 = vpack.c.bf16 %v1587, %v1583
        %v1712 = vpack.c.bf16 %v1588, %v1584
        %v1713 = vpack.c.bf16 %v1589, %v1585
        %v1714 = vpack.c.bf16 %v1590, %v1586
        %v1715 = vpack.c.bf16 %v1595, %v1591
        %v1716 = vpack.c.bf16 %v1596, %v1592
        %v1717 = vpack.c.bf16 %v1597, %v1593
        %v1718 = vpack.c.bf16 %v1598, %v1594
        %v1719 = vpack.c.bf16 %v1603, %v1599
        %v1720 = vpack.c.bf16 %v1604, %v1600
        %v1721 = vpack.c.bf16 %v1605, %v1601
        %v1722 = vpack.c.bf16 %v1606, %v1602
        %v1723 = vpack.c.bf16 %v1611, %v1607
        %v1724 = vpack.c.bf16 %v1612, %v1608
        %v1725 = vpack.c.bf16 %v1613, %v1609
        %v1726 = vpack.c.bf16 %v1614, %v1610
        %v1727 = vpack.c.bf16 %v1619, %v1615
        %v1728 = vpack.c.bf16 %v1620, %v1616
        %v1729 = vpack.c.bf16 %v1621, %v1617
        %v1730 = vpack.c.bf16 %v1622, %v1618
        %v1731 = vpack.c.bf16 %v1627, %v1623
        %v1732 = vpack.c.bf16 %v1628, %v1624
        %v1733 = vpack.c.bf16 %v1629, %v1625
        %v1734 = vpack.c.bf16 %v1630, %v1626
        %v1735 = vpack.c.bf16 %v1635, %v1631
        %v1736 = vpack.c.bf16 %v1636, %v1632
        %v1737 = vpack.c.bf16 %v1637, %v1633
        %v1738 = vpack.c.bf16 %v1638, %v1634
        %v1739 = vpack.c.bf16 %v1643, %v1639
        %v1740 = vpack.c.bf16 %v1644, %v1640
        %v1741 = vpack.c.bf16 %v1645, %v1641
        %v1742 = vpack.c.bf16 %v1646, %v1642
        %v1743 = vpack.c.bf16 %v1651, %v1647
        %v1744 = vpack.c.bf16 %v1652, %v1648
        %v1745 = vpack.c.bf16 %v1653, %v1649
        %v1746 = vpack.c.bf16 %v1654, %v1650
        %v1747 = vpack.c.bf16 %v1659, %v1655
        %v1748 = vpack.c.bf16 %v1660, %v1656
        %v1749 = vpack.c.bf16 %v1661, %v1657
        %v1750 = vpack.c.bf16 %v1662, %v1658
        %v1751 = vpack.c.bf16 %v1667, %v1663
        %v1752 = vpack.c.bf16 %v1668, %v1664
        %v1753 = vpack.c.bf16 %v1669, %v1665
        %v1754 = vpack.c.bf16 %v1670, %v1666
        %v1755 = vpack.c.bf16 %v1675, %v1671
        %v1756 = vpack.c.bf16 %v1676, %v1672
        %v1757 = vpack.c.bf16 %v1677, %v1673
        %v1758 = vpack.c.bf16 %v1678, %v1674
        %v1759 = vpack.c.bf16 %v1683, %v1679
        %v1760 = vpack.c.bf16 %v1684, %v1680
        %v1761 = vpack.c.bf16 %v1685, %v1681
        %v1762 = vpack.c.bf16 %v1686, %v1682
        %v1763 = vpack.c.bf16 %v1691, %v1687
        %v1764 = vpack.c.bf16 %v1692, %v1688
        %v1765 = vpack.c.bf16 %v1693, %v1689
        %v1766 = vpack.c.bf16 %v1694, %v1690
        %v1767 = vpack.c.bf16 %v1699, %v1695
        %v1768 = vpack.c.bf16 %v1700, %v1696
        %v1769 = vpack.c.bf16 %v1701, %v1697
        %v1770 = vpack.c.bf16 %v1702, %v1698
        %v1771 = vpack.c.bf16 %v1707, %v1703
        %v1772 = vpack.c.bf16 %v1708, %v1704
        %v1773 = vpack.c.bf16 %v1709, %v1705
        %v1774 = vpack.c.bf16 %v1710, %v1706
        %v1775 = vld [vmem:[#allocation8] sm:$0xff]
        %v1776 = vld [vmem:[#allocation8 + $0x8] sm:$0xff]
        %v1777 = vld [vmem:[#allocation8 + $0x10] sm:$0xff]
        %v1778 = vld [vmem:[#allocation8 + $0x18] sm:$0xff]
        %v1779 = vld [vmem:[#allocation8 + $0x20] sm:$0xff]
        %v1780 = vld [vmem:[#allocation8 + $0x28] sm:$0xff]
        %v1781 = vld [vmem:[#allocation8 + $0x30] sm:$0xff]
        %v1782 = vld [vmem:[#allocation8 + $0x38] sm:$0xff]
        %v1783 = vld [vmem:[#allocation8 + $0x40] sm:$0xff]
        %v1784 = vld [vmem:[#allocation8 + $0x48] sm:$0xff]
        %v1785 = vld [vmem:[#allocation8 + $0x50] sm:$0xff]
        %v1786 = vld [vmem:[#allocation8 + $0x58] sm:$0xff]
        %v1787 = vld [vmem:[#allocation8 + $0x60] sm:$0xff]
        %v1788 = vld [vmem:[#allocation8 + $0x68] sm:$0xff]
        %v1789 = vld [vmem:[#allocation8 + $0x70] sm:$0xff]
        %v1790 = vld [vmem:[#allocation8 + $0x78] sm:$0xff]
        %v1791 = vld [vmem:[#allocation8 + $0x80] sm:$0xff]
        %v1792 = vld [vmem:[#allocation8 + $0x88] sm:$0xff]
        %v1793 = vld [vmem:[#allocation8 + $0x90] sm:$0xff]
        %v1794 = vld [vmem:[#allocation8 + $0x98] sm:$0xff]
        %v1795 = vld [vmem:[#allocation8 + $0xa0] sm:$0xff]
        %v1796 = vld [vmem:[#allocation8 + $0xa8] sm:$0xff]
        %v1797 = vld [vmem:[#allocation8 + $0xb0] sm:$0xff]
        %v1798 = vld [vmem:[#allocation8 + $0xb8] sm:$0xff]
        %v1799 = vld [vmem:[#allocation8 + $0xc0] sm:$0xff]
        %v1800 = vld [vmem:[#allocation8 + $0xc8] sm:$0xff]
        %v1801 = vld [vmem:[#allocation8 + $0xd0] sm:$0xff]
        %v1802 = vld [vmem:[#allocation8 + $0xd8] sm:$0xff]
        %v1803 = vld [vmem:[#allocation8 + $0xe0] sm:$0xff]
        %v1804 = vld [vmem:[#allocation8 + $0xe8] sm:$0xff]
        %v1805 = vld [vmem:[#allocation8 + $0xf0] sm:$0xff]
        %v1806 = vld [vmem:[#allocation8 + $0xf8] sm:$0xff]
        %v1807 = vld [vmem:[#allocation8 + $0x100] sm:$0xff]
        %v1808 = vld [vmem:[#allocation8 + $0x108] sm:$0xff]
        %v1809 = vld [vmem:[#allocation8 + $0x110] sm:$0xff]
        %v1810 = vld [vmem:[#allocation8 + $0x118] sm:$0xff]
        %v1811 = vld [vmem:[#allocation8 + $0x120] sm:$0xff]
        %v1812 = vld [vmem:[#allocation8 + $0x128] sm:$0xff]
        %v1813 = vld [vmem:[#allocation8 + $0x130] sm:$0xff]
        %v1814 = vld [vmem:[#allocation8 + $0x138] sm:$0xff]
        %v1815 = vld [vmem:[#allocation8 + $0x140] sm:$0xff]
        %v1816 = vld [vmem:[#allocation8 + $0x148] sm:$0xff]
        %v1817 = vld [vmem:[#allocation8 + $0x150] sm:$0xff]
        %v1818 = vld [vmem:[#allocation8 + $0x158] sm:$0xff]
        %v1819 = vld [vmem:[#allocation8 + $0x160] sm:$0xff]
        %v1820 = vld [vmem:[#allocation8 + $0x168] sm:$0xff]
        %v1821 = vld [vmem:[#allocation8 + $0x170] sm:$0xff]
        %v1822 = vld [vmem:[#allocation8 + $0x178] sm:$0xff]
        %v1823 = vld [vmem:[#allocation8 + $0x180] sm:$0xff]
        %v1824 = vld [vmem:[#allocation8 + $0x188] sm:$0xff]
        %v1825 = vld [vmem:[#allocation8 + $0x190] sm:$0xff]
        %v1826 = vld [vmem:[#allocation8 + $0x198] sm:$0xff]
        %v1827 = vld [vmem:[#allocation8 + $0x1a0] sm:$0xff]
        %v1828 = vld [vmem:[#allocation8 + $0x1a8] sm:$0xff]
        %v1829 = vld [vmem:[#allocation8 + $0x1b0] sm:$0xff]
        %v1830 = vld [vmem:[#allocation8 + $0x1b8] sm:$0xff]
        %v1831 = vld [vmem:[#allocation8 + $0x1c0] sm:$0xff]
        %v1832 = vld [vmem:[#allocation8 + $0x1c8] sm:$0xff]
        %v1833 = vld [vmem:[#allocation8 + $0x1d0] sm:$0xff]
        %v1834 = vld [vmem:[#allocation8 + $0x1d8] sm:$0xff]
        %v1835 = vld [vmem:[#allocation8 + $0x1e0] sm:$0xff]
        %v1836 = vld [vmem:[#allocation8 + $0x1e8] sm:$0xff]
        %v1837 = vld [vmem:[#allocation8 + $0x1f0] sm:$0xff]
        %v1838 = vld [vmem:[#allocation8 + $0x1f8] sm:$0xff]
        %v1839 = vld [vmem:[#allocation8 + $0x200] sm:$0xff]
        %v1840 = vld [vmem:[#allocation8 + $0x208] sm:$0xff]
        %v1841 = vld [vmem:[#allocation8 + $0x210] sm:$0xff]
        %v1842 = vld [vmem:[#allocation8 + $0x218] sm:$0xff]
        %v1843 = vld [vmem:[#allocation8 + $0x220] sm:$0xff]
        %v1844 = vld [vmem:[#allocation8 + $0x228] sm:$0xff]
        %v1845 = vld [vmem:[#allocation8 + $0x230] sm:$0xff]
        %v1846 = vld [vmem:[#allocation8 + $0x238] sm:$0xff]
        %v1847 = vld [vmem:[#allocation8 + $0x240] sm:$0xff]
        %v1848 = vld [vmem:[#allocation8 + $0x248] sm:$0xff]
        %v1849 = vld [vmem:[#allocation8 + $0x250] sm:$0xff]
        %v1850 = vld [vmem:[#allocation8 + $0x258] sm:$0xff]
        %v1851 = vld [vmem:[#allocation8 + $0x260] sm:$0xff]
        %v1852 = vld [vmem:[#allocation8 + $0x268] sm:$0xff]
        %v1853 = vld [vmem:[#allocation8 + $0x270] sm:$0xff]
        %v1854 = vld [vmem:[#allocation8 + $0x278] sm:$0xff]
        %v1855 = vld [vmem:[#allocation8 + $0x280] sm:$0xff]
        %v1856 = vld [vmem:[#allocation8 + $0x288] sm:$0xff]
        %v1857 = vld [vmem:[#allocation8 + $0x290] sm:$0xff]
        %v1858 = vld [vmem:[#allocation8 + $0x298] sm:$0xff]
        %v1859 = vld [vmem:[#allocation8 + $0x2a0] sm:$0xff]
        %v1860 = vld [vmem:[#allocation8 + $0x2a8] sm:$0xff]
        %v1861 = vld [vmem:[#allocation8 + $0x2b0] sm:$0xff]
        %v1862 = vld [vmem:[#allocation8 + $0x2b8] sm:$0xff]
        %v1863 = vld [vmem:[#allocation8 + $0x2c0] sm:$0xff]
        %v1864 = vld [vmem:[#allocation8 + $0x2c8] sm:$0xff]
        %v1865 = vld [vmem:[#allocation8 + $0x2d0] sm:$0xff]
        %v1866 = vld [vmem:[#allocation8 + $0x2d8] sm:$0xff]
        %v1867 = vld [vmem:[#allocation8 + $0x2e0] sm:$0xff]
        %v1868 = vld [vmem:[#allocation8 + $0x2e8] sm:$0xff]
        %v1869 = vld [vmem:[#allocation8 + $0x2f0] sm:$0xff]
        %v1870 = vld [vmem:[#allocation8 + $0x2f8] sm:$0xff]
        %v1871 = vld [vmem:[#allocation8 + $0x300] sm:$0xff]
        %v1872 = vld [vmem:[#allocation8 + $0x308] sm:$0xff]
        %v1873 = vld [vmem:[#allocation8 + $0x310] sm:$0xff]
        %v1874 = vld [vmem:[#allocation8 + $0x318] sm:$0xff]
        %v1875 = vld [vmem:[#allocation8 + $0x320] sm:$0xff]
        %v1876 = vld [vmem:[#allocation8 + $0x328] sm:$0xff]
        %v1877 = vld [vmem:[#allocation8 + $0x330] sm:$0xff]
        %v1878 = vld [vmem:[#allocation8 + $0x338] sm:$0xff]
        %v1879 = vld [vmem:[#allocation8 + $0x340] sm:$0xff]
        %v1880 = vld [vmem:[#allocation8 + $0x348] sm:$0xff]
        %v1881 = vld [vmem:[#allocation8 + $0x350] sm:$0xff]
        %v1882 = vld [vmem:[#allocation8 + $0x358] sm:$0xff]
        %v1883 = vld [vmem:[#allocation8 + $0x360] sm:$0xff]
        %v1884 = vld [vmem:[#allocation8 + $0x368] sm:$0xff]
        %v1885 = vld [vmem:[#allocation8 + $0x370] sm:$0xff]
        %v1886 = vld [vmem:[#allocation8 + $0x378] sm:$0xff]
        %v1887 = vld [vmem:[#allocation8 + $0x380] sm:$0xff]
        %v1888 = vld [vmem:[#allocation8 + $0x388] sm:$0xff]
        %v1889 = vld [vmem:[#allocation8 + $0x390] sm:$0xff]
        %v1890 = vld [vmem:[#allocation8 + $0x398] sm:$0xff]
        %v1891 = vld [vmem:[#allocation8 + $0x3a0] sm:$0xff]
        %v1892 = vld [vmem:[#allocation8 + $0x3a8] sm:$0xff]
        %v1893 = vld [vmem:[#allocation8 + $0x3b0] sm:$0xff]
        %v1894 = vld [vmem:[#allocation8 + $0x3b8] sm:$0xff]
        %v1895 = vld [vmem:[#allocation8 + $0x3c0] sm:$0xff]
        %v1896 = vld [vmem:[#allocation8 + $0x3c8] sm:$0xff]
        %v1897 = vld [vmem:[#allocation8 + $0x3d0] sm:$0xff]
        %v1898 = vld [vmem:[#allocation8 + $0x3d8] sm:$0xff]
        %v1899 = vld [vmem:[#allocation8 + $0x3e0] sm:$0xff]
        %v1900 = vld [vmem:[#allocation8 + $0x3e8] sm:$0xff]
        %v1901 = vld [vmem:[#allocation8 + $0x3f0] sm:$0xff]
        %v1902 = vld [vmem:[#allocation8 + $0x3f8] sm:$0xff]
        %v1903 = vld [vmem:[#allocation10] sm:$0xf]
        %v1905 = vperm.slane %v1903, 0
        %v1906 = vperm.slane %v1903, 1
        %v1907 = vperm.slane %v1903, 2
        %v1908 = vperm.slane %v1903, 3
        %v2041 = vunpack.c.l.b16 %v1775
        %v2042 = vunpack.c.h.b16 %v1775
        %v2043 = vunpack.c.l.b16 %v1776
        %v2044 = vunpack.c.h.b16 %v1776
        %v2045 = vunpack.c.l.b16 %v1777
        %v2046 = vunpack.c.h.b16 %v1777
        %v2047 = vunpack.c.l.b16 %v1778
        %v2048 = vunpack.c.h.b16 %v1778
        %v2049 = vunpack.c.l.b16 %v1779
        %v2050 = vunpack.c.h.b16 %v1779
        %v2051 = vunpack.c.l.b16 %v1780
        %v2052 = vunpack.c.h.b16 %v1780
        %v2053 = vunpack.c.l.b16 %v1781
        %v2054 = vunpack.c.h.b16 %v1781
        %v2055 = vunpack.c.l.b16 %v1782
        %v2056 = vunpack.c.h.b16 %v1782
        %v2057 = vunpack.c.l.b16 %v1783
        %v2058 = vunpack.c.h.b16 %v1783
        %v2059 = vunpack.c.l.b16 %v1784
        %v2060 = vunpack.c.h.b16 %v1784
        %v2061 = vunpack.c.l.b16 %v1785
        %v2062 = vunpack.c.h.b16 %v1785
        %v2063 = vunpack.c.l.b16 %v1786
        %v2064 = vunpack.c.h.b16 %v1786
        %v2065 = vunpack.c.l.b16 %v1787
        %v2066 = vunpack.c.h.b16 %v1787
        %v2067 = vunpack.c.l.b16 %v1788
        %v2068 = vunpack.c.h.b16 %v1788
        %v2069 = vunpack.c.l.b16 %v1789
        %v2070 = vunpack.c.h.b16 %v1789
        %v2071 = vunpack.c.l.b16 %v1790
        %v2072 = vunpack.c.h.b16 %v1790
        %v2073 = vunpack.c.l.b16 %v1791
        %v2074 = vunpack.c.h.b16 %v1791
        %v2075 = vunpack.c.l.b16 %v1792
        %v2076 = vunpack.c.h.b16 %v1792
        %v2077 = vunpack.c.l.b16 %v1793
        %v2078 = vunpack.c.h.b16 %v1793
        %v2079 = vunpack.c.l.b16 %v1794
        %v2080 = vunpack.c.h.b16 %v1794
        %v2081 = vunpack.c.l.b16 %v1795
        %v2082 = vunpack.c.h.b16 %v1795
        %v2083 = vunpack.c.l.b16 %v1796
        %v2084 = vunpack.c.h.b16 %v1796
        %v2085 = vunpack.c.l.b16 %v1797
        %v2086 = vunpack.c.h.b16 %v1797
        %v2087 = vunpack.c.l.b16 %v1798
        %v2088 = vunpack.c.h.b16 %v1798
        %v2089 = vunpack.c.l.b16 %v1799
        %v2090 = vunpack.c.h.b16 %v1799
        %v2091 = vunpack.c.l.b16 %v1800
        %v2092 = vunpack.c.h.b16 %v1800
        %v2093 = vunpack.c.l.b16 %v1801
        %v2094 = vunpack.c.h.b16 %v1801
        %v2095 = vunpack.c.l.b16 %v1802
        %v2096 = vunpack.c.h.b16 %v1802
        %v2097 = vunpack.c.l.b16 %v1803
        %v2098 = vunpack.c.h.b16 %v1803
        %v2099 = vunpack.c.l.b16 %v1804
        %v2100 = vunpack.c.h.b16 %v1804
        %v2101 = vunpack.c.l.b16 %v1805
        %v2102 = vunpack.c.h.b16 %v1805
        %v2103 = vunpack.c.l.b16 %v1806
        %v2104 = vunpack.c.h.b16 %v1806
        %v2105 = vunpack.c.l.b16 %v1807
        %v2106 = vunpack.c.h.b16 %v1807
        %v2107 = vunpack.c.l.b16 %v1808
        %v2108 = vunpack.c.h.b16 %v1808
        %v2109 = vunpack.c.l.b16 %v1809
        %v2110 = vunpack.c.h.b16 %v1809
        %v2111 = vunpack.c.l.b16 %v1810
        %v2112 = vunpack.c.h.b16 %v1810
        %v2113 = vunpack.c.l.b16 %v1811
        %v2114 = vunpack.c.h.b16 %v1811
        %v2115 = vunpack.c.l.b16 %v1812
        %v2116 = vunpack.c.h.b16 %v1812
        %v2117 = vunpack.c.l.b16 %v1813
        %v2118 = vunpack.c.h.b16 %v1813
        %v2119 = vunpack.c.l.b16 %v1814
        %v2120 = vunpack.c.h.b16 %v1814
        %v2121 = vunpack.c.l.b16 %v1815
        %v2122 = vunpack.c.h.b16 %v1815
        %v2123 = vunpack.c.l.b16 %v1816
        %v2124 = vunpack.c.h.b16 %v1816
        %v2125 = vunpack.c.l.b16 %v1817
        %v2126 = vunpack.c.h.b16 %v1817
        %v2127 = vunpack.c.l.b16 %v1818
        %v2128 = vunpack.c.h.b16 %v1818
        %v2129 = vunpack.c.l.b16 %v1819
        %v2130 = vunpack.c.h.b16 %v1819
        %v2131 = vunpack.c.l.b16 %v1820
        %v2132 = vunpack.c.h.b16 %v1820
        %v2133 = vunpack.c.l.b16 %v1821
        %v2134 = vunpack.c.h.b16 %v1821
        %v2135 = vunpack.c.l.b16 %v1822
        %v2136 = vunpack.c.h.b16 %v1822
        %v2137 = vunpack.c.l.b16 %v1823
        %v2138 = vunpack.c.h.b16 %v1823
        %v2139 = vunpack.c.l.b16 %v1824
        %v2140 = vunpack.c.h.b16 %v1824
        %v2141 = vunpack.c.l.b16 %v1825
        %v2142 = vunpack.c.h.b16 %v1825
        %v2143 = vunpack.c.l.b16 %v1826
        %v2144 = vunpack.c.h.b16 %v1826
        %v2145 = vunpack.c.l.b16 %v1827
        %v2146 = vunpack.c.h.b16 %v1827
        %v2147 = vunpack.c.l.b16 %v1828
        %v2148 = vunpack.c.h.b16 %v1828
        %v2149 = vunpack.c.l.b16 %v1829
        %v2150 = vunpack.c.h.b16 %v1829
        %v2151 = vunpack.c.l.b16 %v1830
        %v2152 = vunpack.c.h.b16 %v1830
        %v2153 = vunpack.c.l.b16 %v1831
        %v2154 = vunpack.c.h.b16 %v1831
        %v2155 = vunpack.c.l.b16 %v1832
        %v2156 = vunpack.c.h.b16 %v1832
        %v2157 = vunpack.c.l.b16 %v1833
        %v2158 = vunpack.c.h.b16 %v1833
        %v2159 = vunpack.c.l.b16 %v1834
        %v2160 = vunpack.c.h.b16 %v1834
        %v2161 = vunpack.c.l.b16 %v1835
        %v2162 = vunpack.c.h.b16 %v1835
        %v2163 = vunpack.c.l.b16 %v1836
        %v2164 = vunpack.c.h.b16 %v1836
        %v2165 = vunpack.c.l.b16 %v1837
        %v2166 = vunpack.c.h.b16 %v1837
        %v2167 = vunpack.c.l.b16 %v1838
        %v2168 = vunpack.c.h.b16 %v1838
        %v2169 = vunpack.c.l.b16 %v1839
        %v2170 = vunpack.c.h.b16 %v1839
        %v2171 = vunpack.c.l.b16 %v1840
        %v2172 = vunpack.c.h.b16 %v1840
        %v2173 = vunpack.c.l.b16 %v1841
        %v2174 = vunpack.c.h.b16 %v1841
        %v2175 = vunpack.c.l.b16 %v1842
        %v2176 = vunpack.c.h.b16 %v1842
        %v2177 = vunpack.c.l.b16 %v1843
        %v2178 = vunpack.c.h.b16 %v1843
        %v2179 = vunpack.c.l.b16 %v1844
        %v2180 = vunpack.c.h.b16 %v1844
        %v2181 = vunpack.c.l.b16 %v1845
        %v2182 = vunpack.c.h.b16 %v1845
        %v2183 = vunpack.c.l.b16 %v1846
        %v2184 = vunpack.c.h.b16 %v1846
        %v2185 = vunpack.c.l.b16 %v1847
        %v2186 = vunpack.c.h.b16 %v1847
        %v2187 = vunpack.c.l.b16 %v1848
        %v2188 = vunpack.c.h.b16 %v1848
        %v2189 = vunpack.c.l.b16 %v1849
        %v2190 = vunpack.c.h.b16 %v1849
        %v2191 = vunpack.c.l.b16 %v1850
        %v2192 = vunpack.c.h.b16 %v1850
        %v2193 = vunpack.c.l.b16 %v1851
        %v2194 = vunpack.c.h.b16 %v1851
        %v2195 = vunpack.c.l.b16 %v1852
        %v2196 = vunpack.c.h.b16 %v1852
        %v2197 = vunpack.c.l.b16 %v1853
        %v2198 = vunpack.c.h.b16 %v1853
        %v2199 = vunpack.c.l.b16 %v1854
        %v2200 = vunpack.c.h.b16 %v1854
        %v2201 = vunpack.c.l.b16 %v1855
        %v2202 = vunpack.c.h.b16 %v1855
        %v2203 = vunpack.c.l.b16 %v1856
        %v2204 = vunpack.c.h.b16 %v1856
        %v2205 = vunpack.c.l.b16 %v1857
        %v2206 = vunpack.c.h.b16 %v1857
        %v2207 = vunpack.c.l.b16 %v1858
        %v2208 = vunpack.c.h.b16 %v1858
        %v2209 = vunpack.c.l.b16 %v1859
        %v2210 = vunpack.c.h.b16 %v1859
        %v2211 = vunpack.c.l.b16 %v1860
        %v2212 = vunpack.c.h.b16 %v1860
        %v2213 = vunpack.c.l.b16 %v1861
        %v2214 = vunpack.c.h.b16 %v1861
        %v2215 = vunpack.c.l.b16 %v1862
        %v2216 = vunpack.c.h.b16 %v1862
        %v2217 = vunpack.c.l.b16 %v1863
        %v2218 = vunpack.c.h.b16 %v1863
        %v2219 = vunpack.c.l.b16 %v1864
        %v2220 = vunpack.c.h.b16 %v1864
        %v2221 = vunpack.c.l.b16 %v1865
        %v2222 = vunpack.c.h.b16 %v1865
        %v2223 = vunpack.c.l.b16 %v1866
        %v2224 = vunpack.c.h.b16 %v1866
        %v2225 = vunpack.c.l.b16 %v1867
        %v2226 = vunpack.c.h.b16 %v1867
        %v2227 = vunpack.c.l.b16 %v1868
        %v2228 = vunpack.c.h.b16 %v1868
        %v2229 = vunpack.c.l.b16 %v1869
        %v2230 = vunpack.c.h.b16 %v1869
        %v2231 = vunpack.c.l.b16 %v1870
        %v2232 = vunpack.c.h.b16 %v1870
        %v2233 = vunpack.c.l.b16 %v1871
        %v2234 = vunpack.c.h.b16 %v1871
        %v2235 = vunpack.c.l.b16 %v1872
        %v2236 = vunpack.c.h.b16 %v1872
        %v2237 = vunpack.c.l.b16 %v1873
        %v2238 = vunpack.c.h.b16 %v1873
        %v2239 = vunpack.c.l.b16 %v1874
        %v2240 = vunpack.c.h.b16 %v1874
        %v2241 = vunpack.c.l.b16 %v1875
        %v2242 = vunpack.c.h.b16 %v1875
        %v2243 = vunpack.c.l.b16 %v1876
        %v2244 = vunpack.c.h.b16 %v1876
        %v2245 = vunpack.c.l.b16 %v1877
        %v2246 = vunpack.c.h.b16 %v1877
        %v2247 = vunpack.c.l.b16 %v1878
        %v2248 = vunpack.c.h.b16 %v1878
        %v2249 = vunpack.c.l.b16 %v1879
        %v2250 = vunpack.c.h.b16 %v1879
        %v2251 = vunpack.c.l.b16 %v1880
        %v2252 = vunpack.c.h.b16 %v1880
        %v2253 = vunpack.c.l.b16 %v1881
        %v2254 = vunpack.c.h.b16 %v1881
        %v2255 = vunpack.c.l.b16 %v1882
        %v2256 = vunpack.c.h.b16 %v1882
        %v2257 = vunpack.c.l.b16 %v1883
        %v2258 = vunpack.c.h.b16 %v1883
        %v2259 = vunpack.c.l.b16 %v1884
        %v2260 = vunpack.c.h.b16 %v1884
        %v2261 = vunpack.c.l.b16 %v1885
        %v2262 = vunpack.c.h.b16 %v1885
        %v2263 = vunpack.c.l.b16 %v1886
        %v2264 = vunpack.c.h.b16 %v1886
        %v2265 = vunpack.c.l.b16 %v1887
        %v2266 = vunpack.c.h.b16 %v1887
        %v2267 = vunpack.c.l.b16 %v1888
        %v2268 = vunpack.c.h.b16 %v1888
        %v2269 = vunpack.c.l.b16 %v1889
        %v2270 = vunpack.c.h.b16 %v1889
        %v2271 = vunpack.c.l.b16 %v1890
        %v2272 = vunpack.c.h.b16 %v1890
        %v2273 = vunpack.c.l.b16 %v1891
        %v2274 = vunpack.c.h.b16 %v1891
        %v2275 = vunpack.c.l.b16 %v1892
        %v2276 = vunpack.c.h.b16 %v1892
        %v2277 = vunpack.c.l.b16 %v1893
        %v2278 = vunpack.c.h.b16 %v1893
        %v2279 = vunpack.c.l.b16 %v1894
        %v2280 = vunpack.c.h.b16 %v1894
        %v2281 = vunpack.c.l.b16 %v1895
        %v2282 = vunpack.c.h.b16 %v1895
        %v2283 = vunpack.c.l.b16 %v1896
        %v2284 = vunpack.c.h.b16 %v1896
        %v2285 = vunpack.c.l.b16 %v1897
        %v2286 = vunpack.c.h.b16 %v1897
        %v2287 = vunpack.c.l.b16 %v1898
        %v2288 = vunpack.c.h.b16 %v1898
        %v2289 = vunpack.c.l.b16 %v1899
        %v2290 = vunpack.c.h.b16 %v1899
        %v2291 = vunpack.c.l.b16 %v1900
        %v2292 = vunpack.c.h.b16 %v1900
        %v2293 = vunpack.c.l.b16 %v1901
        %v2294 = vunpack.c.h.b16 %v1901
        %v2295 = vunpack.c.l.b16 %v1902
        %v2296 = vunpack.c.h.b16 %v1902
        %v2297 = vpack.c.b16 %v2045, %v2041
        %v2298 = vpack.c.b16 %v2046, %v2042
        %v2299 = vpack.c.b16 %v2047, %v2043
        %v2300 = vpack.c.b16 %v2048, %v2044
        %v2301 = vpack.c.b16 %v2053, %v2049
        %v2302 = vpack.c.b16 %v2054, %v2050
        %v2303 = vpack.c.b16 %v2055, %v2051
        %v2304 = vpack.c.b16 %v2056, %v2052
        %v2305 = vpack.c.b16 %v2061, %v2057
        %v2306 = vpack.c.b16 %v2062, %v2058
        %v2307 = vpack.c.b16 %v2063, %v2059
        %v2308 = vpack.c.b16 %v2064, %v2060
        %v2309 = vpack.c.b16 %v2069, %v2065
        %v2310 = vpack.c.b16 %v2070, %v2066
        %v2311 = vpack.c.b16 %v2071, %v2067
        %v2312 = vpack.c.b16 %v2072, %v2068
        %v2313 = vpack.c.b16 %v2077, %v2073
        %v2314 = vpack.c.b16 %v2078, %v2074
        %v2315 = vpack.c.b16 %v2079, %v2075
        %v2316 = vpack.c.b16 %v2080, %v2076
        %v2317 = vpack.c.b16 %v2085, %v2081
        %v2318 = vpack.c.b16 %v2086, %v2082
        %v2319 = vpack.c.b16 %v2087, %v2083
        %v2320 = vpack.c.b16 %v2088, %v2084
        %v2321 = vpack.c.b16 %v2093, %v2089
        %v2322 = vpack.c.b16 %v2094, %v2090
        %v2323 = vpack.c.b16 %v2095, %v2091
        %v2324 = vpack.c.b16 %v2096, %v2092
        %v2325 = vpack.c.b16 %v2101, %v2097
        %v2326 = vpack.c.b16 %v2102, %v2098
        %v2327 = vpack.c.b16 %v2103, %v2099
        %v2328 = vpack.c.b16 %v2104, %v2100
        %v2329 = vpack.c.b16 %v2109, %v2105
        %v2330 = vpack.c.b16 %v2110, %v2106
        %v2331 = vpack.c.b16 %v2111, %v2107
        %v2332 = vpack.c.b16 %v2112, %v2108
        %v2333 = vpack.c.b16 %v2117, %v2113
        %v2334 = vpack.c.b16 %v2118, %v2114
        %v2335 = vpack.c.b16 %v2119, %v2115
        %v2336 = vpack.c.b16 %v2120, %v2116
        %v2337 = vpack.c.b16 %v2125, %v2121
        %v2338 = vpack.c.b16 %v2126, %v2122
        %v2339 = vpack.c.b16 %v2127, %v2123
        %v2340 = vpack.c.b16 %v2128, %v2124
        %v2341 = vpack.c.b16 %v2133, %v2129
        %v2342 = vpack.c.b16 %v2134, %v2130
        %v2343 = vpack.c.b16 %v2135, %v2131
        %v2344 = vpack.c.b16 %v2136, %v2132
        %v2345 = vpack.c.b16 %v2141, %v2137
        %v2346 = vpack.c.b16 %v2142, %v2138
        %v2347 = vpack.c.b16 %v2143, %v2139
        %v2348 = vpack.c.b16 %v2144, %v2140
        %v2349 = vpack.c.b16 %v2149, %v2145
        %v2350 = vpack.c.b16 %v2150, %v2146
        %v2351 = vpack.c.b16 %v2151, %v2147
        %v2352 = vpack.c.b16 %v2152, %v2148
        %v2353 = vpack.c.b16 %v2157, %v2153
        %v2354 = vpack.c.b16 %v2158, %v2154
        %v2355 = vpack.c.b16 %v2159, %v2155
        %v2356 = vpack.c.b16 %v2160, %v2156
        %v2357 = vpack.c.b16 %v2165, %v2161
        %v2358 = vpack.c.b16 %v2166, %v2162
        %v2359 = vpack.c.b16 %v2167, %v2163
        %v2360 = vpack.c.b16 %v2168, %v2164
        %v2361 = vpack.c.b16 %v2173, %v2169
        %v2362 = vpack.c.b16 %v2174, %v2170
        %v2363 = vpack.c.b16 %v2175, %v2171
        %v2364 = vpack.c.b16 %v2176, %v2172
        %v2365 = vpack.c.b16 %v2181, %v2177
        %v2366 = vpack.c.b16 %v2182, %v2178
        %v2367 = vpack.c.b16 %v2183, %v2179
        %v2368 = vpack.c.b16 %v2184, %v2180
        %v2369 = vpack.c.b16 %v2189, %v2185
        %v2370 = vpack.c.b16 %v2190, %v2186
        %v2371 = vpack.c.b16 %v2191, %v2187
        %v2372 = vpack.c.b16 %v2192, %v2188
        %v2373 = vpack.c.b16 %v2197, %v2193
        %v2374 = vpack.c.b16 %v2198, %v2194
        %v2375 = vpack.c.b16 %v2199, %v2195
        %v2376 = vpack.c.b16 %v2200, %v2196
        %v2377 = vpack.c.b16 %v2205, %v2201
        %v2378 = vpack.c.b16 %v2206, %v2202
        %v2379 = vpack.c.b16 %v2207, %v2203
        %v2380 = vpack.c.b16 %v2208, %v2204
        %v2381 = vpack.c.b16 %v2213, %v2209
        %v2382 = vpack.c.b16 %v2214, %v2210
        %v2383 = vpack.c.b16 %v2215, %v2211
        %v2384 = vpack.c.b16 %v2216, %v2212
        %v2385 = vpack.c.b16 %v2221, %v2217
        %v2386 = vpack.c.b16 %v2222, %v2218
        %v2387 = vpack.c.b16 %v2223, %v2219
        %v2388 = vpack.c.b16 %v2224, %v2220
        %v2389 = vpack.c.b16 %v2229, %v2225
        %v2390 = vpack.c.b16 %v2230, %v2226
        %v2391 = vpack.c.b16 %v2231, %v2227
        %v2392 = vpack.c.b16 %v2232, %v2228
        %v2393 = vpack.c.b16 %v2237, %v2233
        %v2394 = vpack.c.b16 %v2238, %v2234
        %v2395 = vpack.c.b16 %v2239, %v2235
        %v2396 = vpack.c.b16 %v2240, %v2236
        %v2397 = vpack.c.b16 %v2245, %v2241
        %v2398 = vpack.c.b16 %v2246, %v2242
        %v2399 = vpack.c.b16 %v2247, %v2243
        %v2400 = vpack.c.b16 %v2248, %v2244
        %v2401 = vpack.c.b16 %v2253, %v2249
        %v2402 = vpack.c.b16 %v2254, %v2250
        %v2403 = vpack.c.b16 %v2255, %v2251
        %v2404 = vpack.c.b16 %v2256, %v2252
        %v2405 = vpack.c.b16 %v2261, %v2257
        %v2406 = vpack.c.b16 %v2262, %v2258
        %v2407 = vpack.c.b16 %v2263, %v2259
        %v2408 = vpack.c.b16 %v2264, %v2260
        %v2409 = vpack.c.b16 %v2269, %v2265
        %v2410 = vpack.c.b16 %v2270, %v2266
        %v2411 = vpack.c.b16 %v2271, %v2267
        %v2412 = vpack.c.b16 %v2272, %v2268
        %v2413 = vpack.c.b16 %v2277, %v2273
        %v2414 = vpack.c.b16 %v2278, %v2274
        %v2415 = vpack.c.b16 %v2279, %v2275
        %v2416 = vpack.c.b16 %v2280, %v2276
        %v2417 = vpack.c.b16 %v2285, %v2281
        %v2418 = vpack.c.b16 %v2286, %v2282
        %v2419 = vpack.c.b16 %v2287, %v2283
        %v2420 = vpack.c.b16 %v2288, %v2284
        %v2421 = vpack.c.b16 %v2293, %v2289
        %v2422 = vpack.c.b16 %v2294, %v2290
        %v2423 = vpack.c.b16 %v2295, %v2291
        %v2424 = vpack.c.b16 %v2296, %v2292
        %2553 = vmatpush.bf16.msra.mxu0 %v2325
        %2554 = vmatpush.bf16.msra.mxu0 %v2321
        %2555 = vmatpush.bf16.msra.mxu0 %v2317
        %2556 = vmatpush.bf16.msra.mxu0 %v2313
        %2557 = vmatpush.bf16.msra.mxu0 %v2309
        %2558 = vmatpush.bf16.msra.mxu0 %v2305
        %2559 = vmatpush.bf16.msra.mxu0 %v2301
        %2560 = vmatpush.bf16.msra.mxu0 %v2297
        %2561 = vmatmul.bf16.gmra.mxu0 %v1711
        %v2562 = vpop.f32.mrf.mxu0
        %v2563 = vadd.f32 %v1905, %v2562
        %v2564 = vpop.f32.mrf.mxu0
        %v2565 = vadd.f32 %v1905, %v2564
        %2566 = vmatmul.bf16.gmra.mxu0 %v1715
        %v2567 = vpop.f32.mrf.mxu0
        %v2568 = vadd.f32 %v1905, %v2567
        %v2569 = vpop.f32.mrf.mxu0
        %v2570 = vadd.f32 %v1905, %v2569
        %2571 = vmatmul.bf16.gmra.mxu0 %v1719
        %v2572 = vpop.f32.mrf.mxu0
        %v2573 = vadd.f32 %v1905, %v2572
        %v2574 = vpop.f32.mrf.mxu0
        %v2575 = vadd.f32 %v1905, %v2574
        %2576 = vmatmul.bf16.gmra.mxu0 %v1723
        %v2577 = vpop.f32.mrf.mxu0
        %v2578 = vadd.f32 %v1905, %v2577
        %v2579 = vpop.f32.mrf.mxu0
        %v2580 = vadd.f32 %v1905, %v2579
        %2581 = vmatmul.bf16.gmra.mxu0 %v1727
        %v2582 = vpop.f32.mrf.mxu0
        %v2583 = vadd.f32 %v1905, %v2582
        %v2584 = vpop.f32.mrf.mxu0
        %v2585 = vadd.f32 %v1905, %v2584
        %2586 = vmatmul.bf16.gmra.mxu0 %v1731
        %v2587 = vpop.f32.mrf.mxu0
        %v2588 = vadd.f32 %v1905, %v2587
        %v2589 = vpop.f32.mrf.mxu0
        %v2590 = vadd.f32 %v1905, %v2589
        %2591 = vmatmul.bf16.gmra.mxu0 %v1735
        %v2592 = vpop.f32.mrf.mxu0
        %v2593 = vadd.f32 %v1905, %v2592
        %v2594 = vpop.f32.mrf.mxu0
        %v2595 = vadd.f32 %v1905, %v2594
        %2596 = vmatmul.bf16.gmra.mxu0 %v1739
        %v2597 = vpop.f32.mrf.mxu0
        %v2598 = vadd.f32 %v1905, %v2597
        %v2599 = vpop.f32.mrf.mxu0
        %v2600 = vadd.f32 %v1905, %v2599
        %2601 = vmatmul.bf16.gmra.mxu0 %v1743
        %v2602 = vpop.f32.mrf.mxu0
        %v2603 = vadd.f32 %v1905, %v2602
        %v2604 = vpop.f32.mrf.mxu0
        %v2605 = vadd.f32 %v1905, %v2604
        %2606 = vmatmul.bf16.gmra.mxu0 %v1747
        %v2607 = vpop.f32.mrf.mxu0
        %v2608 = vadd.f32 %v1905, %v2607
        %v2609 = vpop.f32.mrf.mxu0
        %v2610 = vadd.f32 %v1905, %v2609
        %2611 = vmatmul.bf16.gmra.mxu0 %v1751
        %v2612 = vpop.f32.mrf.mxu0
        %v2613 = vadd.f32 %v1905, %v2612
        %v2614 = vpop.f32.mrf.mxu0
        %v2615 = vadd.f32 %v1905, %v2614
        %2616 = vmatmul.bf16.gmra.mxu0 %v1755
        %v2617 = vpop.f32.mrf.mxu0
        %v2618 = vadd.f32 %v1905, %v2617
        %v2619 = vpop.f32.mrf.mxu0
        %v2620 = vadd.f32 %v1905, %v2619
        %2621 = vmatmul.bf16.gmra.mxu0 %v1759
        %v2622 = vpop.f32.mrf.mxu0
        %v2623 = vadd.f32 %v1905, %v2622
        %v2624 = vpop.f32.mrf.mxu0
        %v2625 = vadd.f32 %v1905, %v2624
        %2626 = vmatmul.bf16.gmra.mxu0 %v1763
        %v2627 = vpop.f32.mrf.mxu0
        %v2628 = vadd.f32 %v1905, %v2627
        %v2629 = vpop.f32.mrf.mxu0
        %v2630 = vadd.f32 %v1905, %v2629
        %2631 = vmatmul.bf16.gmra.mxu0 %v1767
        %v2632 = vpop.f32.mrf.mxu0
        %v2633 = vadd.f32 %v1905, %v2632
        %v2634 = vpop.f32.mrf.mxu0
        %v2635 = vadd.f32 %v1905, %v2634
        %2636 = vmatmul.bf16.gmra.mxu0 %v1771
        %v2637 = vpop.f32.mrf.mxu0
        %v2638 = vadd.f32 %v1905, %v2637
        %v2639 = vpop.f32.mrf.mxu0
        %v2640 = vadd.f32 %v1905, %v2639
        %2641 = vdwg.mxu0
        %2642 = vmatpush.bf16.msra.mxu0 %v2357
        %2643 = vmatpush.bf16.msra.mxu0 %v2353
        %2644 = vmatpush.bf16.msra.mxu0 %v2349
        %2645 = vmatpush.bf16.msra.mxu0 %v2345
        %2646 = vmatpush.bf16.msra.mxu0 %v2341
        %2647 = vmatpush.bf16.msra.mxu0 %v2337
        %2648 = vmatpush.bf16.msra.mxu0 %v2333
        %2649 = vmatpush.bf16.msra.mxu0 %v2329
        %2650 = vmatmul.bf16.gmra.mxu0 %v1712
        %v2651 = vpop.f32.mrf.mxu0
        %v2652 = vadd.f32 %v2563, %v2651
        %v2653 = vpop.f32.mrf.mxu0
        %v2654 = vadd.f32 %v2565, %v2653
        %2655 = vmatmul.bf16.gmra.mxu0 %v1716
        %v2656 = vpop.f32.mrf.mxu0
        %v2657 = vadd.f32 %v2568, %v2656
        %v2658 = vpop.f32.mrf.mxu0
        %v2659 = vadd.f32 %v2570, %v2658
        %2660 = vmatmul.bf16.gmra.mxu0 %v1720
        %v2661 = vpop.f32.mrf.mxu0
        %v2662 = vadd.f32 %v2573, %v2661
        %v2663 = vpop.f32.mrf.mxu0
        %v2664 = vadd.f32 %v2575, %v2663
        %2665 = vmatmul.bf16.gmra.mxu0 %v1724
        %v2666 = vpop.f32.mrf.mxu0
        %v2667 = vadd.f32 %v2578, %v2666
        %v2668 = vpop.f32.mrf.mxu0
        %v2669 = vadd.f32 %v2580, %v2668
        %2670 = vmatmul.bf16.gmra.mxu0 %v1728
        %v2671 = vpop.f32.mrf.mxu0
        %v2672 = vadd.f32 %v2583, %v2671
        %v2673 = vpop.f32.mrf.mxu0
        %v2674 = vadd.f32 %v2585, %v2673
        %2675 = vmatmul.bf16.gmra.mxu0 %v1732
        %v2676 = vpop.f32.mrf.mxu0
        %v2677 = vadd.f32 %v2588, %v2676
        %v2678 = vpop.f32.mrf.mxu0
        %v2679 = vadd.f32 %v2590, %v2678
        %2680 = vmatmul.bf16.gmra.mxu0 %v1736
        %v2681 = vpop.f32.mrf.mxu0
        %v2682 = vadd.f32 %v2593, %v2681
        %v2683 = vpop.f32.mrf.mxu0
        %v2684 = vadd.f32 %v2595, %v2683
        %2685 = vmatmul.bf16.gmra.mxu0 %v1740
        %v2686 = vpop.f32.mrf.mxu0
        %v2687 = vadd.f32 %v2598, %v2686
        %v2688 = vpop.f32.mrf.mxu0
        %v2689 = vadd.f32 %v2600, %v2688
        %2690 = vmatmul.bf16.gmra.mxu0 %v1744
        %v2691 = vpop.f32.mrf.mxu0
        %v2692 = vadd.f32 %v2603, %v2691
        %v2693 = vpop.f32.mrf.mxu0
        %v2694 = vadd.f32 %v2605, %v2693
        %2695 = vmatmul.bf16.gmra.mxu0 %v1748
        %v2696 = vpop.f32.mrf.mxu0
        %v2697 = vadd.f32 %v2608, %v2696
        %v2698 = vpop.f32.mrf.mxu0
        %v2699 = vadd.f32 %v2610, %v2698
        %2700 = vmatmul.bf16.gmra.mxu0 %v1752
        %v2701 = vpop.f32.mrf.mxu0
        %v2702 = vadd.f32 %v2613, %v2701
        %v2703 = vpop.f32.mrf.mxu0
        %v2704 = vadd.f32 %v2615, %v2703
        %2705 = vmatmul.bf16.gmra.mxu0 %v1756
        %v2706 = vpop.f32.mrf.mxu0
        %v2707 = vadd.f32 %v2618, %v2706
        %v2708 = vpop.f32.mrf.mxu0
        %v2709 = vadd.f32 %v2620, %v2708
        %2710 = vmatmul.bf16.gmra.mxu0 %v1760
        %v2711 = vpop.f32.mrf.mxu0
        %v2712 = vadd.f32 %v2623, %v2711
        %v2713 = vpop.f32.mrf.mxu0
        %v2714 = vadd.f32 %v2625, %v2713
        %2715 = vmatmul.bf16.gmra.mxu0 %v1764
        %v2716 = vpop.f32.mrf.mxu0
        %v2717 = vadd.f32 %v2628, %v2716
        %v2718 = vpop.f32.mrf.mxu0
        %v2719 = vadd.f32 %v2630, %v2718
        %2720 = vmatmul.bf16.gmra.mxu0 %v1768
        %v2721 = vpop.f32.mrf.mxu0
        %v2722 = vadd.f32 %v2633, %v2721
        %v2723 = vpop.f32.mrf.mxu0
        %v2724 = vadd.f32 %v2635, %v2723
        %2725 = vmatmul.bf16.gmra.mxu0 %v1772
        %v2726 = vpop.f32.mrf.mxu0
        %v2727 = vadd.f32 %v2638, %v2726
        %v2728 = vpop.f32.mrf.mxu0
        %v2729 = vadd.f32 %v2640, %v2728
        %2730 = vdwg.mxu0
        %2731 = vmatpush.bf16.msra.mxu0 %v2389
        %2732 = vmatpush.bf16.msra.mxu0 %v2385
        %2733 = vmatpush.bf16.msra.mxu0 %v2381
        %2734 = vmatpush.bf16.msra.mxu0 %v2377
        %2735 = vmatpush.bf16.msra.mxu0 %v2373
        %2736 = vmatpush.bf16.msra.mxu0 %v2369
        %2737 = vmatpush.bf16.msra.mxu0 %v2365
        %2738 = vmatpush.bf16.msra.mxu0 %v2361
        %2739 = vmatmul.bf16.gmra.mxu0 %v1713
        %v2740 = vpop.f32.mrf.mxu0
        %v2741 = vadd.f32 %v2652, %v2740
        %v2742 = vpop.f32.mrf.mxu0
        %v2743 = vadd.f32 %v2654, %v2742
        %2744 = vmatmul.bf16.gmra.mxu0 %v1717
        %v2745 = vpop.f32.mrf.mxu0
        %v2746 = vadd.f32 %v2657, %v2745
        %v2747 = vpop.f32.mrf.mxu0
        %v2748 = vadd.f32 %v2659, %v2747
        %2749 = vmatmul.bf16.gmra.mxu0 %v1721
        %v2750 = vpop.f32.mrf.mxu0
        %v2751 = vadd.f32 %v2662, %v2750
        %v2752 = vpop.f32.mrf.mxu0
        %v2753 = vadd.f32 %v2664, %v2752
        %2754 = vmatmul.bf16.gmra.mxu0 %v1725
        %v2755 = vpop.f32.mrf.mxu0
        %v2756 = vadd.f32 %v2667, %v2755
        %v2757 = vpop.f32.mrf.mxu0
        %v2758 = vadd.f32 %v2669, %v2757
        %2759 = vmatmul.bf16.gmra.mxu0 %v1729
        %v2760 = vpop.f32.mrf.mxu0
        %v2761 = vadd.f32 %v2672, %v2760
        %v2762 = vpop.f32.mrf.mxu0
        %v2763 = vadd.f32 %v2674, %v2762
        %2764 = vmatmul.bf16.gmra.mxu0 %v1733
        %v2765 = vpop.f32.mrf.mxu0
        %v2766 = vadd.f32 %v2677, %v2765
        %v2767 = vpop.f32.mrf.mxu0
        %v2768 = vadd.f32 %v2679, %v2767
        %2769 = vmatmul.bf16.gmra.mxu0 %v1737
        %v2770 = vpop.f32.mrf.mxu0
        %v2771 = vadd.f32 %v2682, %v2770
        %v2772 = vpop.f32.mrf.mxu0
        %v2773 = vadd.f32 %v2684, %v2772
        %2774 = vmatmul.bf16.gmra.mxu0 %v1741
        %v2775 = vpop.f32.mrf.mxu0
        %v2776 = vadd.f32 %v2687, %v2775
        %v2777 = vpop.f32.mrf.mxu0
        %v2778 = vadd.f32 %v2689, %v2777
        %2779 = vmatmul.bf16.gmra.mxu0 %v1745
        %v2780 = vpop.f32.mrf.mxu0
        %v2781 = vadd.f32 %v2692, %v2780
        %v2782 = vpop.f32.mrf.mxu0
        %v2783 = vadd.f32 %v2694, %v2782
        %2784 = vmatmul.bf16.gmra.mxu0 %v1749
        %v2785 = vpop.f32.mrf.mxu0
        %v2786 = vadd.f32 %v2697, %v2785
        %v2787 = vpop.f32.mrf.mxu0
        %v2788 = vadd.f32 %v2699, %v2787
        %2789 = vmatmul.bf16.gmra.mxu0 %v1753
        %v2790 = vpop.f32.mrf.mxu0
        %v2791 = vadd.f32 %v2702, %v2790
        %v2792 = vpop.f32.mrf.mxu0
        %v2793 = vadd.f32 %v2704, %v2792
        %2794 = vmatmul.bf16.gmra.mxu0 %v1757
        %v2795 = vpop.f32.mrf.mxu0
        %v2796 = vadd.f32 %v2707, %v2795
        %v2797 = vpop.f32.mrf.mxu0
        %v2798 = vadd.f32 %v2709, %v2797
        %2799 = vmatmul.bf16.gmra.mxu0 %v1761
        %v2800 = vpop.f32.mrf.mxu0
        %v2801 = vadd.f32 %v2712, %v2800
        %v2802 = vpop.f32.mrf.mxu0
        %v2803 = vadd.f32 %v2714, %v2802
        %2804 = vmatmul.bf16.gmra.mxu0 %v1765
        %v2805 = vpop.f32.mrf.mxu0
        %v2806 = vadd.f32 %v2717, %v2805
        %v2807 = vpop.f32.mrf.mxu0
        %v2808 = vadd.f32 %v2719, %v2807
        %2809 = vmatmul.bf16.gmra.mxu0 %v1769
        %v2810 = vpop.f32.mrf.mxu0
        %v2811 = vadd.f32 %v2722, %v2810
        %v2812 = vpop.f32.mrf.mxu0
        %v2813 = vadd.f32 %v2724, %v2812
        %2814 = vmatmul.bf16.gmra.mxu0 %v1773
        %v2815 = vpop.f32.mrf.mxu0
        %v2816 = vadd.f32 %v2727, %v2815
        %v2817 = vpop.f32.mrf.mxu0
        %v2818 = vadd.f32 %v2729, %v2817
        %2819 = vdwg.mxu0
        %2820 = vmatpush.bf16.msra.mxu0 %v2421
        %2821 = vmatpush.bf16.msra.mxu0 %v2417
        %2822 = vmatpush.bf16.msra.mxu0 %v2413
        %2823 = vmatpush.bf16.msra.mxu0 %v2409
        %2824 = vmatpush.bf16.msra.mxu0 %v2405
        %2825 = vmatpush.bf16.msra.mxu0 %v2401
        %2826 = vmatpush.bf16.msra.mxu0 %v2397
        %2827 = vmatpush.bf16.msra.mxu0 %v2393
        %2828 = vmatmul.bf16.gmra.mxu0 %v1714
        %v2829 = vpop.f32.mrf.mxu0
        %v2830 = vadd.f32 %v2741, %v2829
        %v2831 = vpop.f32.mrf.mxu0
        %v2832 = vadd.f32 %v2743, %v2831
        %2833 = vmatmul.bf16.gmra.mxu0 %v1718
        %v2834 = vpop.f32.mrf.mxu0
        %v2835 = vadd.f32 %v2746, %v2834
        %v2836 = vpop.f32.mrf.mxu0
        %v2837 = vadd.f32 %v2748, %v2836
        %2838 = vmatmul.bf16.gmra.mxu0 %v1722
        %v2839 = vpop.f32.mrf.mxu0
        %v2840 = vadd.f32 %v2751, %v2839
        %v2841 = vpop.f32.mrf.mxu0
        %v2842 = vadd.f32 %v2753, %v2841
        %2843 = vmatmul.bf16.gmra.mxu0 %v1726
        %v2844 = vpop.f32.mrf.mxu0
        %v2845 = vadd.f32 %v2756, %v2844
        %v2846 = vpop.f32.mrf.mxu0
        %v2847 = vadd.f32 %v2758, %v2846
        %2848 = vmatmul.bf16.gmra.mxu0 %v1730
        %v2849 = vpop.f32.mrf.mxu0
        %v2850 = vadd.f32 %v2761, %v2849
        %v2851 = vpop.f32.mrf.mxu0
        %v2852 = vadd.f32 %v2763, %v2851
        %2853 = vmatmul.bf16.gmra.mxu0 %v1734
        %v2854 = vpop.f32.mrf.mxu0
        %v2855 = vadd.f32 %v2766, %v2854
        %v2856 = vpop.f32.mrf.mxu0
        %v2857 = vadd.f32 %v2768, %v2856
        %2858 = vmatmul.bf16.gmra.mxu0 %v1738
        %v2859 = vpop.f32.mrf.mxu0
        %v2860 = vadd.f32 %v2771, %v2859
        %v2861 = vpop.f32.mrf.mxu0
        %v2862 = vadd.f32 %v2773, %v2861
        %2863 = vmatmul.bf16.gmra.mxu0 %v1742
        %v2864 = vpop.f32.mrf.mxu0
        %v2865 = vadd.f32 %v2776, %v2864
        %v2866 = vpop.f32.mrf.mxu0
        %v2867 = vadd.f32 %v2778, %v2866
        %2868 = vmatmul.bf16.gmra.mxu0 %v1746
        %v2869 = vpop.f32.mrf.mxu0
        %v2870 = vadd.f32 %v2781, %v2869
        %v2871 = vpop.f32.mrf.mxu0
        %v2872 = vadd.f32 %v2783, %v2871
        %2873 = vmatmul.bf16.gmra.mxu0 %v1750
        %v2874 = vpop.f32.mrf.mxu0
        %v2875 = vadd.f32 %v2786, %v2874
        %v2876 = vpop.f32.mrf.mxu0
        %v2877 = vadd.f32 %v2788, %v2876
        %2878 = vmatmul.bf16.gmra.mxu0 %v1754
        %v2879 = vpop.f32.mrf.mxu0
        %v2880 = vadd.f32 %v2791, %v2879
        %v2881 = vpop.f32.mrf.mxu0
        %v2882 = vadd.f32 %v2793, %v2881
        %2883 = vmatmul.bf16.gmra.mxu0 %v1758
        %v2884 = vpop.f32.mrf.mxu0
        %v2885 = vadd.f32 %v2796, %v2884
        %v2886 = vpop.f32.mrf.mxu0
        %v2887 = vadd.f32 %v2798, %v2886
        %2888 = vmatmul.bf16.gmra.mxu0 %v1762
        %v2889 = vpop.f32.mrf.mxu0
        %v2890 = vadd.f32 %v2801, %v2889
        %v2891 = vpop.f32.mrf.mxu0
        %v2892 = vadd.f32 %v2803, %v2891
        %2893 = vmatmul.bf16.gmra.mxu0 %v1766
        %v2894 = vpop.f32.mrf.mxu0
        %v2895 = vadd.f32 %v2806, %v2894
        %v2896 = vpop.f32.mrf.mxu0
        %v2897 = vadd.f32 %v2808, %v2896
        %2898 = vmatmul.bf16.gmra.mxu0 %v1770
        %v2899 = vpop.f32.mrf.mxu0
        %v2900 = vadd.f32 %v2811, %v2899
        %v2901 = vpop.f32.mrf.mxu0
        %v2902 = vadd.f32 %v2813, %v2901
        %2903 = vmatmul.bf16.gmra.mxu0 %v1774
        %v2904 = vpop.f32.mrf.mxu0
        %v2905 = vadd.f32 %v2816, %v2904
        %v2906 = vpop.f32.mrf.mxu0
        %v2907 = vadd.f32 %v2818, %v2906
        %2908 = vdwg.mxu0
        %2909 = vmatpush.bf16.msra.mxu0 %v2326
        %2910 = vmatpush.bf16.msra.mxu0 %v2322
        %2911 = vmatpush.bf16.msra.mxu0 %v2318
        %2912 = vmatpush.bf16.msra.mxu0 %v2314
        %2913 = vmatpush.bf16.msra.mxu0 %v2310
        %2914 = vmatpush.bf16.msra.mxu0 %v2306
        %2915 = vmatpush.bf16.msra.mxu0 %v2302
        %2916 = vmatpush.bf16.msra.mxu0 %v2298
        %2917 = vmatmul.bf16.gmra.mxu0 %v1711
        %v2918 = vpop.f32.mrf.mxu0
        %v2919 = vadd.f32 %v1906, %v2918
        %v2920 = vpop.f32.mrf.mxu0
        %v2921 = vadd.f32 %v1906, %v2920
        %2922 = vmatmul.bf16.gmra.mxu0 %v1715
        %v2923 = vpop.f32.mrf.mxu0
        %v2924 = vadd.f32 %v1906, %v2923
        %v2925 = vpop.f32.mrf.mxu0
        %v2926 = vadd.f32 %v1906, %v2925
        %2927 = vmatmul.bf16.gmra.mxu0 %v1719
        %v2928 = vpop.f32.mrf.mxu0
        %v2929 = vadd.f32 %v1906, %v2928
        %v2930 = vpop.f32.mrf.mxu0
        %v2931 = vadd.f32 %v1906, %v2930
        %2932 = vmatmul.bf16.gmra.mxu0 %v1723
        %v2933 = vpop.f32.mrf.mxu0
        %v2934 = vadd.f32 %v1906, %v2933
        %v2935 = vpop.f32.mrf.mxu0
        %v2936 = vadd.f32 %v1906, %v2935
        %2937 = vmatmul.bf16.gmra.mxu0 %v1727
        %v2938 = vpop.f32.mrf.mxu0
        %v2939 = vadd.f32 %v1906, %v2938
        %v2940 = vpop.f32.mrf.mxu0
        %v2941 = vadd.f32 %v1906, %v2940
        %2942 = vmatmul.bf16.gmra.mxu0 %v1731
        %v2943 = vpop.f32.mrf.mxu0
        %v2944 = vadd.f32 %v1906, %v2943
        %v2945 = vpop.f32.mrf.mxu0
        %v2946 = vadd.f32 %v1906, %v2945
        %2947 = vmatmul.bf16.gmra.mxu0 %v1735
        %v2948 = vpop.f32.mrf.mxu0
        %v2949 = vadd.f32 %v1906, %v2948
        %v2950 = vpop.f32.mrf.mxu0
        %v2951 = vadd.f32 %v1906, %v2950
        %2952 = vmatmul.bf16.gmra.mxu0 %v1739
        %v2953 = vpop.f32.mrf.mxu0
        %v2954 = vadd.f32 %v1906, %v2953
        %v2955 = vpop.f32.mrf.mxu0
        %v2956 = vadd.f32 %v1906, %v2955
        %2957 = vmatmul.bf16.gmra.mxu0 %v1743
        %v2958 = vpop.f32.mrf.mxu0
        %v2959 = vadd.f32 %v1906, %v2958
        %v2960 = vpop.f32.mrf.mxu0
        %v2961 = vadd.f32 %v1906, %v2960
        %2962 = vmatmul.bf16.gmra.mxu0 %v1747
        %v2963 = vpop.f32.mrf.mxu0
        %v2964 = vadd.f32 %v1906, %v2963
        %v2965 = vpop.f32.mrf.mxu0
        %v2966 = vadd.f32 %v1906, %v2965
        %2967 = vmatmul.bf16.gmra.mxu0 %v1751
        %v2968 = vpop.f32.mrf.mxu0
        %v2969 = vadd.f32 %v1906, %v2968
        %v2970 = vpop.f32.mrf.mxu0
        %v2971 = vadd.f32 %v1906, %v2970
        %2972 = vmatmul.bf16.gmra.mxu0 %v1755
        %v2973 = vpop.f32.mrf.mxu0
        %v2974 = vadd.f32 %v1906, %v2973
        %v2975 = vpop.f32.mrf.mxu0
        %v2976 = vadd.f32 %v1906, %v2975
        %2977 = vmatmul.bf16.gmra.mxu0 %v1759
        %v2978 = vpop.f32.mrf.mxu0
        %v2979 = vadd.f32 %v1906, %v2978
        %v2980 = vpop.f32.mrf.mxu0
        %v2981 = vadd.f32 %v1906, %v2980
        %2982 = vmatmul.bf16.gmra.mxu0 %v1763
        %v2983 = vpop.f32.mrf.mxu0
        %v2984 = vadd.f32 %v1906, %v2983
        %v2985 = vpop.f32.mrf.mxu0
        %v2986 = vadd.f32 %v1906, %v2985
        %2987 = vmatmul.bf16.gmra.mxu0 %v1767
        %v2988 = vpop.f32.mrf.mxu0
        %v2989 = vadd.f32 %v1906, %v2988
        %v2990 = vpop.f32.mrf.mxu0
        %v2991 = vadd.f32 %v1906, %v2990
        %2992 = vmatmul.bf16.gmra.mxu0 %v1771
        %v2993 = vpop.f32.mrf.mxu0
        %v2994 = vadd.f32 %v1906, %v2993
        %v2995 = vpop.f32.mrf.mxu0
        %v2996 = vadd.f32 %v1906, %v2995
        %2997 = vdwg.mxu0
        %2998 = vmatpush.bf16.msra.mxu0 %v2358
        %2999 = vmatpush.bf16.msra.mxu0 %v2354
        %3000 = vmatpush.bf16.msra.mxu0 %v2350
        %3001 = vmatpush.bf16.msra.mxu0 %v2346
        %3002 = vmatpush.bf16.msra.mxu0 %v2342
        %3003 = vmatpush.bf16.msra.mxu0 %v2338
        %3004 = vmatpush.bf16.msra.mxu0 %v2334
        %3005 = vmatpush.bf16.msra.mxu0 %v2330
        %3006 = vmatmul.bf16.gmra.mxu0 %v1712
        %v3007 = vpop.f32.mrf.mxu0
        %v3008 = vadd.f32 %v2919, %v3007
        %v3009 = vpop.f32.mrf.mxu0
        %v3010 = vadd.f32 %v2921, %v3009
        %3011 = vmatmul.bf16.gmra.mxu0 %v1716
        %v3012 = vpop.f32.mrf.mxu0
        %v3013 = vadd.f32 %v2924, %v3012
        %v3014 = vpop.f32.mrf.mxu0
        %v3015 = vadd.f32 %v2926, %v3014
        %3016 = vmatmul.bf16.gmra.mxu0 %v1720
        %v3017 = vpop.f32.mrf.mxu0
        %v3018 = vadd.f32 %v2929, %v3017
        %v3019 = vpop.f32.mrf.mxu0
        %v3020 = vadd.f32 %v2931, %v3019
        %3021 = vmatmul.bf16.gmra.mxu0 %v1724
        %v3022 = vpop.f32.mrf.mxu0
        %v3023 = vadd.f32 %v2934, %v3022
        %v3024 = vpop.f32.mrf.mxu0
        %v3025 = vadd.f32 %v2936, %v3024
        %3026 = vmatmul.bf16.gmra.mxu0 %v1728
        %v3027 = vpop.f32.mrf.mxu0
        %v3028 = vadd.f32 %v2939, %v3027
        %v3029 = vpop.f32.mrf.mxu0
        %v3030 = vadd.f32 %v2941, %v3029
        %3031 = vmatmul.bf16.gmra.mxu0 %v1732
        %v3032 = vpop.f32.mrf.mxu0
        %v3033 = vadd.f32 %v2944, %v3032
        %v3034 = vpop.f32.mrf.mxu0
        %v3035 = vadd.f32 %v2946, %v3034
        %3036 = vmatmul.bf16.gmra.mxu0 %v1736
        %v3037 = vpop.f32.mrf.mxu0
        %v3038 = vadd.f32 %v2949, %v3037
        %v3039 = vpop.f32.mrf.mxu0
        %v3040 = vadd.f32 %v2951, %v3039
        %3041 = vmatmul.bf16.gmra.mxu0 %v1740
        %v3042 = vpop.f32.mrf.mxu0
        %v3043 = vadd.f32 %v2954, %v3042
        %v3044 = vpop.f32.mrf.mxu0
        %v3045 = vadd.f32 %v2956, %v3044
        %3046 = vmatmul.bf16.gmra.mxu0 %v1744
        %v3047 = vpop.f32.mrf.mxu0
        %v3048 = vadd.f32 %v2959, %v3047
        %v3049 = vpop.f32.mrf.mxu0
        %v3050 = vadd.f32 %v2961, %v3049
        %3051 = vmatmul.bf16.gmra.mxu0 %v1748
        %v3052 = vpop.f32.mrf.mxu0
        %v3053 = vadd.f32 %v2964, %v3052
        %v3054 = vpop.f32.mrf.mxu0
        %v3055 = vadd.f32 %v2966, %v3054
        %3056 = vmatmul.bf16.gmra.mxu0 %v1752
        %v3057 = vpop.f32.mrf.mxu0
        %v3058 = vadd.f32 %v2969, %v3057
        %v3059 = vpop.f32.mrf.mxu0
        %v3060 = vadd.f32 %v2971, %v3059
        %3061 = vmatmul.bf16.gmra.mxu0 %v1756
        %v3062 = vpop.f32.mrf.mxu0
        %v3063 = vadd.f32 %v2974, %v3062
        %v3064 = vpop.f32.mrf.mxu0
        %v3065 = vadd.f32 %v2976, %v3064
        %3066 = vmatmul.bf16.gmra.mxu0 %v1760
        %v3067 = vpop.f32.mrf.mxu0
        %v3068 = vadd.f32 %v2979, %v3067
        %v3069 = vpop.f32.mrf.mxu0
        %v3070 = vadd.f32 %v2981, %v3069
        %3071 = vmatmul.bf16.gmra.mxu0 %v1764
        %v3072 = vpop.f32.mrf.mxu0
        %v3073 = vadd.f32 %v2984, %v3072
        %v3074 = vpop.f32.mrf.mxu0
        %v3075 = vadd.f32 %v2986, %v3074
        %3076 = vmatmul.bf16.gmra.mxu0 %v1768
        %v3077 = vpop.f32.mrf.mxu0
        %v3078 = vadd.f32 %v2989, %v3077
        %v3079 = vpop.f32.mrf.mxu0
        %v3080 = vadd.f32 %v2991, %v3079
        %3081 = vmatmul.bf16.gmra.mxu0 %v1772
        %v3082 = vpop.f32.mrf.mxu0
        %v3083 = vadd.f32 %v2994, %v3082
        %v3084 = vpop.f32.mrf.mxu0
        %v3085 = vadd.f32 %v2996, %v3084
        %3086 = vdwg.mxu0
        %3087 = vmatpush.bf16.msra.mxu0 %v2390
        %3088 = vmatpush.bf16.msra.mxu0 %v2386
        %3089 = vmatpush.bf16.msra.mxu0 %v2382
        %3090 = vmatpush.bf16.msra.mxu0 %v2378
        %3091 = vmatpush.bf16.msra.mxu0 %v2374
        %3092 = vmatpush.bf16.msra.mxu0 %v2370
        %3093 = vmatpush.bf16.msra.mxu0 %v2366
        %3094 = vmatpush.bf16.msra.mxu0 %v2362
        %3095 = vmatmul.bf16.gmra.mxu0 %v1713
        %v3096 = vpop.f32.mrf.mxu0
        %v3097 = vadd.f32 %v3008, %v3096
        %v3098 = vpop.f32.mrf.mxu0
        %v3099 = vadd.f32 %v3010, %v3098
        %3100 = vmatmul.bf16.gmra.mxu0 %v1717
        %v3101 = vpop.f32.mrf.mxu0
        %v3102 = vadd.f32 %v3013, %v3101
        %v3103 = vpop.f32.mrf.mxu0
        %v3104 = vadd.f32 %v3015, %v3103
        %3105 = vmatmul.bf16.gmra.mxu0 %v1721
        %v3106 = vpop.f32.mrf.mxu0
        %v3107 = vadd.f32 %v3018, %v3106
        %v3108 = vpop.f32.mrf.mxu0
        %v3109 = vadd.f32 %v3020, %v3108
        %3110 = vmatmul.bf16.gmra.mxu0 %v1725
        %v3111 = vpop.f32.mrf.mxu0
        %v3112 = vadd.f32 %v3023, %v3111
        %v3113 = vpop.f32.mrf.mxu0
        %v3114 = vadd.f32 %v3025, %v3113
        %3115 = vmatmul.bf16.gmra.mxu0 %v1729
        %v3116 = vpop.f32.mrf.mxu0
        %v3117 = vadd.f32 %v3028, %v3116
        %v3118 = vpop.f32.mrf.mxu0
        %v3119 = vadd.f32 %v3030, %v3118
        %3120 = vmatmul.bf16.gmra.mxu0 %v1733
        %v3121 = vpop.f32.mrf.mxu0
        %v3122 = vadd.f32 %v3033, %v3121
        %v3123 = vpop.f32.mrf.mxu0
        %v3124 = vadd.f32 %v3035, %v3123
        %3125 = vmatmul.bf16.gmra.mxu0 %v1737
        %v3126 = vpop.f32.mrf.mxu0
        %v3127 = vadd.f32 %v3038, %v3126
        %v3128 = vpop.f32.mrf.mxu0
        %v3129 = vadd.f32 %v3040, %v3128
        %3130 = vmatmul.bf16.gmra.mxu0 %v1741
        %v3131 = vpop.f32.mrf.mxu0
        %v3132 = vadd.f32 %v3043, %v3131
        %v3133 = vpop.f32.mrf.mxu0
        %v3134 = vadd.f32 %v3045, %v3133
        %3135 = vmatmul.bf16.gmra.mxu0 %v1745
        %v3136 = vpop.f32.mrf.mxu0
        %v3137 = vadd.f32 %v3048, %v3136
        %v3138 = vpop.f32.mrf.mxu0
        %v3139 = vadd.f32 %v3050, %v3138
        %3140 = vmatmul.bf16.gmra.mxu0 %v1749
        %v3141 = vpop.f32.mrf.mxu0
        %v3142 = vadd.f32 %v3053, %v3141
        %v3143 = vpop.f32.mrf.mxu0
        %v3144 = vadd.f32 %v3055, %v3143
        %3145 = vmatmul.bf16.gmra.mxu0 %v1753
        %v3146 = vpop.f32.mrf.mxu0
        %v3147 = vadd.f32 %v3058, %v3146
        %v3148 = vpop.f32.mrf.mxu0
        %v3149 = vadd.f32 %v3060, %v3148
        %3150 = vmatmul.bf16.gmra.mxu0 %v1757
        %v3151 = vpop.f32.mrf.mxu0
        %v3152 = vadd.f32 %v3063, %v3151
        %v3153 = vpop.f32.mrf.mxu0
        %v3154 = vadd.f32 %v3065, %v3153
        %3155 = vmatmul.bf16.gmra.mxu0 %v1761
        %v3156 = vpop.f32.mrf.mxu0
        %v3157 = vadd.f32 %v3068, %v3156
        %v3158 = vpop.f32.mrf.mxu0
        %v3159 = vadd.f32 %v3070, %v3158
        %3160 = vmatmul.bf16.gmra.mxu0 %v1765
        %v3161 = vpop.f32.mrf.mxu0
        %v3162 = vadd.f32 %v3073, %v3161
        %v3163 = vpop.f32.mrf.mxu0
        %v3164 = vadd.f32 %v3075, %v3163
        %3165 = vmatmul.bf16.gmra.mxu0 %v1769
        %v3166 = vpop.f32.mrf.mxu0
        %v3167 = vadd.f32 %v3078, %v3166
        %v3168 = vpop.f32.mrf.mxu0
        %v3169 = vadd.f32 %v3080, %v3168
        %3170 = vmatmul.bf16.gmra.mxu0 %v1773
        %v3171 = vpop.f32.mrf.mxu0
        %v3172 = vadd.f32 %v3083, %v3171
        %v3173 = vpop.f32.mrf.mxu0
        %v3174 = vadd.f32 %v3085, %v3173
        %3175 = vdwg.mxu0
        %3176 = vmatpush.bf16.msra.mxu0 %v2422
        %3177 = vmatpush.bf16.msra.mxu0 %v2418
        %3178 = vmatpush.bf16.msra.mxu0 %v2414
        %3179 = vmatpush.bf16.msra.mxu0 %v2410
        %3180 = vmatpush.bf16.msra.mxu0 %v2406
        %3181 = vmatpush.bf16.msra.mxu0 %v2402
        %3182 = vmatpush.bf16.msra.mxu0 %v2398
        %3183 = vmatpush.bf16.msra.mxu0 %v2394
        %3184 = vmatmul.bf16.gmra.mxu0 %v1714
        %v3185 = vpop.f32.mrf.mxu0
        %v3186 = vadd.f32 %v3097, %v3185
        %v3187 = vpop.f32.mrf.mxu0
        %v3188 = vadd.f32 %v3099, %v3187
        %3189 = vmatmul.bf16.gmra.mxu0 %v1718
        %v3190 = vpop.f32.mrf.mxu0
        %v3191 = vadd.f32 %v3102, %v3190
        %v3192 = vpop.f32.mrf.mxu0
        %v3193 = vadd.f32 %v3104, %v3192
        %3194 = vmatmul.bf16.gmra.mxu0 %v1722
        %v3195 = vpop.f32.mrf.mxu0
        %v3196 = vadd.f32 %v3107, %v3195
        %v3197 = vpop.f32.mrf.mxu0
        %v3198 = vadd.f32 %v3109, %v3197
        %3199 = vmatmul.bf16.gmra.mxu0 %v1726
        %v3200 = vpop.f32.mrf.mxu0
        %v3201 = vadd.f32 %v3112, %v3200
        %v3202 = vpop.f32.mrf.mxu0
        %v3203 = vadd.f32 %v3114, %v3202
        %3204 = vmatmul.bf16.gmra.mxu0 %v1730
        %v3205 = vpop.f32.mrf.mxu0
        %v3206 = vadd.f32 %v3117, %v3205
        %v3207 = vpop.f32.mrf.mxu0
        %v3208 = vadd.f32 %v3119, %v3207
        %3209 = vmatmul.bf16.gmra.mxu0 %v1734
        %v3210 = vpop.f32.mrf.mxu0
        %v3211 = vadd.f32 %v3122, %v3210
        %v3212 = vpop.f32.mrf.mxu0
        %v3213 = vadd.f32 %v3124, %v3212
        %3214 = vmatmul.bf16.gmra.mxu0 %v1738
        %v3215 = vpop.f32.mrf.mxu0
        %v3216 = vadd.f32 %v3127, %v3215
        %v3217 = vpop.f32.mrf.mxu0
        %v3218 = vadd.f32 %v3129, %v3217
        %3219 = vmatmul.bf16.gmra.mxu0 %v1742
        %v3220 = vpop.f32.mrf.mxu0
        %v3221 = vadd.f32 %v3132, %v3220
        %v3222 = vpop.f32.mrf.mxu0
        %v3223 = vadd.f32 %v3134, %v3222
        %3224 = vmatmul.bf16.gmra.mxu0 %v1746
        %v3225 = vpop.f32.mrf.mxu0
        %v3226 = vadd.f32 %v3137, %v3225
        %v3227 = vpop.f32.mrf.mxu0
        %v3228 = vadd.f32 %v3139, %v3227
        %3229 = vmatmul.bf16.gmra.mxu0 %v1750
        %v3230 = vpop.f32.mrf.mxu0
        %v3231 = vadd.f32 %v3142, %v3230
        %v3232 = vpop.f32.mrf.mxu0
        %v3233 = vadd.f32 %v3144, %v3232
        %3234 = vmatmul.bf16.gmra.mxu0 %v1754
        %v3235 = vpop.f32.mrf.mxu0
        %v3236 = vadd.f32 %v3147, %v3235
        %v3237 = vpop.f32.mrf.mxu0
        %v3238 = vadd.f32 %v3149, %v3237
        %3239 = vmatmul.bf16.gmra.mxu0 %v1758
        %v3240 = vpop.f32.mrf.mxu0
        %v3241 = vadd.f32 %v3152, %v3240
        %v3242 = vpop.f32.mrf.mxu0
        %v3243 = vadd.f32 %v3154, %v3242
        %3244 = vmatmul.bf16.gmra.mxu0 %v1762
        %v3245 = vpop.f32.mrf.mxu0
        %v3246 = vadd.f32 %v3157, %v3245
        %v3247 = vpop.f32.mrf.mxu0
        %v3248 = vadd.f32 %v3159, %v3247
        %3249 = vmatmul.bf16.gmra.mxu0 %v1766
        %v3250 = vpop.f32.mrf.mxu0
        %v3251 = vadd.f32 %v3162, %v3250
        %v3252 = vpop.f32.mrf.mxu0
        %v3253 = vadd.f32 %v3164, %v3252
        %3254 = vmatmul.bf16.gmra.mxu0 %v1770
        %v3255 = vpop.f32.mrf.mxu0
        %v3256 = vadd.f32 %v3167, %v3255
        %v3257 = vpop.f32.mrf.mxu0
        %v3258 = vadd.f32 %v3169, %v3257
        %3259 = vmatmul.bf16.gmra.mxu0 %v1774
        %v3260 = vpop.f32.mrf.mxu0
        %v3261 = vadd.f32 %v3172, %v3260
        %v3262 = vpop.f32.mrf.mxu0
        %v3263 = vadd.f32 %v3174, %v3262
        %3264 = vdwg.mxu0
        %3265 = vmatpush.bf16.msra.mxu0 %v2327
        %3266 = vmatpush.bf16.msra.mxu0 %v2323
        %3267 = vmatpush.bf16.msra.mxu0 %v2319
        %3268 = vmatpush.bf16.msra.mxu0 %v2315
        %3269 = vmatpush.bf16.msra.mxu0 %v2311
        %3270 = vmatpush.bf16.msra.mxu0 %v2307
        %3271 = vmatpush.bf16.msra.mxu0 %v2303
        %3272 = vmatpush.bf16.msra.mxu0 %v2299
        %3273 = vmatmul.bf16.gmra.mxu0 %v1711
        %v3274 = vpop.f32.mrf.mxu0
        %v3275 = vadd.f32 %v1907, %v3274
        %v3276 = vpop.f32.mrf.mxu0
        %v3277 = vadd.f32 %v1907, %v3276
        %3278 = vmatmul.bf16.gmra.mxu0 %v1715
        %v3279 = vpop.f32.mrf.mxu0
        %v3280 = vadd.f32 %v1907, %v3279
        %v3281 = vpop.f32.mrf.mxu0
        %v3282 = vadd.f32 %v1907, %v3281
        %3283 = vmatmul.bf16.gmra.mxu0 %v1719
        %v3284 = vpop.f32.mrf.mxu0
        %v3285 = vadd.f32 %v1907, %v3284
        %v3286 = vpop.f32.mrf.mxu0
        %v3287 = vadd.f32 %v1907, %v3286
        %3288 = vmatmul.bf16.gmra.mxu0 %v1723
        %v3289 = vpop.f32.mrf.mxu0
        %v3290 = vadd.f32 %v1907, %v3289
        %v3291 = vpop.f32.mrf.mxu0
        %v3292 = vadd.f32 %v1907, %v3291
        %3293 = vmatmul.bf16.gmra.mxu0 %v1727
        %v3294 = vpop.f32.mrf.mxu0
        %v3295 = vadd.f32 %v1907, %v3294
        %v3296 = vpop.f32.mrf.mxu0
        %v3297 = vadd.f32 %v1907, %v3296
        %3298 = vmatmul.bf16.gmra.mxu0 %v1731
        %v3299 = vpop.f32.mrf.mxu0
        %v3300 = vadd.f32 %v1907, %v3299
        %v3301 = vpop.f32.mrf.mxu0
        %v3302 = vadd.f32 %v1907, %v3301
        %3303 = vmatmul.bf16.gmra.mxu0 %v1735
        %v3304 = vpop.f32.mrf.mxu0
        %v3305 = vadd.f32 %v1907, %v3304
        %v3306 = vpop.f32.mrf.mxu0
        %v3307 = vadd.f32 %v1907, %v3306
        %3308 = vmatmul.bf16.gmra.mxu0 %v1739
        %v3309 = vpop.f32.mrf.mxu0
        %v3310 = vadd.f32 %v1907, %v3309
        %v3311 = vpop.f32.mrf.mxu0
        %v3312 = vadd.f32 %v1907, %v3311
        %3313 = vmatmul.bf16.gmra.mxu0 %v1743
        %v3314 = vpop.f32.mrf.mxu0
        %v3315 = vadd.f32 %v1907, %v3314
        %v3316 = vpop.f32.mrf.mxu0
        %v3317 = vadd.f32 %v1907, %v3316
        %3318 = vmatmul.bf16.gmra.mxu0 %v1747
        %v3319 = vpop.f32.mrf.mxu0
        %v3320 = vadd.f32 %v1907, %v3319
        %v3321 = vpop.f32.mrf.mxu0
        %v3322 = vadd.f32 %v1907, %v3321
        %3323 = vmatmul.bf16.gmra.mxu0 %v1751
        %v3324 = vpop.f32.mrf.mxu0
        %v3325 = vadd.f32 %v1907, %v3324
        %v3326 = vpop.f32.mrf.mxu0
        %v3327 = vadd.f32 %v1907, %v3326
        %3328 = vmatmul.bf16.gmra.mxu0 %v1755
        %v3329 = vpop.f32.mrf.mxu0
        %v3330 = vadd.f32 %v1907, %v3329
        %v3331 = vpop.f32.mrf.mxu0
        %v3332 = vadd.f32 %v1907, %v3331
        %3333 = vmatmul.bf16.gmra.mxu0 %v1759
        %v3334 = vpop.f32.mrf.mxu0
        %v3335 = vadd.f32 %v1907, %v3334
        %v3336 = vpop.f32.mrf.mxu0
        %v3337 = vadd.f32 %v1907, %v3336
        %3338 = vmatmul.bf16.gmra.mxu0 %v1763
        %v3339 = vpop.f32.mrf.mxu0
        %v3340 = vadd.f32 %v1907, %v3339
        %v3341 = vpop.f32.mrf.mxu0
        %v3342 = vadd.f32 %v1907, %v3341
        %3343 = vmatmul.bf16.gmra.mxu0 %v1767
        %v3344 = vpop.f32.mrf.mxu0
        %v3345 = vadd.f32 %v1907, %v3344
        %v3346 = vpop.f32.mrf.mxu0
        %v3347 = vadd.f32 %v1907, %v3346
        %3348 = vmatmul.bf16.gmra.mxu0 %v1771
        %v3349 = vpop.f32.mrf.mxu0
        %v3350 = vadd.f32 %v1907, %v3349
        %v3351 = vpop.f32.mrf.mxu0
        %v3352 = vadd.f32 %v1907, %v3351
        %3353 = vdwg.mxu0
        %3354 = vmatpush.bf16.msra.mxu0 %v2359
        %3355 = vmatpush.bf16.msra.mxu0 %v2355
        %3356 = vmatpush.bf16.msra.mxu0 %v2351
        %3357 = vmatpush.bf16.msra.mxu0 %v2347
        %3358 = vmatpush.bf16.msra.mxu0 %v2343
        %3359 = vmatpush.bf16.msra.mxu0 %v2339
        %3360 = vmatpush.bf16.msra.mxu0 %v2335
        %3361 = vmatpush.bf16.msra.mxu0 %v2331
        %3362 = vmatmul.bf16.gmra.mxu0 %v1712
        %v3363 = vpop.f32.mrf.mxu0
        %v3364 = vadd.f32 %v3275, %v3363
        %v3365 = vpop.f32.mrf.mxu0
        %v3366 = vadd.f32 %v3277, %v3365
        %3367 = vmatmul.bf16.gmra.mxu0 %v1716
        %v3368 = vpop.f32.mrf.mxu0
        %v3369 = vadd.f32 %v3280, %v3368
        %v3370 = vpop.f32.mrf.mxu0
        %v3371 = vadd.f32 %v3282, %v3370
        %3372 = vmatmul.bf16.gmra.mxu0 %v1720
        %v3373 = vpop.f32.mrf.mxu0
        %v3374 = vadd.f32 %v3285, %v3373
        %v3375 = vpop.f32.mrf.mxu0
        %v3376 = vadd.f32 %v3287, %v3375
        %3377 = vmatmul.bf16.gmra.mxu0 %v1724
        %v3378 = vpop.f32.mrf.mxu0
        %v3379 = vadd.f32 %v3290, %v3378
        %v3380 = vpop.f32.mrf.mxu0
        %v3381 = vadd.f32 %v3292, %v3380
        %3382 = vmatmul.bf16.gmra.mxu0 %v1728
        %v3383 = vpop.f32.mrf.mxu0
        %v3384 = vadd.f32 %v3295, %v3383
        %v3385 = vpop.f32.mrf.mxu0
        %v3386 = vadd.f32 %v3297, %v3385
        %3387 = vmatmul.bf16.gmra.mxu0 %v1732
        %v3388 = vpop.f32.mrf.mxu0
        %v3389 = vadd.f32 %v3300, %v3388
        %v3390 = vpop.f32.mrf.mxu0
        %v3391 = vadd.f32 %v3302, %v3390
        %3392 = vmatmul.bf16.gmra.mxu0 %v1736
        %v3393 = vpop.f32.mrf.mxu0
        %v3394 = vadd.f32 %v3305, %v3393
        %v3395 = vpop.f32.mrf.mxu0
        %v3396 = vadd.f32 %v3307, %v3395
        %3397 = vmatmul.bf16.gmra.mxu0 %v1740
        %v3398 = vpop.f32.mrf.mxu0
        %v3399 = vadd.f32 %v3310, %v3398
        %v3400 = vpop.f32.mrf.mxu0
        %v3401 = vadd.f32 %v3312, %v3400
        %3402 = vmatmul.bf16.gmra.mxu0 %v1744
        %v3403 = vpop.f32.mrf.mxu0
        %v3404 = vadd.f32 %v3315, %v3403
        %v3405 = vpop.f32.mrf.mxu0
        %v3406 = vadd.f32 %v3317, %v3405
        %3407 = vmatmul.bf16.gmra.mxu0 %v1748
        %v3408 = vpop.f32.mrf.mxu0
        %v3409 = vadd.f32 %v3320, %v3408
        %v3410 = vpop.f32.mrf.mxu0
        %v3411 = vadd.f32 %v3322, %v3410
        %3412 = vmatmul.bf16.gmra.mxu0 %v1752
        %v3413 = vpop.f32.mrf.mxu0
        %v3414 = vadd.f32 %v3325, %v3413
        %v3415 = vpop.f32.mrf.mxu0
        %v3416 = vadd.f32 %v3327, %v3415
        %3417 = vmatmul.bf16.gmra.mxu0 %v1756
        %v3418 = vpop.f32.mrf.mxu0
        %v3419 = vadd.f32 %v3330, %v3418
        %v3420 = vpop.f32.mrf.mxu0
        %v3421 = vadd.f32 %v3332, %v3420
        %3422 = vmatmul.bf16.gmra.mxu0 %v1760
        %v3423 = vpop.f32.mrf.mxu0
        %v3424 = vadd.f32 %v3335, %v3423
        %v3425 = vpop.f32.mrf.mxu0
        %v3426 = vadd.f32 %v3337, %v3425
        %3427 = vmatmul.bf16.gmra.mxu0 %v1764
        %v3428 = vpop.f32.mrf.mxu0
        %v3429 = vadd.f32 %v3340, %v3428
        %v3430 = vpop.f32.mrf.mxu0
        %v3431 = vadd.f32 %v3342, %v3430
        %3432 = vmatmul.bf16.gmra.mxu0 %v1768
        %v3433 = vpop.f32.mrf.mxu0
        %v3434 = vadd.f32 %v3345, %v3433
        %v3435 = vpop.f32.mrf.mxu0
        %v3436 = vadd.f32 %v3347, %v3435
        %3437 = vmatmul.bf16.gmra.mxu0 %v1772
        %v3438 = vpop.f32.mrf.mxu0
        %v3439 = vadd.f32 %v3350, %v3438
        %v3440 = vpop.f32.mrf.mxu0
        %v3441 = vadd.f32 %v3352, %v3440
        %3442 = vdwg.mxu0
        %3443 = vmatpush.bf16.msra.mxu0 %v2391
        %3444 = vmatpush.bf16.msra.mxu0 %v2387
        %3445 = vmatpush.bf16.msra.mxu0 %v2383
        %3446 = vmatpush.bf16.msra.mxu0 %v2379
        %3447 = vmatpush.bf16.msra.mxu0 %v2375
        %3448 = vmatpush.bf16.msra.mxu0 %v2371
        %3449 = vmatpush.bf16.msra.mxu0 %v2367
        %3450 = vmatpush.bf16.msra.mxu0 %v2363
        %3451 = vmatmul.bf16.gmra.mxu0 %v1713
        %v3452 = vpop.f32.mrf.mxu0
        %v3453 = vadd.f32 %v3364, %v3452
        %v3454 = vpop.f32.mrf.mxu0
        %v3455 = vadd.f32 %v3366, %v3454
        %3456 = vmatmul.bf16.gmra.mxu0 %v1717
        %v3457 = vpop.f32.mrf.mxu0
        %v3458 = vadd.f32 %v3369, %v3457
        %v3459 = vpop.f32.mrf.mxu0
        %v3460 = vadd.f32 %v3371, %v3459
        %3461 = vmatmul.bf16.gmra.mxu0 %v1721
        %v3462 = vpop.f32.mrf.mxu0
        %v3463 = vadd.f32 %v3374, %v3462
        %v3464 = vpop.f32.mrf.mxu0
        %v3465 = vadd.f32 %v3376, %v3464
        %3466 = vmatmul.bf16.gmra.mxu0 %v1725
        %v3467 = vpop.f32.mrf.mxu0
        %v3468 = vadd.f32 %v3379, %v3467
        %v3469 = vpop.f32.mrf.mxu0
        %v3470 = vadd.f32 %v3381, %v3469
        %3471 = vmatmul.bf16.gmra.mxu0 %v1729
        %v3472 = vpop.f32.mrf.mxu0
        %v3473 = vadd.f32 %v3384, %v3472
        %v3474 = vpop.f32.mrf.mxu0
        %v3475 = vadd.f32 %v3386, %v3474
        %3476 = vmatmul.bf16.gmra.mxu0 %v1733
        %v3477 = vpop.f32.mrf.mxu0
        %v3478 = vadd.f32 %v3389, %v3477
        %v3479 = vpop.f32.mrf.mxu0
        %v3480 = vadd.f32 %v3391, %v3479
        %3481 = vmatmul.bf16.gmra.mxu0 %v1737
        %v3482 = vpop.f32.mrf.mxu0
        %v3483 = vadd.f32 %v3394, %v3482
        %v3484 = vpop.f32.mrf.mxu0
        %v3485 = vadd.f32 %v3396, %v3484
        %3486 = vmatmul.bf16.gmra.mxu0 %v1741
        %v3487 = vpop.f32.mrf.mxu0
        %v3488 = vadd.f32 %v3399, %v3487
        %v3489 = vpop.f32.mrf.mxu0
        %v3490 = vadd.f32 %v3401, %v3489
        %3491 = vmatmul.bf16.gmra.mxu0 %v1745
        %v3492 = vpop.f32.mrf.mxu0
        %v3493 = vadd.f32 %v3404, %v3492
        %v3494 = vpop.f32.mrf.mxu0
        %v3495 = vadd.f32 %v3406, %v3494
        %3496 = vmatmul.bf16.gmra.mxu0 %v1749
        %v3497 = vpop.f32.mrf.mxu0
        %v3498 = vadd.f32 %v3409, %v3497
        %v3499 = vpop.f32.mrf.mxu0
        %v3500 = vadd.f32 %v3411, %v3499
        %3501 = vmatmul.bf16.gmra.mxu0 %v1753
        %v3502 = vpop.f32.mrf.mxu0
        %v3503 = vadd.f32 %v3414, %v3502
        %v3504 = vpop.f32.mrf.mxu0
        %v3505 = vadd.f32 %v3416, %v3504
        %3506 = vmatmul.bf16.gmra.mxu0 %v1757
        %v3507 = vpop.f32.mrf.mxu0
        %v3508 = vadd.f32 %v3419, %v3507
        %v3509 = vpop.f32.mrf.mxu0
        %v3510 = vadd.f32 %v3421, %v3509
        %3511 = vmatmul.bf16.gmra.mxu0 %v1761
        %v3512 = vpop.f32.mrf.mxu0
        %v3513 = vadd.f32 %v3424, %v3512
        %v3514 = vpop.f32.mrf.mxu0
        %v3515 = vadd.f32 %v3426, %v3514
        %3516 = vmatmul.bf16.gmra.mxu0 %v1765
        %v3517 = vpop.f32.mrf.mxu0
        %v3518 = vadd.f32 %v3429, %v3517
        %v3519 = vpop.f32.mrf.mxu0
        %v3520 = vadd.f32 %v3431, %v3519
        %3521 = vmatmul.bf16.gmra.mxu0 %v1769
        %v3522 = vpop.f32.mrf.mxu0
        %v3523 = vadd.f32 %v3434, %v3522
        %v3524 = vpop.f32.mrf.mxu0
        %v3525 = vadd.f32 %v3436, %v3524
        %3526 = vmatmul.bf16.gmra.mxu0 %v1773
        %v3527 = vpop.f32.mrf.mxu0
        %v3528 = vadd.f32 %v3439, %v3527
        %v3529 = vpop.f32.mrf.mxu0
        %v3530 = vadd.f32 %v3441, %v3529
        %3531 = vdwg.mxu0
        %3532 = vmatpush.bf16.msra.mxu0 %v2423
        %3533 = vmatpush.bf16.msra.mxu0 %v2419
        %3534 = vmatpush.bf16.msra.mxu0 %v2415
        %3535 = vmatpush.bf16.msra.mxu0 %v2411
        %3536 = vmatpush.bf16.msra.mxu0 %v2407
        %3537 = vmatpush.bf16.msra.mxu0 %v2403
        %3538 = vmatpush.bf16.msra.mxu0 %v2399
        %3539 = vmatpush.bf16.msra.mxu0 %v2395
        %3540 = vmatmul.bf16.gmra.mxu0 %v1714
        %v3541 = vpop.f32.mrf.mxu0
        %v3542 = vadd.f32 %v3453, %v3541
        %v3543 = vpop.f32.mrf.mxu0
        %v3544 = vadd.f32 %v3455, %v3543
        %3545 = vmatmul.bf16.gmra.mxu0 %v1718
        %v3546 = vpop.f32.mrf.mxu0
        %v3547 = vadd.f32 %v3458, %v3546
        %v3548 = vpop.f32.mrf.mxu0
        %v3549 = vadd.f32 %v3460, %v3548
        %3550 = vmatmul.bf16.gmra.mxu0 %v1722
        %v3551 = vpop.f32.mrf.mxu0
        %v3552 = vadd.f32 %v3463, %v3551
        %v3553 = vpop.f32.mrf.mxu0
        %v3554 = vadd.f32 %v3465, %v3553
        %3555 = vmatmul.bf16.gmra.mxu0 %v1726
        %v3556 = vpop.f32.mrf.mxu0
        %v3557 = vadd.f32 %v3468, %v3556
        %v3558 = vpop.f32.mrf.mxu0
        %v3559 = vadd.f32 %v3470, %v3558
        %3560 = vmatmul.bf16.gmra.mxu0 %v1730
        %v3561 = vpop.f32.mrf.mxu0
        %v3562 = vadd.f32 %v3473, %v3561
        %v3563 = vpop.f32.mrf.mxu0
        %v3564 = vadd.f32 %v3475, %v3563
        %3565 = vmatmul.bf16.gmra.mxu0 %v1734
        %v3566 = vpop.f32.mrf.mxu0
        %v3567 = vadd.f32 %v3478, %v3566
        %v3568 = vpop.f32.mrf.mxu0
        %v3569 = vadd.f32 %v3480, %v3568
        %3570 = vmatmul.bf16.gmra.mxu0 %v1738
        %v3571 = vpop.f32.mrf.mxu0
        %v3572 = vadd.f32 %v3483, %v3571
        %v3573 = vpop.f32.mrf.mxu0
        %v3574 = vadd.f32 %v3485, %v3573
        %3575 = vmatmul.bf16.gmra.mxu0 %v1742
        %v3576 = vpop.f32.mrf.mxu0
        %v3577 = vadd.f32 %v3488, %v3576
        %v3578 = vpop.f32.mrf.mxu0
        %v3579 = vadd.f32 %v3490, %v3578
        %3580 = vmatmul.bf16.gmra.mxu0 %v1746
        %v3581 = vpop.f32.mrf.mxu0
        %v3582 = vadd.f32 %v3493, %v3581
        %v3583 = vpop.f32.mrf.mxu0
        %v3584 = vadd.f32 %v3495, %v3583
        %3585 = vmatmul.bf16.gmra.mxu0 %v1750
        %v3586 = vpop.f32.mrf.mxu0
        %v3587 = vadd.f32 %v3498, %v3586
        %v3588 = vpop.f32.mrf.mxu0
        %v3589 = vadd.f32 %v3500, %v3588
        %3590 = vmatmul.bf16.gmra.mxu0 %v1754
        %v3591 = vpop.f32.mrf.mxu0
        %v3592 = vadd.f32 %v3503, %v3591
        %v3593 = vpop.f32.mrf.mxu0
        %v3594 = vadd.f32 %v3505, %v3593
        %3595 = vmatmul.bf16.gmra.mxu0 %v1758
        %v3596 = vpop.f32.mrf.mxu0
        %v3597 = vadd.f32 %v3508, %v3596
        %v3598 = vpop.f32.mrf.mxu0
        %v3599 = vadd.f32 %v3510, %v3598
        %3600 = vmatmul.bf16.gmra.mxu0 %v1762
        %v3601 = vpop.f32.mrf.mxu0
        %v3602 = vadd.f32 %v3513, %v3601
        %v3603 = vpop.f32.mrf.mxu0
        %v3604 = vadd.f32 %v3515, %v3603
        %3605 = vmatmul.bf16.gmra.mxu0 %v1766
        %v3606 = vpop.f32.mrf.mxu0
        %v3607 = vadd.f32 %v3518, %v3606
        %v3608 = vpop.f32.mrf.mxu0
        %v3609 = vadd.f32 %v3520, %v3608
        %3610 = vmatmul.bf16.gmra.mxu0 %v1770
        %v3611 = vpop.f32.mrf.mxu0
        %v3612 = vadd.f32 %v3523, %v3611
        %v3613 = vpop.f32.mrf.mxu0
        %v3614 = vadd.f32 %v3525, %v3613
        %3615 = vmatmul.bf16.gmra.mxu0 %v1774
        %v3616 = vpop.f32.mrf.mxu0
        %v3617 = vadd.f32 %v3528, %v3616
        %v3618 = vpop.f32.mrf.mxu0
        %v3619 = vadd.f32 %v3530, %v3618
        %3620 = vdwg.mxu0
        %3621 = vmatpush.bf16.msra.mxu0 %v2328
        %3622 = vmatpush.bf16.msra.mxu0 %v2324
        %3623 = vmatpush.bf16.msra.mxu0 %v2320
        %3624 = vmatpush.bf16.msra.mxu0 %v2316
        %3625 = vmatpush.bf16.msra.mxu0 %v2312
        %3626 = vmatpush.bf16.msra.mxu0 %v2308
        %3627 = vmatpush.bf16.msra.mxu0 %v2304
        %3628 = vmatpush.bf16.msra.mxu0 %v2300
        %3629 = vmatmul.bf16.gmra.mxu0 %v1711
        %v3630 = vpop.f32.mrf.mxu0
        %v3631 = vadd.f32 %v1908, %v3630
        %v3632 = vpop.f32.mrf.mxu0
        %v3633 = vadd.f32 %v1908, %v3632
        %3634 = vmatmul.bf16.gmra.mxu0 %v1715
        %v3635 = vpop.f32.mrf.mxu0
        %v3636 = vadd.f32 %v1908, %v3635
        %v3637 = vpop.f32.mrf.mxu0
        %v3638 = vadd.f32 %v1908, %v3637
        %3639 = vmatmul.bf16.gmra.mxu0 %v1719
        %v3640 = vpop.f32.mrf.mxu0
        %v3641 = vadd.f32 %v1908, %v3640
        %v3642 = vpop.f32.mrf.mxu0
        %v3643 = vadd.f32 %v1908, %v3642
        %3644 = vmatmul.bf16.gmra.mxu0 %v1723
        %v3645 = vpop.f32.mrf.mxu0
        %v3646 = vadd.f32 %v1908, %v3645
        %v3647 = vpop.f32.mrf.mxu0
        %v3648 = vadd.f32 %v1908, %v3647
        %3649 = vmatmul.bf16.gmra.mxu0 %v1727
        %v3650 = vpop.f32.mrf.mxu0
        %v3651 = vadd.f32 %v1908, %v3650
        %v3652 = vpop.f32.mrf.mxu0
        %v3653 = vadd.f32 %v1908, %v3652
        %3654 = vmatmul.bf16.gmra.mxu0 %v1731
        %v3655 = vpop.f32.mrf.mxu0
        %v3656 = vadd.f32 %v1908, %v3655
        %v3657 = vpop.f32.mrf.mxu0
        %v3658 = vadd.f32 %v1908, %v3657
        %3659 = vmatmul.bf16.gmra.mxu0 %v1735
        %v3660 = vpop.f32.mrf.mxu0
        %v3661 = vadd.f32 %v1908, %v3660
        %v3662 = vpop.f32.mrf.mxu0
        %v3663 = vadd.f32 %v1908, %v3662
        %3664 = vmatmul.bf16.gmra.mxu0 %v1739
        %v3665 = vpop.f32.mrf.mxu0
        %v3666 = vadd.f32 %v1908, %v3665
        %v3667 = vpop.f32.mrf.mxu0
        %v3668 = vadd.f32 %v1908, %v3667
        %3669 = vmatmul.bf16.gmra.mxu0 %v1743
        %v3670 = vpop.f32.mrf.mxu0
        %v3671 = vadd.f32 %v1908, %v3670
        %v3672 = vpop.f32.mrf.mxu0
        %v3673 = vadd.f32 %v1908, %v3672
        %3674 = vmatmul.bf16.gmra.mxu0 %v1747
        %v3675 = vpop.f32.mrf.mxu0
        %v3676 = vadd.f32 %v1908, %v3675
        %v3677 = vpop.f32.mrf.mxu0
        %v3678 = vadd.f32 %v1908, %v3677
        %3679 = vmatmul.bf16.gmra.mxu0 %v1751
        %v3680 = vpop.f32.mrf.mxu0
        %v3681 = vadd.f32 %v1908, %v3680
        %v3682 = vpop.f32.mrf.mxu0
        %v3683 = vadd.f32 %v1908, %v3682
        %3684 = vmatmul.bf16.gmra.mxu0 %v1755
        %v3685 = vpop.f32.mrf.mxu0
        %v3686 = vadd.f32 %v1908, %v3685
        %v3687 = vpop.f32.mrf.mxu0
        %v3688 = vadd.f32 %v1908, %v3687
        %3689 = vmatmul.bf16.gmra.mxu0 %v1759
        %v3690 = vpop.f32.mrf.mxu0
        %v3691 = vadd.f32 %v1908, %v3690
        %v3692 = vpop.f32.mrf.mxu0
        %v3693 = vadd.f32 %v1908, %v3692
        %3694 = vmatmul.bf16.gmra.mxu0 %v1763
        %v3695 = vpop.f32.mrf.mxu0
        %v3696 = vadd.f32 %v1908, %v3695
        %v3697 = vpop.f32.mrf.mxu0
        %v3698 = vadd.f32 %v1908, %v3697
        %3699 = vmatmul.bf16.gmra.mxu0 %v1767
        %v3700 = vpop.f32.mrf.mxu0
        %v3701 = vadd.f32 %v1908, %v3700
        %v3702 = vpop.f32.mrf.mxu0
        %v3703 = vadd.f32 %v1908, %v3702
        %3704 = vmatmul.bf16.gmra.mxu0 %v1771
        %v3705 = vpop.f32.mrf.mxu0
        %v3706 = vadd.f32 %v1908, %v3705
        %v3707 = vpop.f32.mrf.mxu0
        %v3708 = vadd.f32 %v1908, %v3707
        %3709 = vdwg.mxu0
        %3710 = vmatpush.bf16.msra.mxu0 %v2360
        %3711 = vmatpush.bf16.msra.mxu0 %v2356
        %3712 = vmatpush.bf16.msra.mxu0 %v2352
        %3713 = vmatpush.bf16.msra.mxu0 %v2348
        %3714 = vmatpush.bf16.msra.mxu0 %v2344
        %3715 = vmatpush.bf16.msra.mxu0 %v2340
        %3716 = vmatpush.bf16.msra.mxu0 %v2336
        %3717 = vmatpush.bf16.msra.mxu0 %v2332
        %3718 = vmatmul.bf16.gmra.mxu0 %v1712
        %v3719 = vpop.f32.mrf.mxu0
        %v3720 = vadd.f32 %v3631, %v3719
        %v3721 = vpop.f32.mrf.mxu0
        %v3722 = vadd.f32 %v3633, %v3721
        %3723 = vmatmul.bf16.gmra.mxu0 %v1716
        %v3724 = vpop.f32.mrf.mxu0
        %v3725 = vadd.f32 %v3636, %v3724
        %v3726 = vpop.f32.mrf.mxu0
        %v3727 = vadd.f32 %v3638, %v3726
        %3728 = vmatmul.bf16.gmra.mxu0 %v1720
        %v3729 = vpop.f32.mrf.mxu0
        %v3730 = vadd.f32 %v3641, %v3729
        %v3731 = vpop.f32.mrf.mxu0
        %v3732 = vadd.f32 %v3643, %v3731
        %3733 = vmatmul.bf16.gmra.mxu0 %v1724
        %v3734 = vpop.f32.mrf.mxu0
        %v3735 = vadd.f32 %v3646, %v3734
        %v3736 = vpop.f32.mrf.mxu0
        %v3737 = vadd.f32 %v3648, %v3736
        %3738 = vmatmul.bf16.gmra.mxu0 %v1728
        %v3739 = vpop.f32.mrf.mxu0
        %v3740 = vadd.f32 %v3651, %v3739
        %v3741 = vpop.f32.mrf.mxu0
        %v3742 = vadd.f32 %v3653, %v3741
        %3743 = vmatmul.bf16.gmra.mxu0 %v1732
        %v3744 = vpop.f32.mrf.mxu0
        %v3745 = vadd.f32 %v3656, %v3744
        %v3746 = vpop.f32.mrf.mxu0
        %v3747 = vadd.f32 %v3658, %v3746
        %3748 = vmatmul.bf16.gmra.mxu0 %v1736
        %v3749 = vpop.f32.mrf.mxu0
        %v3750 = vadd.f32 %v3661, %v3749
        %v3751 = vpop.f32.mrf.mxu0
        %v3752 = vadd.f32 %v3663, %v3751
        %3753 = vmatmul.bf16.gmra.mxu0 %v1740
        %v3754 = vpop.f32.mrf.mxu0
        %v3755 = vadd.f32 %v3666, %v3754
        %v3756 = vpop.f32.mrf.mxu0
        %v3757 = vadd.f32 %v3668, %v3756
        %3758 = vmatmul.bf16.gmra.mxu0 %v1744
        %v3759 = vpop.f32.mrf.mxu0
        %v3760 = vadd.f32 %v3671, %v3759
        %v3761 = vpop.f32.mrf.mxu0
        %v3762 = vadd.f32 %v3673, %v3761
        %3763 = vmatmul.bf16.gmra.mxu0 %v1748
        %v3764 = vpop.f32.mrf.mxu0
        %v3765 = vadd.f32 %v3676, %v3764
        %v3766 = vpop.f32.mrf.mxu0
        %v3767 = vadd.f32 %v3678, %v3766
        %3768 = vmatmul.bf16.gmra.mxu0 %v1752
        %v3769 = vpop.f32.mrf.mxu0
        %v3770 = vadd.f32 %v3681, %v3769
        %v3771 = vpop.f32.mrf.mxu0
        %v3772 = vadd.f32 %v3683, %v3771
        %3773 = vmatmul.bf16.gmra.mxu0 %v1756
        %v3774 = vpop.f32.mrf.mxu0
        %v3775 = vadd.f32 %v3686, %v3774
        %v3776 = vpop.f32.mrf.mxu0
        %v3777 = vadd.f32 %v3688, %v3776
        %3778 = vmatmul.bf16.gmra.mxu0 %v1760
        %v3779 = vpop.f32.mrf.mxu0
        %v3780 = vadd.f32 %v3691, %v3779
        %v3781 = vpop.f32.mrf.mxu0
        %v3782 = vadd.f32 %v3693, %v3781
        %3783 = vmatmul.bf16.gmra.mxu0 %v1764
        %v3784 = vpop.f32.mrf.mxu0
        %v3785 = vadd.f32 %v3696, %v3784
        %v3786 = vpop.f32.mrf.mxu0
        %v3787 = vadd.f32 %v3698, %v3786
        %3788 = vmatmul.bf16.gmra.mxu0 %v1768
        %v3789 = vpop.f32.mrf.mxu0
        %v3790 = vadd.f32 %v3701, %v3789
        %v3791 = vpop.f32.mrf.mxu0
        %v3792 = vadd.f32 %v3703, %v3791
        %3793 = vmatmul.bf16.gmra.mxu0 %v1772
        %v3794 = vpop.f32.mrf.mxu0
        %v3795 = vadd.f32 %v3706, %v3794
        %v3796 = vpop.f32.mrf.mxu0
        %v3797 = vadd.f32 %v3708, %v3796
        %3798 = vdwg.mxu0
        %3799 = vmatpush.bf16.msra.mxu0 %v2392
        %3800 = vmatpush.bf16.msra.mxu0 %v2388
        %3801 = vmatpush.bf16.msra.mxu0 %v2384
        %3802 = vmatpush.bf16.msra.mxu0 %v2380
        %3803 = vmatpush.bf16.msra.mxu0 %v2376
        %3804 = vmatpush.bf16.msra.mxu0 %v2372
        %3805 = vmatpush.bf16.msra.mxu0 %v2368
        %3806 = vmatpush.bf16.msra.mxu0 %v2364
        %3807 = vmatmul.bf16.gmra.mxu0 %v1713
        %v3808 = vpop.f32.mrf.mxu0
        %v3809 = vadd.f32 %v3720, %v3808
        %v3810 = vpop.f32.mrf.mxu0
        %v3811 = vadd.f32 %v3722, %v3810
        %3812 = vmatmul.bf16.gmra.mxu0 %v1717
        %v3813 = vpop.f32.mrf.mxu0
        %v3814 = vadd.f32 %v3725, %v3813
        %v3815 = vpop.f32.mrf.mxu0
        %v3816 = vadd.f32 %v3727, %v3815
        %3817 = vmatmul.bf16.gmra.mxu0 %v1721
        %v3818 = vpop.f32.mrf.mxu0
        %v3819 = vadd.f32 %v3730, %v3818
        %v3820 = vpop.f32.mrf.mxu0
        %v3821 = vadd.f32 %v3732, %v3820
        %3822 = vmatmul.bf16.gmra.mxu0 %v1725
        %v3823 = vpop.f32.mrf.mxu0
        %v3824 = vadd.f32 %v3735, %v3823
        %v3825 = vpop.f32.mrf.mxu0
        %v3826 = vadd.f32 %v3737, %v3825
        %3827 = vmatmul.bf16.gmra.mxu0 %v1729
        %v3828 = vpop.f32.mrf.mxu0
        %v3829 = vadd.f32 %v3740, %v3828
        %v3830 = vpop.f32.mrf.mxu0
        %v3831 = vadd.f32 %v3742, %v3830
        %3832 = vmatmul.bf16.gmra.mxu0 %v1733
        %v3833 = vpop.f32.mrf.mxu0
        %v3834 = vadd.f32 %v3745, %v3833
        %v3835 = vpop.f32.mrf.mxu0
        %v3836 = vadd.f32 %v3747, %v3835
        %3837 = vmatmul.bf16.gmra.mxu0 %v1737
        %v3838 = vpop.f32.mrf.mxu0
        %v3839 = vadd.f32 %v3750, %v3838
        %v3840 = vpop.f32.mrf.mxu0
        %v3841 = vadd.f32 %v3752, %v3840
        %3842 = vmatmul.bf16.gmra.mxu0 %v1741
        %v3843 = vpop.f32.mrf.mxu0
        %v3844 = vadd.f32 %v3755, %v3843
        %v3845 = vpop.f32.mrf.mxu0
        %v3846 = vadd.f32 %v3757, %v3845
        %3847 = vmatmul.bf16.gmra.mxu0 %v1745
        %v3848 = vpop.f32.mrf.mxu0
        %v3849 = vadd.f32 %v3760, %v3848
        %v3850 = vpop.f32.mrf.mxu0
        %v3851 = vadd.f32 %v3762, %v3850
        %3852 = vmatmul.bf16.gmra.mxu0 %v1749
        %v3853 = vpop.f32.mrf.mxu0
        %v3854 = vadd.f32 %v3765, %v3853
        %v3855 = vpop.f32.mrf.mxu0
        %v3856 = vadd.f32 %v3767, %v3855
        %3857 = vmatmul.bf16.gmra.mxu0 %v1753
        %v3858 = vpop.f32.mrf.mxu0
        %v3859 = vadd.f32 %v3770, %v3858
        %v3860 = vpop.f32.mrf.mxu0
        %v3861 = vadd.f32 %v3772, %v3860
        %3862 = vmatmul.bf16.gmra.mxu0 %v1757
        %v3863 = vpop.f32.mrf.mxu0
        %v3864 = vadd.f32 %v3775, %v3863
        %v3865 = vpop.f32.mrf.mxu0
        %v3866 = vadd.f32 %v3777, %v3865
        %3867 = vmatmul.bf16.gmra.mxu0 %v1761
        %v3868 = vpop.f32.mrf.mxu0
        %v3869 = vadd.f32 %v3780, %v3868
        %v3870 = vpop.f32.mrf.mxu0
        %v3871 = vadd.f32 %v3782, %v3870
        %3872 = vmatmul.bf16.gmra.mxu0 %v1765
        %v3873 = vpop.f32.mrf.mxu0
        %v3874 = vadd.f32 %v3785, %v3873
        %v3875 = vpop.f32.mrf.mxu0
        %v3876 = vadd.f32 %v3787, %v3875
        %3877 = vmatmul.bf16.gmra.mxu0 %v1769
        %v3878 = vpop.f32.mrf.mxu0
        %v3879 = vadd.f32 %v3790, %v3878
        %v3880 = vpop.f32.mrf.mxu0
        %v3881 = vadd.f32 %v3792, %v3880
        %3882 = vmatmul.bf16.gmra.mxu0 %v1773
        %v3883 = vpop.f32.mrf.mxu0
        %v3884 = vadd.f32 %v3795, %v3883
        %v3885 = vpop.f32.mrf.mxu0
        %v3886 = vadd.f32 %v3797, %v3885
        %3887 = vdwg.mxu0
        %3888 = vmatpush.bf16.msra.mxu0 %v2424
        %3889 = vmatpush.bf16.msra.mxu0 %v2420
        %3890 = vmatpush.bf16.msra.mxu0 %v2416
        %3891 = vmatpush.bf16.msra.mxu0 %v2412
        %3892 = vmatpush.bf16.msra.mxu0 %v2408
        %3893 = vmatpush.bf16.msra.mxu0 %v2404
        %3894 = vmatpush.bf16.msra.mxu0 %v2400
        %3895 = vmatpush.bf16.msra.mxu0 %v2396
        %3896 = vmatmul.bf16.gmra.mxu0 %v1714
        %v3897 = vpop.f32.mrf.mxu0
        %v3898 = vadd.f32 %v3809, %v3897
        %v3899 = vpop.f32.mrf.mxu0
        %v3900 = vadd.f32 %v3811, %v3899
        %3901 = vmatmul.bf16.gmra.mxu0 %v1718
        %v3902 = vpop.f32.mrf.mxu0
        %v3903 = vadd.f32 %v3814, %v3902
        %v3904 = vpop.f32.mrf.mxu0
        %v3905 = vadd.f32 %v3816, %v3904
        %3906 = vmatmul.bf16.gmra.mxu0 %v1722
        %v3907 = vpop.f32.mrf.mxu0
        %v3908 = vadd.f32 %v3819, %v3907
        %v3909 = vpop.f32.mrf.mxu0
        %v3910 = vadd.f32 %v3821, %v3909
        %3911 = vmatmul.bf16.gmra.mxu0 %v1726
        %v3912 = vpop.f32.mrf.mxu0
        %v3913 = vadd.f32 %v3824, %v3912
        %v3914 = vpop.f32.mrf.mxu0
        %v3915 = vadd.f32 %v3826, %v3914
        %3916 = vmatmul.bf16.gmra.mxu0 %v1730
        %v3917 = vpop.f32.mrf.mxu0
        %v3918 = vadd.f32 %v3829, %v3917
        %v3919 = vpop.f32.mrf.mxu0
        %v3920 = vadd.f32 %v3831, %v3919
        %3921 = vmatmul.bf16.gmra.mxu0 %v1734
        %v3922 = vpop.f32.mrf.mxu0
        %v3923 = vadd.f32 %v3834, %v3922
        %v3924 = vpop.f32.mrf.mxu0
        %v3925 = vadd.f32 %v3836, %v3924
        %3926 = vmatmul.bf16.gmra.mxu0 %v1738
        %v3927 = vpop.f32.mrf.mxu0
        %v3928 = vadd.f32 %v3839, %v3927
        %v3929 = vpop.f32.mrf.mxu0
        %v3930 = vadd.f32 %v3841, %v3929
        %3931 = vmatmul.bf16.gmra.mxu0 %v1742
        %v3932 = vpop.f32.mrf.mxu0
        %v3933 = vadd.f32 %v3844, %v3932
        %v3934 = vpop.f32.mrf.mxu0
        %v3935 = vadd.f32 %v3846, %v3934
        %3936 = vmatmul.bf16.gmra.mxu0 %v1746
        %v3937 = vpop.f32.mrf.mxu0
        %v3938 = vadd.f32 %v3849, %v3937
        %v3939 = vpop.f32.mrf.mxu0
        %v3940 = vadd.f32 %v3851, %v3939
        %3941 = vmatmul.bf16.gmra.mxu0 %v1750
        %v3942 = vpop.f32.mrf.mxu0
        %v3943 = vadd.f32 %v3854, %v3942
        %v3944 = vpop.f32.mrf.mxu0
        %v3945 = vadd.f32 %v3856, %v3944
        %3946 = vmatmul.bf16.gmra.mxu0 %v1754
        %v3947 = vpop.f32.mrf.mxu0
        %v3948 = vadd.f32 %v3859, %v3947
        %v3949 = vpop.f32.mrf.mxu0
        %v3950 = vadd.f32 %v3861, %v3949
        %3951 = vmatmul.bf16.gmra.mxu0 %v1758
        %v3952 = vpop.f32.mrf.mxu0
        %v3953 = vadd.f32 %v3864, %v3952
        %v3954 = vpop.f32.mrf.mxu0
        %v3955 = vadd.f32 %v3866, %v3954
        %3956 = vmatmul.bf16.gmra.mxu0 %v1762
        %v3957 = vpop.f32.mrf.mxu0
        %v3958 = vadd.f32 %v3869, %v3957
        %v3959 = vpop.f32.mrf.mxu0
        %v3960 = vadd.f32 %v3871, %v3959
        %3961 = vmatmul.bf16.gmra.mxu0 %v1766
        %v3962 = vpop.f32.mrf.mxu0
        %v3963 = vadd.f32 %v3874, %v3962
        %v3964 = vpop.f32.mrf.mxu0
        %v3965 = vadd.f32 %v3876, %v3964
        %3966 = vmatmul.bf16.gmra.mxu0 %v1770
        %v3967 = vpop.f32.mrf.mxu0
        %v3968 = vadd.f32 %v3879, %v3967
        %v3969 = vpop.f32.mrf.mxu0
        %v3970 = vadd.f32 %v3881, %v3969
        %3971 = vmatmul.bf16.gmra.mxu0 %v1774
        %v3972 = vpop.f32.mrf.mxu0
        %v3973 = vadd.f32 %v3884, %v3972
        %v3974 = vpop.f32.mrf.mxu0
        %v3975 = vadd.f32 %v3886, %v3974
        %3976 = vdwg.mxu0
        %v3977 = vmax.f32 %v2830, 0.0
        %v3978 = vmax.f32 %v3186, 0.0
        %v3979 = vmax.f32 %v3542, 0.0
        %v3980 = vmax.f32 %v3898, 0.0
        %v3981 = vmax.f32 %v2832, 0.0
        %v3982 = vmax.f32 %v3188, 0.0
        %v3983 = vmax.f32 %v3544, 0.0
        %v3984 = vmax.f32 %v3900, 0.0
        %v3985 = vmax.f32 %v2835, 0.0
        %v3986 = vmax.f32 %v3191, 0.0
        %v3987 = vmax.f32 %v3547, 0.0
        %v3988 = vmax.f32 %v3903, 0.0
        %v3989 = vmax.f32 %v2837, 0.0
        %v3990 = vmax.f32 %v3193, 0.0
        %v3991 = vmax.f32 %v3549, 0.0
        %v3992 = vmax.f32 %v3905, 0.0
        %v3993 = vmax.f32 %v2840, 0.0
        %v3994 = vmax.f32 %v3196, 0.0
        %v3995 = vmax.f32 %v3552, 0.0
        %v3996 = vmax.f32 %v3908, 0.0
        %v3997 = vmax.f32 %v2842, 0.0
        %v3998 = vmax.f32 %v3198, 0.0
        %v3999 = vmax.f32 %v3554, 0.0
        %v4000 = vmax.f32 %v3910, 0.0
        %v4001 = vmax.f32 %v2845, 0.0
        %v4002 = vmax.f32 %v3201, 0.0
        %v4003 = vmax.f32 %v3557, 0.0
        %v4004 = vmax.f32 %v3913, 0.0
        %v4005 = vmax.f32 %v2847, 0.0
        %v4006 = vmax.f32 %v3203, 0.0
        %v4007 = vmax.f32 %v3559, 0.0
        %v4008 = vmax.f32 %v3915, 0.0
        %v4009 = vmax.f32 %v2850, 0.0
        %v4010 = vmax.f32 %v3206, 0.0
        %v4011 = vmax.f32 %v3562, 0.0
        %v4012 = vmax.f32 %v3918, 0.0
        %v4013 = vmax.f32 %v2852, 0.0
        %v4014 = vmax.f32 %v3208, 0.0
        %v4015 = vmax.f32 %v3564, 0.0
        %v4016 = vmax.f32 %v3920, 0.0
        %v4017 = vmax.f32 %v2855, 0.0
        %v4018 = vmax.f32 %v3211, 0.0
        %v4019 = vmax.f32 %v3567, 0.0
        %v4020 = vmax.f32 %v3923, 0.0
        %v4021 = vmax.f32 %v2857, 0.0
        %v4022 = vmax.f32 %v3213, 0.0
        %v4023 = vmax.f32 %v3569, 0.0
        %v4024 = vmax.f32 %v3925, 0.0
        %v4025 = vmax.f32 %v2860, 0.0
        %v4026 = vmax.f32 %v3216, 0.0
        %v4027 = vmax.f32 %v3572, 0.0
        %v4028 = vmax.f32 %v3928, 0.0
        %v4029 = vmax.f32 %v2862, 0.0
        %v4030 = vmax.f32 %v3218, 0.0
        %v4031 = vmax.f32 %v3574, 0.0
        %v4032 = vmax.f32 %v3930, 0.0
        %v4033 = vmax.f32 %v2865, 0.0
        %v4034 = vmax.f32 %v3221, 0.0
        %v4035 = vmax.f32 %v3577, 0.0
        %v4036 = vmax.f32 %v3933, 0.0
        %v4037 = vmax.f32 %v2867, 0.0
        %v4038 = vmax.f32 %v3223, 0.0
        %v4039 = vmax.f32 %v3579, 0.0
        %v4040 = vmax.f32 %v3935, 0.0
        %v4041 = vmax.f32 %v2870, 0.0
        %v4042 = vmax.f32 %v3226, 0.0
        %v4043 = vmax.f32 %v3582, 0.0
        %v4044 = vmax.f32 %v3938, 0.0
        %v4045 = vmax.f32 %v2872, 0.0
        %v4046 = vmax.f32 %v3228, 0.0
        %v4047 = vmax.f32 %v3584, 0.0
        %v4048 = vmax.f32 %v3940, 0.0
        %v4049 = vmax.f32 %v2875, 0.0
        %v4050 = vmax.f32 %v3231, 0.0
        %v4051 = vmax.f32 %v3587, 0.0
        %v4052 = vmax.f32 %v3943, 0.0
        %v4053 = vmax.f32 %v2877, 0.0
        %v4054 = vmax.f32 %v3233, 0.0
        %v4055 = vmax.f32 %v3589, 0.0
        %v4056 = vmax.f32 %v3945, 0.0
        %v4057 = vmax.f32 %v2880, 0.0
        %v4058 = vmax.f32 %v3236, 0.0
        %v4059 = vmax.f32 %v3592, 0.0
        %v4060 = vmax.f32 %v3948, 0.0
        %v4061 = vmax.f32 %v2882, 0.0
        %v4062 = vmax.f32 %v3238, 0.0
        %v4063 = vmax.f32 %v3594, 0.0
        %v4064 = vmax.f32 %v3950, 0.0
        %v4065 = vmax.f32 %v2885, 0.0
        %v4066 = vmax.f32 %v3241, 0.0
        %v4067 = vmax.f32 %v3597, 0.0
        %v4068 = vmax.f32 %v3953, 0.0
        %v4069 = vmax.f32 %v2887, 0.0
        %v4070 = vmax.f32 %v3243, 0.0
        %v4071 = vmax.f32 %v3599, 0.0
        %v4072 = vmax.f32 %v3955, 0.0
        %v4073 = vmax.f32 %v2890, 0.0
        %v4074 = vmax.f32 %v3246, 0.0
        %v4075 = vmax.f32 %v3602, 0.0
        %v4076 = vmax.f32 %v3958, 0.0
        %v4077 = vmax.f32 %v2892, 0.0
        %v4078 = vmax.f32 %v3248, 0.0
        %v4079 = vmax.f32 %v3604, 0.0
        %v4080 = vmax.f32 %v3960, 0.0
        %v4081 = vmax.f32 %v2895, 0.0
        %v4082 = vmax.f32 %v3251, 0.0
        %v4083 = vmax.f32 %v3607, 0.0
        %v4084 = vmax.f32 %v3963, 0.0
        %v4085 = vmax.f32 %v2897, 0.0
        %v4086 = vmax.f32 %v3253, 0.0
        %v4087 = vmax.f32 %v3609, 0.0
        %v4088 = vmax.f32 %v3965, 0.0
        %v4089 = vmax.f32 %v2900, 0.0
        %v4090 = vmax.f32 %v3256, 0.0
        %v4091 = vmax.f32 %v3612, 0.0
        %v4092 = vmax.f32 %v3968, 0.0
        %v4093 = vmax.f32 %v2902, 0.0
        %v4094 = vmax.f32 %v3258, 0.0
        %v4095 = vmax.f32 %v3614, 0.0
        %v4096 = vmax.f32 %v3970, 0.0
        %v4097 = vmax.f32 %v2905, 0.0
        %v4098 = vmax.f32 %v3261, 0.0
        %v4099 = vmax.f32 %v3617, 0.0
        %v4100 = vmax.f32 %v3973, 0.0
        %v4101 = vmax.f32 %v2907, 0.0
        %v4102 = vmax.f32 %v3263, 0.0
        %v4103 = vmax.f32 %v3619, 0.0
        %v4104 = vmax.f32 %v3975, 0.0
        %v4105 = vpack.c.bf16 %v3981, %v3977
        %v4106 = vpack.c.bf16 %v3982, %v3978
        %v4107 = vpack.c.bf16 %v3983, %v3979
        %v4108 = vpack.c.bf16 %v3984, %v3980
        %v4109 = vpack.c.bf16 %v3989, %v3985
        %v4110 = vpack.c.bf16 %v3990, %v3986
        %v4111 = vpack.c.bf16 %v3991, %v3987
        %v4112 = vpack.c.bf16 %v3992, %v3988
        %v4113 = vpack.c.bf16 %v3997, %v3993
        %v4114 = vpack.c.bf16 %v3998, %v3994
        %v4115 = vpack.c.bf16 %v3999, %v3995
        %v4116 = vpack.c.bf16 %v4000, %v3996
        %v4117 = vpack.c.bf16 %v4005, %v4001
        %v4118 = vpack.c.bf16 %v4006, %v4002
        %v4119 = vpack.c.bf16 %v4007, %v4003
        %v4120 = vpack.c.bf16 %v4008, %v4004
        %v4121 = vpack.c.bf16 %v4013, %v4009
        %v4122 = vpack.c.bf16 %v4014, %v4010
        %v4123 = vpack.c.bf16 %v4015, %v4011
        %v4124 = vpack.c.bf16 %v4016, %v4012
        %v4125 = vpack.c.bf16 %v4021, %v4017
        %v4126 = vpack.c.bf16 %v4022, %v4018
        %v4127 = vpack.c.bf16 %v4023, %v4019
        %v4128 = vpack.c.bf16 %v4024, %v4020
        %v4129 = vpack.c.bf16 %v4029, %v4025
        %v4130 = vpack.c.bf16 %v4030, %v4026
        %v4131 = vpack.c.bf16 %v4031, %v4027
        %v4132 = vpack.c.bf16 %v4032, %v4028
        %v4133 = vpack.c.bf16 %v4037, %v4033
        %v4134 = vpack.c.bf16 %v4038, %v4034
        %v4135 = vpack.c.bf16 %v4039, %v4035
        %v4136 = vpack.c.bf16 %v4040, %v4036
        %v4137 = vpack.c.bf16 %v4045, %v4041
        %v4138 = vpack.c.bf16 %v4046, %v4042
        %v4139 = vpack.c.bf16 %v4047, %v4043
        %v4140 = vpack.c.bf16 %v4048, %v4044
        %v4141 = vpack.c.bf16 %v4053, %v4049
        %v4142 = vpack.c.bf16 %v4054, %v4050
        %v4143 = vpack.c.bf16 %v4055, %v4051
        %v4144 = vpack.c.bf16 %v4056, %v4052
        %v4145 = vpack.c.bf16 %v4061, %v4057
        %v4146 = vpack.c.bf16 %v4062, %v4058
        %v4147 = vpack.c.bf16 %v4063, %v4059
        %v4148 = vpack.c.bf16 %v4064, %v4060
        %v4149 = vpack.c.bf16 %v4069, %v4065
        %v4150 = vpack.c.bf16 %v4070, %v4066
        %v4151 = vpack.c.bf16 %v4071, %v4067
        %v4152 = vpack.c.bf16 %v4072, %v4068
        %v4153 = vpack.c.bf16 %v4077, %v4073
        %v4154 = vpack.c.bf16 %v4078, %v4074
        %v4155 = vpack.c.bf16 %v4079, %v4075
        %v4156 = vpack.c.bf16 %v4080, %v4076
        %v4157 = vpack.c.bf16 %v4085, %v4081
        %v4158 = vpack.c.bf16 %v4086, %v4082
        %v4159 = vpack.c.bf16 %v4087, %v4083
        %v4160 = vpack.c.bf16 %v4088, %v4084
        %v4161 = vpack.c.bf16 %v4093, %v4089
        %v4162 = vpack.c.bf16 %v4094, %v4090
        %v4163 = vpack.c.bf16 %v4095, %v4091
        %v4164 = vpack.c.bf16 %v4096, %v4092
        %v4165 = vpack.c.bf16 %v4101, %v4097
        %v4166 = vpack.c.bf16 %v4102, %v4098
        %v4167 = vpack.c.bf16 %v4103, %v4099
        %v4168 = vpack.c.bf16 %v4104, %v4100
        %v4169 = vld [vmem:[#allocation11] sm:$0xf]
        %v4170 = vld [vmem:[#allocation11 + $0x4] sm:$0xf]
        %v4171 = vld [vmem:[#allocation11 + $0x8] sm:$0xf]
        %v4172 = vld [vmem:[#allocation11 + $0xc] sm:$0xf]
        %v4173 = vld [vmem:[#allocation11 + $0x10] sm:$0xf]
        %v4174 = vld [vmem:[#allocation11 + $0x14] sm:$0xf]
        %v4175 = vld [vmem:[#allocation11 + $0x18] sm:$0xf]
        %v4176 = vld [vmem:[#allocation11 + $0x1c] sm:$0xf]
        %v4177 = vld [vmem:[#allocation11 + $0x20] sm:$0xf]
        %v4178 = vld [vmem:[#allocation11 + $0x24] sm:$0xf]
        %v4179 = vld [vmem:[#allocation11 + $0x28] sm:$0xf]
        %v4180 = vld [vmem:[#allocation11 + $0x2c] sm:$0xf]
        %v4181 = vld [vmem:[#allocation11 + $0x30] sm:$0xf]
        %v4182 = vld [vmem:[#allocation11 + $0x34] sm:$0xf]
        %v4183 = vld [vmem:[#allocation11 + $0x38] sm:$0xf]
        %v4184 = vld [vmem:[#allocation11 + $0x3c] sm:$0xf]
        %v4185 = vld [vmem:[#allocation11 + $0x40] sm:$0xf]
        %v4186 = vld [vmem:[#allocation11 + $0x44] sm:$0xf]
        %v4187 = vld [vmem:[#allocation11 + $0x48] sm:$0xf]
        %v4188 = vld [vmem:[#allocation11 + $0x4c] sm:$0xf]
        %v4189 = vld [vmem:[#allocation11 + $0x50] sm:$0xf]
        %v4190 = vld [vmem:[#allocation11 + $0x54] sm:$0xf]
        %v4191 = vld [vmem:[#allocation11 + $0x58] sm:$0xf]
        %v4192 = vld [vmem:[#allocation11 + $0x5c] sm:$0xf]
        %v4193 = vld [vmem:[#allocation11 + $0x60] sm:$0xf]
        %v4194 = vld [vmem:[#allocation11 + $0x64] sm:$0xf]
        %v4195 = vld [vmem:[#allocation11 + $0x68] sm:$0xf]
        %v4196 = vld [vmem:[#allocation11 + $0x6c] sm:$0xf]
        %v4197 = vld [vmem:[#allocation11 + $0x70] sm:$0xf]
        %v4198 = vld [vmem:[#allocation11 + $0x74] sm:$0xf]
        %v4199 = vld [vmem:[#allocation11 + $0x78] sm:$0xf]
        %v4200 = vld [vmem:[#allocation11 + $0x7c] sm:$0xf]
        %v4201 = vld [vmem:[#allocation11 + $0x80] sm:$0xf]
        %v4202 = vld [vmem:[#allocation11 + $0x84] sm:$0xf]
        %v4203 = vld [vmem:[#allocation11 + $0x88] sm:$0xf]
        %v4204 = vld [vmem:[#allocation11 + $0x8c] sm:$0xf]
        %v4205 = vld [vmem:[#allocation11 + $0x90] sm:$0xf]
        %v4206 = vld [vmem:[#allocation11 + $0x94] sm:$0xf]
        %v4207 = vld [vmem:[#allocation11 + $0x98] sm:$0xf]
        %v4208 = vld [vmem:[#allocation11 + $0x9c] sm:$0xf]
        %v4209 = vld [vmem:[#allocation11 + $0xa0] sm:$0xf]
        %v4210 = vld [vmem:[#allocation11 + $0xa4] sm:$0xf]
        %v4211 = vld [vmem:[#allocation11 + $0xa8] sm:$0xf]
        %v4212 = vld [vmem:[#allocation11 + $0xac] sm:$0xf]
        %v4213 = vld [vmem:[#allocation11 + $0xb0] sm:$0xf]
        %v4214 = vld [vmem:[#allocation11 + $0xb4] sm:$0xf]
        %v4215 = vld [vmem:[#allocation11 + $0xb8] sm:$0xf]
        %v4216 = vld [vmem:[#allocation11 + $0xbc] sm:$0xf]
        %v4217 = vld [vmem:[#allocation11 + $0xc0] sm:$0xf]
        %v4218 = vld [vmem:[#allocation11 + $0xc4] sm:$0xf]
        %v4219 = vld [vmem:[#allocation11 + $0xc8] sm:$0xf]
        %v4220 = vld [vmem:[#allocation11 + $0xcc] sm:$0xf]
        %v4221 = vld [vmem:[#allocation11 + $0xd0] sm:$0xf]
        %v4222 = vld [vmem:[#allocation11 + $0xd4] sm:$0xf]
        %v4223 = vld [vmem:[#allocation11 + $0xd8] sm:$0xf]
        %v4224 = vld [vmem:[#allocation11 + $0xdc] sm:$0xf]
        %v4225 = vld [vmem:[#allocation11 + $0xe0] sm:$0xf]
        %v4226 = vld [vmem:[#allocation11 + $0xe4] sm:$0xf]
        %v4227 = vld [vmem:[#allocation11 + $0xe8] sm:$0xf]
        %v4228 = vld [vmem:[#allocation11 + $0xec] sm:$0xf]
        %v4229 = vld [vmem:[#allocation11 + $0xf0] sm:$0xf]
        %v4230 = vld [vmem:[#allocation11 + $0xf4] sm:$0xf]
        %v4231 = vld [vmem:[#allocation11 + $0xf8] sm:$0xf]
        %v4232 = vld [vmem:[#allocation11 + $0xfc] sm:$0xf]
        %v4233 = vld [vmem:[%s6] sm:$0x1]
        %v4235 = vperm.slane %v4233, 0
        %v4301 = vunpack.c.l.b16 %v4169
        %v4302 = vunpack.c.l.b16 %v4170
        %v4303 = vunpack.c.l.b16 %v4171
        %v4304 = vunpack.c.l.b16 %v4172
        %v4305 = vunpack.c.l.b16 %v4173
        %v4306 = vunpack.c.l.b16 %v4174
        %v4307 = vunpack.c.l.b16 %v4175
        %v4308 = vunpack.c.l.b16 %v4176
        %v4309 = vunpack.c.l.b16 %v4177
        %v4310 = vunpack.c.l.b16 %v4178
        %v4311 = vunpack.c.l.b16 %v4179
        %v4312 = vunpack.c.l.b16 %v4180
        %v4313 = vunpack.c.l.b16 %v4181
        %v4314 = vunpack.c.l.b16 %v4182
        %v4315 = vunpack.c.l.b16 %v4183
        %v4316 = vunpack.c.l.b16 %v4184
        %v4317 = vunpack.c.l.b16 %v4185
        %v4318 = vunpack.c.l.b16 %v4186
        %v4319 = vunpack.c.l.b16 %v4187
        %v4320 = vunpack.c.l.b16 %v4188
        %v4321 = vunpack.c.l.b16 %v4189
        %v4322 = vunpack.c.l.b16 %v4190
        %v4323 = vunpack.c.l.b16 %v4191
        %v4324 = vunpack.c.l.b16 %v4192
        %v4325 = vunpack.c.l.b16 %v4193
        %v4326 = vunpack.c.l.b16 %v4194
        %v4327 = vunpack.c.l.b16 %v4195
        %v4328 = vunpack.c.l.b16 %v4196
        %v4329 = vunpack.c.l.b16 %v4197
        %v4330 = vunpack.c.l.b16 %v4198
        %v4331 = vunpack.c.l.b16 %v4199
        %v4332 = vunpack.c.l.b16 %v4200
        %v4333 = vunpack.c.l.b16 %v4201
        %v4334 = vunpack.c.l.b16 %v4202
        %v4335 = vunpack.c.l.b16 %v4203
        %v4336 = vunpack.c.l.b16 %v4204
        %v4337 = vunpack.c.l.b16 %v4205
        %v4338 = vunpack.c.l.b16 %v4206
        %v4339 = vunpack.c.l.b16 %v4207
        %v4340 = vunpack.c.l.b16 %v4208
        %v4341 = vunpack.c.l.b16 %v4209
        %v4342 = vunpack.c.l.b16 %v4210
        %v4343 = vunpack.c.l.b16 %v4211
        %v4344 = vunpack.c.l.b16 %v4212
        %v4345 = vunpack.c.l.b16 %v4213
        %v4346 = vunpack.c.l.b16 %v4214
        %v4347 = vunpack.c.l.b16 %v4215
        %v4348 = vunpack.c.l.b16 %v4216
        %v4349 = vunpack.c.l.b16 %v4217
        %v4350 = vunpack.c.l.b16 %v4218
        %v4351 = vunpack.c.l.b16 %v4219
        %v4352 = vunpack.c.l.b16 %v4220
        %v4353 = vunpack.c.l.b16 %v4221
        %v4354 = vunpack.c.l.b16 %v4222
        %v4355 = vunpack.c.l.b16 %v4223
        %v4356 = vunpack.c.l.b16 %v4224
        %v4357 = vunpack.c.l.b16 %v4225
        %v4358 = vunpack.c.l.b16 %v4226
        %v4359 = vunpack.c.l.b16 %v4227
        %v4360 = vunpack.c.l.b16 %v4228
        %v4361 = vunpack.c.l.b16 %v4229
        %v4362 = vunpack.c.l.b16 %v4230
        %v4363 = vunpack.c.l.b16 %v4231
        %v4364 = vunpack.c.l.b16 %v4232
        %v4365 = vpack.c.b16 %v4302, %v4301
        %v4366 = vpack.c.b16 %v4304, %v4303
        %v4367 = vpack.c.b16 %v4306, %v4305
        %v4368 = vpack.c.b16 %v4308, %v4307
        %v4369 = vpack.c.b16 %v4310, %v4309
        %v4370 = vpack.c.b16 %v4312, %v4311
        %v4371 = vpack.c.b16 %v4314, %v4313
        %v4372 = vpack.c.b16 %v4316, %v4315
        %v4373 = vpack.c.b16 %v4318, %v4317
        %v4374 = vpack.c.b16 %v4320, %v4319
        %v4375 = vpack.c.b16 %v4322, %v4321
        %v4376 = vpack.c.b16 %v4324, %v4323
        %v4377 = vpack.c.b16 %v4326, %v4325
        %v4378 = vpack.c.b16 %v4328, %v4327
        %v4379 = vpack.c.b16 %v4330, %v4329
        %v4380 = vpack.c.b16 %v4332, %v4331
        %v4381 = vpack.c.b16 %v4334, %v4333
        %v4382 = vpack.c.b16 %v4336, %v4335
        %v4383 = vpack.c.b16 %v4338, %v4337
        %v4384 = vpack.c.b16 %v4340, %v4339
        %v4385 = vpack.c.b16 %v4342, %v4341
        %v4386 = vpack.c.b16 %v4344, %v4343
        %v4387 = vpack.c.b16 %v4346, %v4345
        %v4388 = vpack.c.b16 %v4348, %v4347
        %v4389 = vpack.c.b16 %v4350, %v4349
        %v4390 = vpack.c.b16 %v4352, %v4351
        %v4391 = vpack.c.b16 %v4354, %v4353
        %v4392 = vpack.c.b16 %v4356, %v4355
        %v4393 = vpack.c.b16 %v4358, %v4357
        %v4394 = vpack.c.b16 %v4360, %v4359
        %v4395 = vpack.c.b16 %v4362, %v4361
        %v4396 = vpack.c.b16 %v4364, %v4363
        %4429 = vmatpush.bf16.msra.mxu0 %v4372
        %4430 = vmatpush.bf16.msra.mxu0 %v4371
        %4431 = vmatpush.bf16.msra.mxu0 %v4370
        %4432 = vmatpush.bf16.msra.mxu0 %v4369
        %4433 = vmatpush.bf16.msra.mxu0 %v4368
        %4434 = vmatpush.bf16.msra.mxu0 %v4367
        %4435 = vmatpush.bf16.msra.mxu0 %v4366
        %4436 = vmatpush.bf16.msra.mxu0 %v4365
        %4437 = vmatmul.bf16.gmra.mxu0 %v4105
        %v4438 = vpop.f32.mrf.mxu0
        %v4439 = vadd.f32 %v4235, %v4438
        %v4440 = vpop.f32.mrf.mxu0
        %v4441 = vadd.f32 %v4235, %v4440
        %4442 = vmatmul.bf16.gmra.mxu0 %v4109
        %v4443 = vpop.f32.mrf.mxu0
        %v4444 = vadd.f32 %v4235, %v4443
        %v4445 = vpop.f32.mrf.mxu0
        %v4446 = vadd.f32 %v4235, %v4445
        %4447 = vmatmul.bf16.gmra.mxu0 %v4113
        %v4448 = vpop.f32.mrf.mxu0
        %v4449 = vadd.f32 %v4235, %v4448
        %v4450 = vpop.f32.mrf.mxu0
        %v4451 = vadd.f32 %v4235, %v4450
        %4452 = vmatmul.bf16.gmra.mxu0 %v4117
        %v4453 = vpop.f32.mrf.mxu0
        %v4454 = vadd.f32 %v4235, %v4453
        %v4455 = vpop.f32.mrf.mxu0
        %v4456 = vadd.f32 %v4235, %v4455
        %4457 = vmatmul.bf16.gmra.mxu0 %v4121
        %v4458 = vpop.f32.mrf.mxu0
        %v4459 = vadd.f32 %v4235, %v4458
        %v4460 = vpop.f32.mrf.mxu0
        %v4461 = vadd.f32 %v4235, %v4460
        %4462 = vmatmul.bf16.gmra.mxu0 %v4125
        %v4463 = vpop.f32.mrf.mxu0
        %v4464 = vadd.f32 %v4235, %v4463
        %v4465 = vpop.f32.mrf.mxu0
        %v4466 = vadd.f32 %v4235, %v4465
        %4467 = vmatmul.bf16.gmra.mxu0 %v4129
        %v4468 = vpop.f32.mrf.mxu0
        %v4469 = vadd.f32 %v4235, %v4468
        %v4470 = vpop.f32.mrf.mxu0
        %v4471 = vadd.f32 %v4235, %v4470
        %4472 = vmatmul.bf16.gmra.mxu0 %v4133
        %v4473 = vpop.f32.mrf.mxu0
        %v4474 = vadd.f32 %v4235, %v4473
        %v4475 = vpop.f32.mrf.mxu0
        %v4476 = vadd.f32 %v4235, %v4475
        %4477 = vmatmul.bf16.gmra.mxu0 %v4137
        %v4478 = vpop.f32.mrf.mxu0
        %v4479 = vadd.f32 %v4235, %v4478
        %v4480 = vpop.f32.mrf.mxu0
        %v4481 = vadd.f32 %v4235, %v4480
        %4482 = vmatmul.bf16.gmra.mxu0 %v4141
        %v4483 = vpop.f32.mrf.mxu0
        %v4484 = vadd.f32 %v4235, %v4483
        %v4485 = vpop.f32.mrf.mxu0
        %v4486 = vadd.f32 %v4235, %v4485
        %4487 = vmatmul.bf16.gmra.mxu0 %v4145
        %v4488 = vpop.f32.mrf.mxu0
        %v4489 = vadd.f32 %v4235, %v4488
        %v4490 = vpop.f32.mrf.mxu0
        %v4491 = vadd.f32 %v4235, %v4490
        %4492 = vmatmul.bf16.gmra.mxu0 %v4149
        %v4493 = vpop.f32.mrf.mxu0
        %v4494 = vadd.f32 %v4235, %v4493
        %v4495 = vpop.f32.mrf.mxu0
        %v4496 = vadd.f32 %v4235, %v4495
        %4497 = vmatmul.bf16.gmra.mxu0 %v4153
        %v4498 = vpop.f32.mrf.mxu0
        %v4499 = vadd.f32 %v4235, %v4498
        %v4500 = vpop.f32.mrf.mxu0
        %v4501 = vadd.f32 %v4235, %v4500
        %4502 = vmatmul.bf16.gmra.mxu0 %v4157
        %v4503 = vpop.f32.mrf.mxu0
        %v4504 = vadd.f32 %v4235, %v4503
        %v4505 = vpop.f32.mrf.mxu0
        %v4506 = vadd.f32 %v4235, %v4505
        %4507 = vmatmul.bf16.gmra.mxu0 %v4161
        %v4508 = vpop.f32.mrf.mxu0
        %v4509 = vadd.f32 %v4235, %v4508
        %v4510 = vpop.f32.mrf.mxu0
        %v4511 = vadd.f32 %v4235, %v4510
        %4512 = vmatmul.bf16.gmra.mxu0 %v4165
        %v4513 = vpop.f32.mrf.mxu0
        %v4514 = vadd.f32 %v4235, %v4513
        %v4515 = vpop.f32.mrf.mxu0
        %v4516 = vadd.f32 %v4235, %v4515
        %4517 = vdwg.mxu0
        %4518 = vmatpush.bf16.msra.mxu0 %v4380
        %4519 = vmatpush.bf16.msra.mxu0 %v4379
        %4520 = vmatpush.bf16.msra.mxu0 %v4378
        %4521 = vmatpush.bf16.msra.mxu0 %v4377
        %4522 = vmatpush.bf16.msra.mxu0 %v4376
        %4523 = vmatpush.bf16.msra.mxu0 %v4375
        %4524 = vmatpush.bf16.msra.mxu0 %v4374
        %4525 = vmatpush.bf16.msra.mxu0 %v4373
        %4526 = vmatmul.bf16.gmra.mxu0 %v4106
        %v4527 = vpop.f32.mrf.mxu0
        %v4528 = vadd.f32 %v4439, %v4527
        %v4529 = vpop.f32.mrf.mxu0
        %v4530 = vadd.f32 %v4441, %v4529
        %4531 = vmatmul.bf16.gmra.mxu0 %v4110
        %v4532 = vpop.f32.mrf.mxu0
        %v4533 = vadd.f32 %v4444, %v4532
        %v4534 = vpop.f32.mrf.mxu0
        %v4535 = vadd.f32 %v4446, %v4534
        %4536 = vmatmul.bf16.gmra.mxu0 %v4114
        %v4537 = vpop.f32.mrf.mxu0
        %v4538 = vadd.f32 %v4449, %v4537
        %v4539 = vpop.f32.mrf.mxu0
        %v4540 = vadd.f32 %v4451, %v4539
        %4541 = vmatmul.bf16.gmra.mxu0 %v4118
        %v4542 = vpop.f32.mrf.mxu0
        %v4543 = vadd.f32 %v4454, %v4542
        %v4544 = vpop.f32.mrf.mxu0
        %v4545 = vadd.f32 %v4456, %v4544
        %4546 = vmatmul.bf16.gmra.mxu0 %v4122
        %v4547 = vpop.f32.mrf.mxu0
        %v4548 = vadd.f32 %v4459, %v4547
        %v4549 = vpop.f32.mrf.mxu0
        %v4550 = vadd.f32 %v4461, %v4549
        %4551 = vmatmul.bf16.gmra.mxu0 %v4126
        %v4552 = vpop.f32.mrf.mxu0
        %v4553 = vadd.f32 %v4464, %v4552
        %v4554 = vpop.f32.mrf.mxu0
        %v4555 = vadd.f32 %v4466, %v4554
        %4556 = vmatmul.bf16.gmra.mxu0 %v4130
        %v4557 = vpop.f32.mrf.mxu0
        %v4558 = vadd.f32 %v4469, %v4557
        %v4559 = vpop.f32.mrf.mxu0
        %v4560 = vadd.f32 %v4471, %v4559
        %4561 = vmatmul.bf16.gmra.mxu0 %v4134
        %v4562 = vpop.f32.mrf.mxu0
        %v4563 = vadd.f32 %v4474, %v4562
        %v4564 = vpop.f32.mrf.mxu0
        %v4565 = vadd.f32 %v4476, %v4564
        %4566 = vmatmul.bf16.gmra.mxu0 %v4138
        %v4567 = vpop.f32.mrf.mxu0
        %v4568 = vadd.f32 %v4479, %v4567
        %v4569 = vpop.f32.mrf.mxu0
        %v4570 = vadd.f32 %v4481, %v4569
        %4571 = vmatmul.bf16.gmra.mxu0 %v4142
        %v4572 = vpop.f32.mrf.mxu0
        %v4573 = vadd.f32 %v4484, %v4572
        %v4574 = vpop.f32.mrf.mxu0
        %v4575 = vadd.f32 %v4486, %v4574
        %4576 = vmatmul.bf16.gmra.mxu0 %v4146
        %v4577 = vpop.f32.mrf.mxu0
        %v4578 = vadd.f32 %v4489, %v4577
        %v4579 = vpop.f32.mrf.mxu0
        %v4580 = vadd.f32 %v4491, %v4579
        %4581 = vmatmul.bf16.gmra.mxu0 %v4150
        %v4582 = vpop.f32.mrf.mxu0
        %v4583 = vadd.f32 %v4494, %v4582
        %v4584 = vpop.f32.mrf.mxu0
        %v4585 = vadd.f32 %v4496, %v4584
        %4586 = vmatmul.bf16.gmra.mxu0 %v4154
        %v4587 = vpop.f32.mrf.mxu0
        %v4588 = vadd.f32 %v4499, %v4587
        %v4589 = vpop.f32.mrf.mxu0
        %v4590 = vadd.f32 %v4501, %v4589
        %4591 = vmatmul.bf16.gmra.mxu0 %v4158
        %v4592 = vpop.f32.mrf.mxu0
        %v4593 = vadd.f32 %v4504, %v4592
        %v4594 = vpop.f32.mrf.mxu0
        %v4595 = vadd.f32 %v4506, %v4594
        %4596 = vmatmul.bf16.gmra.mxu0 %v4162
        %v4597 = vpop.f32.mrf.mxu0
        %v4598 = vadd.f32 %v4509, %v4597
        %v4599 = vpop.f32.mrf.mxu0
        %v4600 = vadd.f32 %v4511, %v4599
        %4601 = vmatmul.bf16.gmra.mxu0 %v4166
        %v4602 = vpop.f32.mrf.mxu0
        %v4603 = vadd.f32 %v4514, %v4602
        %v4604 = vpop.f32.mrf.mxu0
        %v4605 = vadd.f32 %v4516, %v4604
        %4606 = vdwg.mxu0
        %4607 = vmatpush.bf16.msra.mxu0 %v4388
        %4608 = vmatpush.bf16.msra.mxu0 %v4387
        %4609 = vmatpush.bf16.msra.mxu0 %v4386
        %4610 = vmatpush.bf16.msra.mxu0 %v4385
        %4611 = vmatpush.bf16.msra.mxu0 %v4384
        %4612 = vmatpush.bf16.msra.mxu0 %v4383
        %4613 = vmatpush.bf16.msra.mxu0 %v4382
        %4614 = vmatpush.bf16.msra.mxu0 %v4381
        %4615 = vmatmul.bf16.gmra.mxu0 %v4107
        %v4616 = vpop.f32.mrf.mxu0
        %v4617 = vadd.f32 %v4528, %v4616
        %v4618 = vpop.f32.mrf.mxu0
        %v4619 = vadd.f32 %v4530, %v4618
        %4620 = vmatmul.bf16.gmra.mxu0 %v4111
        %v4621 = vpop.f32.mrf.mxu0
        %v4622 = vadd.f32 %v4533, %v4621
        %v4623 = vpop.f32.mrf.mxu0
        %v4624 = vadd.f32 %v4535, %v4623
        %4625 = vmatmul.bf16.gmra.mxu0 %v4115
        %v4626 = vpop.f32.mrf.mxu0
        %v4627 = vadd.f32 %v4538, %v4626
        %v4628 = vpop.f32.mrf.mxu0
        %v4629 = vadd.f32 %v4540, %v4628
        %4630 = vmatmul.bf16.gmra.mxu0 %v4119
        %v4631 = vpop.f32.mrf.mxu0
        %v4632 = vadd.f32 %v4543, %v4631
        %v4633 = vpop.f32.mrf.mxu0
        %v4634 = vadd.f32 %v4545, %v4633
        %4635 = vmatmul.bf16.gmra.mxu0 %v4123
        %v4636 = vpop.f32.mrf.mxu0
        %v4637 = vadd.f32 %v4548, %v4636
        %v4638 = vpop.f32.mrf.mxu0
        %v4639 = vadd.f32 %v4550, %v4638
        %4640 = vmatmul.bf16.gmra.mxu0 %v4127
        %v4641 = vpop.f32.mrf.mxu0
        %v4642 = vadd.f32 %v4553, %v4641
        %v4643 = vpop.f32.mrf.mxu0
        %v4644 = vadd.f32 %v4555, %v4643
        %4645 = vmatmul.bf16.gmra.mxu0 %v4131
        %v4646 = vpop.f32.mrf.mxu0
        %v4647 = vadd.f32 %v4558, %v4646
        %v4648 = vpop.f32.mrf.mxu0
        %v4649 = vadd.f32 %v4560, %v4648
        %4650 = vmatmul.bf16.gmra.mxu0 %v4135
        %v4651 = vpop.f32.mrf.mxu0
        %v4652 = vadd.f32 %v4563, %v4651
        %v4653 = vpop.f32.mrf.mxu0
        %v4654 = vadd.f32 %v4565, %v4653
        %4655 = vmatmul.bf16.gmra.mxu0 %v4139
        %v4656 = vpop.f32.mrf.mxu0
        %v4657 = vadd.f32 %v4568, %v4656
        %v4658 = vpop.f32.mrf.mxu0
        %v4659 = vadd.f32 %v4570, %v4658
        %4660 = vmatmul.bf16.gmra.mxu0 %v4143
        %v4661 = vpop.f32.mrf.mxu0
        %v4662 = vadd.f32 %v4573, %v4661
        %v4663 = vpop.f32.mrf.mxu0
        %v4664 = vadd.f32 %v4575, %v4663
        %4665 = vmatmul.bf16.gmra.mxu0 %v4147
        %v4666 = vpop.f32.mrf.mxu0
        %v4667 = vadd.f32 %v4578, %v4666
        %v4668 = vpop.f32.mrf.mxu0
        %v4669 = vadd.f32 %v4580, %v4668
        %4670 = vmatmul.bf16.gmra.mxu0 %v4151
        %v4671 = vpop.f32.mrf.mxu0
        %v4672 = vadd.f32 %v4583, %v4671
        %v4673 = vpop.f32.mrf.mxu0
        %v4674 = vadd.f32 %v4585, %v4673
        %4675 = vmatmul.bf16.gmra.mxu0 %v4155
        %v4676 = vpop.f32.mrf.mxu0
        %v4677 = vadd.f32 %v4588, %v4676
        %v4678 = vpop.f32.mrf.mxu0
        %v4679 = vadd.f32 %v4590, %v4678
        %4680 = vmatmul.bf16.gmra.mxu0 %v4159
        %v4681 = vpop.f32.mrf.mxu0
        %v4682 = vadd.f32 %v4593, %v4681
        %v4683 = vpop.f32.mrf.mxu0
        %v4684 = vadd.f32 %v4595, %v4683
        %4685 = vmatmul.bf16.gmra.mxu0 %v4163
        %v4686 = vpop.f32.mrf.mxu0
        %v4687 = vadd.f32 %v4598, %v4686
        %v4688 = vpop.f32.mrf.mxu0
        %v4689 = vadd.f32 %v4600, %v4688
        %4690 = vmatmul.bf16.gmra.mxu0 %v4167
        %v4691 = vpop.f32.mrf.mxu0
        %v4692 = vadd.f32 %v4603, %v4691
        %v4693 = vpop.f32.mrf.mxu0
        %v4694 = vadd.f32 %v4605, %v4693
        %4695 = vdwg.mxu0
        %4696 = vmatpush.bf16.msra.mxu0 %v4396
        %4697 = vmatpush.bf16.msra.mxu0 %v4395
        %4698 = vmatpush.bf16.msra.mxu0 %v4394
        %4699 = vmatpush.bf16.msra.mxu0 %v4393
        %4700 = vmatpush.bf16.msra.mxu0 %v4392
        %4701 = vmatpush.bf16.msra.mxu0 %v4391
        %4702 = vmatpush.bf16.msra.mxu0 %v4390
        %4703 = vmatpush.bf16.msra.mxu0 %v4389
        %4704 = vmatmul.bf16.gmra.mxu0 %v4108
        %v4705 = vpop.f32.mrf.mxu0
        %v4706 = vadd.f32 %v4617, %v4705
        %v4707 = vpop.f32.mrf.mxu0
        %v4708 = vadd.f32 %v4619, %v4707
        %4709 = vmatmul.bf16.gmra.mxu0 %v4112
        %v4710 = vpop.f32.mrf.mxu0
        %v4711 = vadd.f32 %v4622, %v4710
        %v4712 = vpop.f32.mrf.mxu0
        %v4713 = vadd.f32 %v4624, %v4712
        %4714 = vmatmul.bf16.gmra.mxu0 %v4116
        %v4715 = vpop.f32.mrf.mxu0
        %v4716 = vadd.f32 %v4627, %v4715
        %v4717 = vpop.f32.mrf.mxu0
        %v4718 = vadd.f32 %v4629, %v4717
        %4719 = vmatmul.bf16.gmra.mxu0 %v4120
        %v4720 = vpop.f32.mrf.mxu0
        %v4721 = vadd.f32 %v4632, %v4720
        %v4722 = vpop.f32.mrf.mxu0
        %v4723 = vadd.f32 %v4634, %v4722
        %4724 = vmatmul.bf16.gmra.mxu0 %v4124
        %v4725 = vpop.f32.mrf.mxu0
        %v4726 = vadd.f32 %v4637, %v4725
        %v4727 = vpop.f32.mrf.mxu0
        %v4728 = vadd.f32 %v4639, %v4727
        %4729 = vmatmul.bf16.gmra.mxu0 %v4128
        %v4730 = vpop.f32.mrf.mxu0
        %v4731 = vadd.f32 %v4642, %v4730
        %v4732 = vpop.f32.mrf.mxu0
        %v4733 = vadd.f32 %v4644, %v4732
        %4734 = vmatmul.bf16.gmra.mxu0 %v4132
        %v4735 = vpop.f32.mrf.mxu0
        %v4736 = vadd.f32 %v4647, %v4735
        %v4737 = vpop.f32.mrf.mxu0
        %v4738 = vadd.f32 %v4649, %v4737
        %4739 = vmatmul.bf16.gmra.mxu0 %v4136
        %v4740 = vpop.f32.mrf.mxu0
        %v4741 = vadd.f32 %v4652, %v4740
        %v4742 = vpop.f32.mrf.mxu0
        %v4743 = vadd.f32 %v4654, %v4742
        %4744 = vmatmul.bf16.gmra.mxu0 %v4140
        %v4745 = vpop.f32.mrf.mxu0
        %v4746 = vadd.f32 %v4657, %v4745
        %v4747 = vpop.f32.mrf.mxu0
        %v4748 = vadd.f32 %v4659, %v4747
        %4749 = vmatmul.bf16.gmra.mxu0 %v4144
        %v4750 = vpop.f32.mrf.mxu0
        %v4751 = vadd.f32 %v4662, %v4750
        %v4752 = vpop.f32.mrf.mxu0
        %v4753 = vadd.f32 %v4664, %v4752
        %4754 = vmatmul.bf16.gmra.mxu0 %v4148
        %v4755 = vpop.f32.mrf.mxu0
        %v4756 = vadd.f32 %v4667, %v4755
        %v4757 = vpop.f32.mrf.mxu0
        %v4758 = vadd.f32 %v4669, %v4757
        %4759 = vmatmul.bf16.gmra.mxu0 %v4152
        %v4760 = vpop.f32.mrf.mxu0
        %v4761 = vadd.f32 %v4672, %v4760
        %v4762 = vpop.f32.mrf.mxu0
        %v4763 = vadd.f32 %v4674, %v4762
        %4764 = vmatmul.bf16.gmra.mxu0 %v4156
        %v4765 = vpop.f32.mrf.mxu0
        %v4766 = vadd.f32 %v4677, %v4765
        %v4767 = vpop.f32.mrf.mxu0
        %v4768 = vadd.f32 %v4679, %v4767
        %4769 = vmatmul.bf16.gmra.mxu0 %v4160
        %v4770 = vpop.f32.mrf.mxu0
        %v4771 = vadd.f32 %v4682, %v4770
        %v4772 = vpop.f32.mrf.mxu0
        %v4773 = vadd.f32 %v4684, %v4772
        %4774 = vmatmul.bf16.gmra.mxu0 %v4164
        %v4775 = vpop.f32.mrf.mxu0
        %v4776 = vadd.f32 %v4687, %v4775
        %v4777 = vpop.f32.mrf.mxu0
        %v4778 = vadd.f32 %v4689, %v4777
        %4779 = vmatmul.bf16.gmra.mxu0 %v4168
        %v4780 = vpop.f32.mrf.mxu0
        %v4781 = vadd.f32 %v4692, %v4780
        %v4782 = vpop.f32.mrf.mxu0
        %v4783 = vadd.f32 %v4694, %v4782
        %4784 = vdwg.mxu0
        %v4785 = vlaneseq
        %v4786 = vand.u32 %v4785, 127
        %vm4787 = vcmp.lt.s32.totalorder %v4786, 50
        %v4788 = vtanh.pop %v4706
        %v4789 = vtanh.pop %v4708
        %v4790 = vtanh.pop %v4711
        %v4791 = vtanh.pop %v4713
        %v4792 = vtanh.pop %v4716
        %v4793 = vtanh.pop %v4718
        %v4794 = vtanh.pop %v4721
        %v4795 = vtanh.pop %v4723
        %v4796 = vtanh.pop %v4726
        %v4797 = vtanh.pop %v4728
        %v4798 = vtanh.pop %v4731
        %v4799 = vtanh.pop %v4733
        %v4800 = vtanh.pop %v4736
        %v4801 = vtanh.pop %v4738
        %v4802 = vtanh.pop %v4741
        %v4803 = vtanh.pop %v4743
        %v4804 = vtanh.pop %v4746
        %v4805 = vtanh.pop %v4748
        %v4806 = vtanh.pop %v4751
        %v4807 = vtanh.pop %v4753
        %v4808 = vtanh.pop %v4756
        %v4809 = vtanh.pop %v4758
        %v4810 = vtanh.pop %v4761
        %v4811 = vtanh.pop %v4763
        %v4812 = vtanh.pop %v4766
        %v4813 = vtanh.pop %v4768
        %v4814 = vtanh.pop %v4771
        %v4815 = vtanh.pop %v4773
        %v4816 = vtanh.pop %v4776
        %v4817 = vtanh.pop %v4778
        %v4818 = vtanh.pop %v4781
        %v4819 = vtanh.pop %v4783
        %vm4820 = vcmp.gt.f32.partialorder %v4706, 0.0
        %vm4821 = vcmp.gt.f32.partialorder %v4708, 0.0
        %vm4822 = vcmp.gt.f32.partialorder %v4711, 0.0
        %vm4823 = vcmp.gt.f32.partialorder %v4713, 0.0
        %vm4824 = vcmp.gt.f32.partialorder %v4716, 0.0
        %vm4825 = vcmp.gt.f32.partialorder %v4718, 0.0
        %vm4826 = vcmp.gt.f32.partialorder %v4721, 0.0
        %vm4827 = vcmp.gt.f32.partialorder %v4723, 0.0
        %vm4828 = vcmp.gt.f32.partialorder %v4726, 0.0
        %vm4829 = vcmp.gt.f32.partialorder %v4728, 0.0
        %vm4830 = vcmp.gt.f32.partialorder %v4731, 0.0
        %vm4831 = vcmp.gt.f32.partialorder %v4733, 0.0
        %vm4832 = vcmp.gt.f32.partialorder %v4736, 0.0
        %vm4833 = vcmp.gt.f32.partialorder %v4738, 0.0
        %vm4834 = vcmp.gt.f32.partialorder %v4741, 0.0
        %vm4835 = vcmp.gt.f32.partialorder %v4743, 0.0
        %vm4836 = vcmp.gt.f32.partialorder %v4746, 0.0
        %vm4837 = vcmp.gt.f32.partialorder %v4748, 0.0
        %vm4838 = vcmp.gt.f32.partialorder %v4751, 0.0
        %vm4839 = vcmp.gt.f32.partialorder %v4753, 0.0
        %vm4840 = vcmp.gt.f32.partialorder %v4756, 0.0
        %vm4841 = vcmp.gt.f32.partialorder %v4758, 0.0
        %vm4842 = vcmp.gt.f32.partialorder %v4761, 0.0
        %vm4843 = vcmp.gt.f32.partialorder %v4763, 0.0
        %vm4844 = vcmp.gt.f32.partialorder %v4766, 0.0
        %vm4845 = vcmp.gt.f32.partialorder %v4768, 0.0
        %vm4846 = vcmp.gt.f32.partialorder %v4771, 0.0
        %vm4847 = vcmp.gt.f32.partialorder %v4773, 0.0
        %vm4848 = vcmp.gt.f32.partialorder %v4776, 0.0
        %vm4849 = vcmp.gt.f32.partialorder %v4778, 0.0
        %vm4850 = vcmp.gt.f32.partialorder %v4781, 0.0
        %vm4851 = vcmp.gt.f32.partialorder %v4783, 0.0
        %v4852 = vsub.f32 0.0, %v4706
        %v4853 = vsub.f32 0.0, %v4708
        %v4854 = vsub.f32 0.0, %v4711
        %v4855 = vsub.f32 0.0, %v4713
        %v4856 = vsub.f32 0.0, %v4716
        %v4857 = vsub.f32 0.0, %v4718
        %v4858 = vsub.f32 0.0, %v4721
        %v4859 = vsub.f32 0.0, %v4723
        %v4860 = vsub.f32 0.0, %v4726
        %v4861 = vsub.f32 0.0, %v4728
        %v4862 = vsub.f32 0.0, %v4731
        %v4863 = vsub.f32 0.0, %v4733
        %v4864 = vsub.f32 0.0, %v4736
        %v4865 = vsub.f32 0.0, %v4738
        %v4866 = vsub.f32 0.0, %v4741
        %v4867 = vsub.f32 0.0, %v4743
        %v4868 = vsub.f32 0.0, %v4746
        %v4869 = vsub.f32 0.0, %v4748
        %v4870 = vsub.f32 0.0, %v4751
        %v4871 = vsub.f32 0.0, %v4753
        %v4872 = vsub.f32 0.0, %v4756
        %v4873 = vsub.f32 0.0, %v4758
        %v4874 = vsub.f32 0.0, %v4761
        %v4875 = vsub.f32 0.0, %v4763
        %v4876 = vsub.f32 0.0, %v4766
        %v4877 = vsub.f32 0.0, %v4768
        %v4878 = vsub.f32 0.0, %v4771
        %v4879 = vsub.f32 0.0, %v4773
        %v4880 = vsub.f32 0.0, %v4776
        %v4881 = vsub.f32 0.0, %v4778
        %v4882 = vsub.f32 0.0, %v4781
        %v4883 = vsub.f32 0.0, %v4783
        %v4884 = vmul.f32 %v4852, 1.442695
        %v4885 = vpow.pop %v4884
        %v4886 = vmul.f32 %v4853, 1.442695
        %v4887 = vpow.pop %v4886
        %v4888 = vmul.f32 %v4854, 1.442695
        %v4889 = vpow.pop %v4888
        %v4890 = vmul.f32 %v4855, 1.442695
        %v4891 = vpow.pop %v4890
        %v4892 = vmul.f32 %v4856, 1.442695
        %v4893 = vpow.pop %v4892
        %v4894 = vmul.f32 %v4857, 1.442695
        %v4895 = vpow.pop %v4894
        %v4896 = vmul.f32 %v4858, 1.442695
        %v4897 = vpow.pop %v4896
        %v4898 = vmul.f32 %v4859, 1.442695
        %v4899 = vpow.pop %v4898
        %v4900 = vmul.f32 %v4860, 1.442695
        %v4901 = vpow.pop %v4900
        %v4902 = vmul.f32 %v4861, 1.442695
        %v4903 = vpow.pop %v4902
        %v4904 = vmul.f32 %v4862, 1.442695
        %v4905 = vpow.pop %v4904
        %v4906 = vmul.f32 %v4863, 1.442695
        %v4907 = vpow.pop %v4906
        %v4908 = vmul.f32 %v4864, 1.442695
        %v4909 = vpow.pop %v4908
        %v4910 = vmul.f32 %v4865, 1.442695
        %v4911 = vpow.pop %v4910
        %v4912 = vmul.f32 %v4866, 1.442695
        %v4913 = vpow.pop %v4912
        %v4914 = vmul.f32 %v4867, 1.442695
        %v4915 = vpow.pop %v4914
        %v4916 = vmul.f32 %v4868, 1.442695
        %v4917 = vpow.pop %v4916
        %v4918 = vmul.f32 %v4869, 1.442695
        %v4919 = vpow.pop %v4918
        %v4920 = vmul.f32 %v4870, 1.442695
        %v4921 = vpow.pop %v4920
        %v4922 = vmul.f32 %v4871, 1.442695
        %v4923 = vpow.pop %v4922
        %v4924 = vmul.f32 %v4872, 1.442695
        %v4925 = vpow.pop %v4924
        %v4926 = vmul.f32 %v4873, 1.442695
        %v4927 = vpow.pop %v4926
        %v4928 = vmul.f32 %v4874, 1.442695
        %v4929 = vpow.pop %v4928
        %v4930 = vmul.f32 %v4875, 1.442695
        %v4931 = vpow.pop %v4930
        %v4932 = vmul.f32 %v4876, 1.442695
        %v4933 = vpow.pop %v4932
        %v4934 = vmul.f32 %v4877, 1.442695
        %v4935 = vpow.pop %v4934
        %v4936 = vmul.f32 %v4878, 1.442695
        %v4937 = vpow.pop %v4936
        %v4938 = vmul.f32 %v4879, 1.442695
        %v4939 = vpow.pop %v4938
        %v4940 = vmul.f32 %v4880, 1.442695
        %v4941 = vpow.pop %v4940
        %v4942 = vmul.f32 %v4881, 1.442695
        %v4943 = vpow.pop %v4942
        %v4944 = vmul.f32 %v4882, 1.442695
        %v4945 = vpow.pop %v4944
        %v4946 = vmul.f32 %v4883, 1.442695
        %v4947 = vpow.pop %v4946
        %v4948 = vadd.f32 %v4885, 1.0
        %v4949 = vlog2.pop %v4948
        %v4950 = vmul.f32 %v4949, 0.6931472
        %v4951 = vmul.f32 -0.5, %v4885
        %v4952 = vadd.f32 %v4951, 1.0
        %v4953 = vmul.f32 %v4952, %v4885
        %v4954 = vand.u32 2147483647, %v4885
        %vm4955 = vcmp.lt.f32.partialorder %v4954, 0.0004427343
        %v4956 = vsel %vm4955, %v4953, %v4950
        %v4957 = vadd.f32 %v4887, 1.0
        %v4958 = vlog2.pop %v4957
        %v4959 = vmul.f32 %v4958, 0.6931472
        %v4960 = vmul.f32 -0.5, %v4887
        %v4961 = vadd.f32 %v4960, 1.0
        %v4962 = vmul.f32 %v4961, %v4887
        %v4963 = vand.u32 2147483647, %v4887
        %vm4964 = vcmp.lt.f32.partialorder %v4963, 0.0004427343
        %v4965 = vsel %vm4964, %v4962, %v4959
        %v4966 = vadd.f32 %v4889, 1.0
        %v4967 = vlog2.pop %v4966
        %v4968 = vmul.f32 %v4967, 0.6931472
        %v4969 = vmul.f32 -0.5, %v4889
        %v4970 = vadd.f32 %v4969, 1.0
        %v4971 = vmul.f32 %v4970, %v4889
        %v4972 = vand.u32 2147483647, %v4889
        %vm4973 = vcmp.lt.f32.partialorder %v4972, 0.0004427343
        %v4974 = vsel %vm4973, %v4971, %v4968
        %v4975 = vadd.f32 %v4891, 1.0
        %v4976 = vlog2.pop %v4975
        %v4977 = vmul.f32 %v4976, 0.6931472
        %v4978 = vmul.f32 -0.5, %v4891
        %v4979 = vadd.f32 %v4978, 1.0
        %v4980 = vmul.f32 %v4979, %v4891
        %v4981 = vand.u32 2147483647, %v4891
        %vm4982 = vcmp.lt.f32.partialorder %v4981, 0.0004427343
        %v4983 = vsel %vm4982, %v4980, %v4977
        %v4984 = vadd.f32 %v4893, 1.0
        %v4985 = vlog2.pop %v4984
        %v4986 = vmul.f32 %v4985, 0.6931472
        %v4987 = vmul.f32 -0.5, %v4893
        %v4988 = vadd.f32 %v4987, 1.0
        %v4989 = vmul.f32 %v4988, %v4893
        %v4990 = vand.u32 2147483647, %v4893
        %vm4991 = vcmp.lt.f32.partialorder %v4990, 0.0004427343
        %v4992 = vsel %vm4991, %v4989, %v4986
        %v4993 = vadd.f32 %v4895, 1.0
        %v4994 = vlog2.pop %v4993
        %v4995 = vmul.f32 %v4994, 0.6931472
        %v4996 = vmul.f32 -0.5, %v4895
        %v4997 = vadd.f32 %v4996, 1.0
        %v4998 = vmul.f32 %v4997, %v4895
        %v4999 = vand.u32 2147483647, %v4895
        %vm5000 = vcmp.lt.f32.partialorder %v4999, 0.0004427343
        %v5001 = vsel %vm5000, %v4998, %v4995
        %v5002 = vadd.f32 %v4897, 1.0
        %v5003 = vlog2.pop %v5002
        %v5004 = vmul.f32 %v5003, 0.6931472
        %v5005 = vmul.f32 -0.5, %v4897
        %v5006 = vadd.f32 %v5005, 1.0
        %v5007 = vmul.f32 %v5006, %v4897
        %v5008 = vand.u32 2147483647, %v4897
        %vm5009 = vcmp.lt.f32.partialorder %v5008, 0.0004427343
        %v5010 = vsel %vm5009, %v5007, %v5004
        %v5011 = vadd.f32 %v4899, 1.0
        %v5012 = vlog2.pop %v5011
        %v5013 = vmul.f32 %v5012, 0.6931472
        %v5014 = vmul.f32 -0.5, %v4899
        %v5015 = vadd.f32 %v5014, 1.0
        %v5016 = vmul.f32 %v5015, %v4899
        %v5017 = vand.u32 2147483647, %v4899
        %vm5018 = vcmp.lt.f32.partialorder %v5017, 0.0004427343
        %v5019 = vsel %vm5018, %v5016, %v5013
        %v5020 = vadd.f32 %v4901, 1.0
        %v5021 = vlog2.pop %v5020
        %v5022 = vmul.f32 %v5021, 0.6931472
        %v5023 = vmul.f32 -0.5, %v4901
        %v5024 = vadd.f32 %v5023, 1.0
        %v5025 = vmul.f32 %v5024, %v4901
        %v5026 = vand.u32 2147483647, %v4901
        %vm5027 = vcmp.lt.f32.partialorder %v5026, 0.0004427343
        %v5028 = vsel %vm5027, %v5025, %v5022
        %v5029 = vadd.f32 %v4903, 1.0
        %v5030 = vlog2.pop %v5029
        %v5031 = vmul.f32 %v5030, 0.6931472
        %v5032 = vmul.f32 -0.5, %v4903
        %v5033 = vadd.f32 %v5032, 1.0
        %v5034 = vmul.f32 %v5033, %v4903
        %v5035 = vand.u32 2147483647, %v4903
        %vm5036 = vcmp.lt.f32.partialorder %v5035, 0.0004427343
        %v5037 = vsel %vm5036, %v5034, %v5031
        %v5038 = vadd.f32 %v4905, 1.0
        %v5039 = vlog2.pop %v5038
        %v5040 = vmul.f32 %v5039, 0.6931472
        %v5041 = vmul.f32 -0.5, %v4905
        %v5042 = vadd.f32 %v5041, 1.0
        %v5043 = vmul.f32 %v5042, %v4905
        %v5044 = vand.u32 2147483647, %v4905
        %vm5045 = vcmp.lt.f32.partialorder %v5044, 0.0004427343
        %v5046 = vsel %vm5045, %v5043, %v5040
        %v5047 = vadd.f32 %v4907, 1.0
        %v5048 = vlog2.pop %v5047
        %v5049 = vmul.f32 %v5048, 0.6931472
        %v5050 = vmul.f32 -0.5, %v4907
        %v5051 = vadd.f32 %v5050, 1.0
        %v5052 = vmul.f32 %v5051, %v4907
        %v5053 = vand.u32 2147483647, %v4907
        %vm5054 = vcmp.lt.f32.partialorder %v5053, 0.0004427343
        %v5055 = vsel %vm5054, %v5052, %v5049
        %v5056 = vadd.f32 %v4909, 1.0
        %v5057 = vlog2.pop %v5056
        %v5058 = vmul.f32 %v5057, 0.6931472
        %v5059 = vmul.f32 -0.5, %v4909
        %v5060 = vadd.f32 %v5059, 1.0
        %v5061 = vmul.f32 %v5060, %v4909
        %v5062 = vand.u32 2147483647, %v4909
        %vm5063 = vcmp.lt.f32.partialorder %v5062, 0.0004427343
        %v5064 = vsel %vm5063, %v5061, %v5058
        %v5065 = vadd.f32 %v4911, 1.0
        %v5066 = vlog2.pop %v5065
        %v5067 = vmul.f32 %v5066, 0.6931472
        %v5068 = vmul.f32 -0.5, %v4911
        %v5069 = vadd.f32 %v5068, 1.0
        %v5070 = vmul.f32 %v5069, %v4911
        %v5071 = vand.u32 2147483647, %v4911
        %vm5072 = vcmp.lt.f32.partialorder %v5071, 0.0004427343
        %v5073 = vsel %vm5072, %v5070, %v5067
        %v5074 = vadd.f32 %v4913, 1.0
        %v5075 = vlog2.pop %v5074
        %v5076 = vmul.f32 %v5075, 0.6931472
        %v5077 = vmul.f32 -0.5, %v4913
        %v5078 = vadd.f32 %v5077, 1.0
        %v5079 = vmul.f32 %v5078, %v4913
        %v5080 = vand.u32 2147483647, %v4913
        %vm5081 = vcmp.lt.f32.partialorder %v5080, 0.0004427343
        %v5082 = vsel %vm5081, %v5079, %v5076
        %v5083 = vadd.f32 %v4915, 1.0
        %v5084 = vlog2.pop %v5083
        %v5085 = vmul.f32 %v5084, 0.6931472
        %v5086 = vmul.f32 -0.5, %v4915
        %v5087 = vadd.f32 %v5086, 1.0
        %v5088 = vmul.f32 %v5087, %v4915
        %v5089 = vand.u32 2147483647, %v4915
        %vm5090 = vcmp.lt.f32.partialorder %v5089, 0.0004427343
        %v5091 = vsel %vm5090, %v5088, %v5085
        %v5092 = vadd.f32 %v4917, 1.0
        %v5093 = vlog2.pop %v5092
        %v5094 = vmul.f32 %v5093, 0.6931472
        %v5095 = vmul.f32 -0.5, %v4917
        %v5096 = vadd.f32 %v5095, 1.0
        %v5097 = vmul.f32 %v5096, %v4917
        %v5098 = vand.u32 2147483647, %v4917
        %vm5099 = vcmp.lt.f32.partialorder %v5098, 0.0004427343
        %v5100 = vsel %vm5099, %v5097, %v5094
        %v5101 = vadd.f32 %v4919, 1.0
        %v5102 = vlog2.pop %v5101
        %v5103 = vmul.f32 %v5102, 0.6931472
        %v5104 = vmul.f32 -0.5, %v4919
        %v5105 = vadd.f32 %v5104, 1.0
        %v5106 = vmul.f32 %v5105, %v4919
        %v5107 = vand.u32 2147483647, %v4919
        %vm5108 = vcmp.lt.f32.partialorder %v5107, 0.0004427343
        %v5109 = vsel %vm5108, %v5106, %v5103
        %v5110 = vadd.f32 %v4921, 1.0
        %v5111 = vlog2.pop %v5110
        %v5112 = vmul.f32 %v5111, 0.6931472
        %v5113 = vmul.f32 -0.5, %v4921
        %v5114 = vadd.f32 %v5113, 1.0
        %v5115 = vmul.f32 %v5114, %v4921
        %v5116 = vand.u32 2147483647, %v4921
        %vm5117 = vcmp.lt.f32.partialorder %v5116, 0.0004427343
        %v5118 = vsel %vm5117, %v5115, %v5112
        %v5119 = vadd.f32 %v4923, 1.0
        %v5120 = vlog2.pop %v5119
        %v5121 = vmul.f32 %v5120, 0.6931472
        %v5122 = vmul.f32 -0.5, %v4923
        %v5123 = vadd.f32 %v5122, 1.0
        %v5124 = vmul.f32 %v5123, %v4923
        %v5125 = vand.u32 2147483647, %v4923
        %vm5126 = vcmp.lt.f32.partialorder %v5125, 0.0004427343
        %v5127 = vsel %vm5126, %v5124, %v5121
        %v5128 = vadd.f32 %v4925, 1.0
        %v5129 = vlog2.pop %v5128
        %v5130 = vmul.f32 %v5129, 0.6931472
        %v5131 = vmul.f32 -0.5, %v4925
        %v5132 = vadd.f32 %v5131, 1.0
        %v5133 = vmul.f32 %v5132, %v4925
        %v5134 = vand.u32 2147483647, %v4925
        %vm5135 = vcmp.lt.f32.partialorder %v5134, 0.0004427343
        %v5136 = vsel %vm5135, %v5133, %v5130
        %v5137 = vadd.f32 %v4927, 1.0
        %v5138 = vlog2.pop %v5137
        %v5139 = vmul.f32 %v5138, 0.6931472
        %v5140 = vmul.f32 -0.5, %v4927
        %v5141 = vadd.f32 %v5140, 1.0
        %v5142 = vmul.f32 %v5141, %v4927
        %v5143 = vand.u32 2147483647, %v4927
        %vm5144 = vcmp.lt.f32.partialorder %v5143, 0.0004427343
        %v5145 = vsel %vm5144, %v5142, %v5139
        %v5146 = vadd.f32 %v4929, 1.0
        %v5147 = vlog2.pop %v5146
        %v5148 = vmul.f32 %v5147, 0.6931472
        %v5149 = vmul.f32 -0.5, %v4929
        %v5150 = vadd.f32 %v5149, 1.0
        %v5151 = vmul.f32 %v5150, %v4929
        %v5152 = vand.u32 2147483647, %v4929
        %vm5153 = vcmp.lt.f32.partialorder %v5152, 0.0004427343
        %v5154 = vsel %vm5153, %v5151, %v5148
        %v5155 = vadd.f32 %v4931, 1.0
        %v5156 = vlog2.pop %v5155
        %v5157 = vmul.f32 %v5156, 0.6931472
        %v5158 = vmul.f32 -0.5, %v4931
        %v5159 = vadd.f32 %v5158, 1.0
        %v5160 = vmul.f32 %v5159, %v4931
        %v5161 = vand.u32 2147483647, %v4931
        %vm5162 = vcmp.lt.f32.partialorder %v5161, 0.0004427343
        %v5163 = vsel %vm5162, %v5160, %v5157
        %v5164 = vadd.f32 %v4933, 1.0
        %v5165 = vlog2.pop %v5164
        %v5166 = vmul.f32 %v5165, 0.6931472
        %v5167 = vmul.f32 -0.5, %v4933
        %v5168 = vadd.f32 %v5167, 1.0
        %v5169 = vmul.f32 %v5168, %v4933
        %v5170 = vand.u32 2147483647, %v4933
        %vm5171 = vcmp.lt.f32.partialorder %v5170, 0.0004427343
        %v5172 = vsel %vm5171, %v5169, %v5166
        %v5173 = vadd.f32 %v4935, 1.0
        %v5174 = vlog2.pop %v5173
        %v5175 = vmul.f32 %v5174, 0.6931472
        %v5176 = vmul.f32 -0.5, %v4935
        %v5177 = vadd.f32 %v5176, 1.0
        %v5178 = vmul.f32 %v5177, %v4935
        %v5179 = vand.u32 2147483647, %v4935
        %vm5180 = vcmp.lt.f32.partialorder %v5179, 0.0004427343
        %v5181 = vsel %vm5180, %v5178, %v5175
        %v5182 = vadd.f32 %v4937, 1.0
        %v5183 = vlog2.pop %v5182
        %v5184 = vmul.f32 %v5183, 0.6931472
        %v5185 = vmul.f32 -0.5, %v4937
        %v5186 = vadd.f32 %v5185, 1.0
        %v5187 = vmul.f32 %v5186, %v4937
        %v5188 = vand.u32 2147483647, %v4937
        %vm5189 = vcmp.lt.f32.partialorder %v5188, 0.0004427343
        %v5190 = vsel %vm5189, %v5187, %v5184
        %v5191 = vadd.f32 %v4939, 1.0
        %v5192 = vlog2.pop %v5191
        %v5193 = vmul.f32 %v5192, 0.6931472
        %v5194 = vmul.f32 -0.5, %v4939
        %v5195 = vadd.f32 %v5194, 1.0
        %v5196 = vmul.f32 %v5195, %v4939
        %v5197 = vand.u32 2147483647, %v4939
        %vm5198 = vcmp.lt.f32.partialorder %v5197, 0.0004427343
        %v5199 = vsel %vm5198, %v5196, %v5193
        %v5200 = vadd.f32 %v4941, 1.0
        %v5201 = vlog2.pop %v5200
        %v5202 = vmul.f32 %v5201, 0.6931472
        %v5203 = vmul.f32 -0.5, %v4941
        %v5204 = vadd.f32 %v5203, 1.0
        %v5205 = vmul.f32 %v5204, %v4941
        %v5206 = vand.u32 2147483647, %v4941
        %vm5207 = vcmp.lt.f32.partialorder %v5206, 0.0004427343
        %v5208 = vsel %vm5207, %v5205, %v5202
        %v5209 = vadd.f32 %v4943, 1.0
        %v5210 = vlog2.pop %v5209
        %v5211 = vmul.f32 %v5210, 0.6931472
        %v5212 = vmul.f32 -0.5, %v4943
        %v5213 = vadd.f32 %v5212, 1.0
        %v5214 = vmul.f32 %v5213, %v4943
        %v5215 = vand.u32 2147483647, %v4943
        %vm5216 = vcmp.lt.f32.partialorder %v5215, 0.0004427343
        %v5217 = vsel %vm5216, %v5214, %v5211
        %v5218 = vadd.f32 %v4945, 1.0
        %v5219 = vlog2.pop %v5218
        %v5220 = vmul.f32 %v5219, 0.6931472
        %v5221 = vmul.f32 -0.5, %v4945
        %v5222 = vadd.f32 %v5221, 1.0
        %v5223 = vmul.f32 %v5222, %v4945
        %v5224 = vand.u32 2147483647, %v4945
        %vm5225 = vcmp.lt.f32.partialorder %v5224, 0.0004427343
        %v5226 = vsel %vm5225, %v5223, %v5220
        %v5227 = vadd.f32 %v4947, 1.0
        %v5228 = vlog2.pop %v5227
        %v5229 = vmul.f32 %v5228, 0.6931472
        %v5230 = vmul.f32 -0.5, %v4947
        %v5231 = vadd.f32 %v5230, 1.0
        %v5232 = vmul.f32 %v5231, %v4947
        %v5233 = vand.u32 2147483647, %v4947
        %vm5234 = vcmp.lt.f32.partialorder %v5233, 0.0004427343
        %v5235 = vsel %vm5234, %v5232, %v5229
        %v5236 = vadd.f32 %v4706, %v4956
        %v5237 = vadd.f32 %v4708, %v4965
        %v5238 = vadd.f32 %v4711, %v4974
        %v5239 = vadd.f32 %v4713, %v4983
        %v5240 = vadd.f32 %v4716, %v4992
        %v5241 = vadd.f32 %v4718, %v5001
        %v5242 = vadd.f32 %v4721, %v5010
        %v5243 = vadd.f32 %v4723, %v5019
        %v5244 = vadd.f32 %v4726, %v5028
        %v5245 = vadd.f32 %v4728, %v5037
        %v5246 = vadd.f32 %v4731, %v5046
        %v5247 = vadd.f32 %v4733, %v5055
        %v5248 = vadd.f32 %v4736, %v5064
        %v5249 = vadd.f32 %v4738, %v5073
        %v5250 = vadd.f32 %v4741, %v5082
        %v5251 = vadd.f32 %v4743, %v5091
        %v5252 = vadd.f32 %v4746, %v5100
        %v5253 = vadd.f32 %v4748, %v5109
        %v5254 = vadd.f32 %v4751, %v5118
        %v5255 = vadd.f32 %v4753, %v5127
        %v5256 = vadd.f32 %v4756, %v5136
        %v5257 = vadd.f32 %v4758, %v5145
        %v5258 = vadd.f32 %v4761, %v5154
        %v5259 = vadd.f32 %v4763, %v5163
        %v5260 = vadd.f32 %v4766, %v5172
        %v5261 = vadd.f32 %v4768, %v5181
        %v5262 = vadd.f32 %v4771, %v5190
        %v5263 = vadd.f32 %v4773, %v5199
        %v5264 = vadd.f32 %v4776, %v5208
        %v5265 = vadd.f32 %v4778, %v5217
        %v5266 = vadd.f32 %v4781, %v5226
        %v5267 = vadd.f32 %v4783, %v5235
        %v5268 = vmul.f32 %v4706, 1.442695
        %v5269 = vpow.pop %v5268
        %v5270 = vmul.f32 %v4708, 1.442695
        %v5271 = vpow.pop %v5270
        %v5272 = vmul.f32 %v4711, 1.442695
        %v5273 = vpow.pop %v5272
        %v5274 = vmul.f32 %v4713, 1.442695
        %v5275 = vpow.pop %v5274
        %v5276 = vmul.f32 %v4716, 1.442695
        %v5277 = vpow.pop %v5276
        %v5278 = vmul.f32 %v4718, 1.442695
        %v5279 = vpow.pop %v5278
        %v5280 = vmul.f32 %v4721, 1.442695
        %v5281 = vpow.pop %v5280
        %v5282 = vmul.f32 %v4723, 1.442695
        %v5283 = vpow.pop %v5282
        %v5284 = vmul.f32 %v4726, 1.442695
        %v5285 = vpow.pop %v5284
        %v5286 = vmul.f32 %v4728, 1.442695
        %v5287 = vpow.pop %v5286
        %v5288 = vmul.f32 %v4731, 1.442695
        %v5289 = vpow.pop %v5288
        %v5290 = vmul.f32 %v4733, 1.442695
        %v5291 = vpow.pop %v5290
        %v5292 = vmul.f32 %v4736, 1.442695
        %v5293 = vpow.pop %v5292
        %v5294 = vmul.f32 %v4738, 1.442695
        %v5295 = vpow.pop %v5294
        %v5296 = vmul.f32 %v4741, 1.442695
        %v5297 = vpow.pop %v5296
        %v5298 = vmul.f32 %v4743, 1.442695
        %v5299 = vpow.pop %v5298
        %v5300 = vmul.f32 %v4746, 1.442695
        %v5301 = vpow.pop %v5300
        %v5302 = vmul.f32 %v4748, 1.442695
        %v5303 = vpow.pop %v5302
        %v5304 = vmul.f32 %v4751, 1.442695
        %v5305 = vpow.pop %v5304
        %v5306 = vmul.f32 %v4753, 1.442695
        %v5307 = vpow.pop %v5306
        %v5308 = vmul.f32 %v4756, 1.442695
        %v5309 = vpow.pop %v5308
        %v5310 = vmul.f32 %v4758, 1.442695
        %v5311 = vpow.pop %v5310
        %v5312 = vmul.f32 %v4761, 1.442695
        %v5313 = vpow.pop %v5312
        %v5314 = vmul.f32 %v4763, 1.442695
        %v5315 = vpow.pop %v5314
        %v5316 = vmul.f32 %v4766, 1.442695
        %v5317 = vpow.pop %v5316
        %v5318 = vmul.f32 %v4768, 1.442695
        %v5319 = vpow.pop %v5318
        %v5320 = vmul.f32 %v4771, 1.442695
        %v5321 = vpow.pop %v5320
        %v5322 = vmul.f32 %v4773, 1.442695
        %v5323 = vpow.pop %v5322
        %v5324 = vmul.f32 %v4776, 1.442695
        %v5325 = vpow.pop %v5324
        %v5326 = vmul.f32 %v4778, 1.442695
        %v5327 = vpow.pop %v5326
        %v5328 = vmul.f32 %v4781, 1.442695
        %v5329 = vpow.pop %v5328
        %v5330 = vmul.f32 %v4783, 1.442695
        %v5331 = vpow.pop %v5330
        %v5332 = vadd.f32 %v5269, 1.0
        %v5333 = vlog2.pop %v5332
        %v5334 = vmul.f32 %v5333, 0.6931472
        %v5335 = vmul.f32 -0.5, %v5269
        %v5336 = vadd.f32 %v5335, 1.0
        %v5337 = vmul.f32 %v5336, %v5269
        %v5338 = vand.u32 2147483647, %v5269
        %vm5339 = vcmp.lt.f32.partialorder %v5338, 0.0004427343
        %v5340 = vsel %vm5339, %v5337, %v5334
        %v5341 = vadd.f32 %v5271, 1.0
        %v5342 = vlog2.pop %v5341
        %v5343 = vmul.f32 %v5342, 0.6931472
        %v5344 = vmul.f32 -0.5, %v5271
        %v5345 = vadd.f32 %v5344, 1.0
        %v5346 = vmul.f32 %v5345, %v5271
        %v5347 = vand.u32 2147483647, %v5271
        %vm5348 = vcmp.lt.f32.partialorder %v5347, 0.0004427343
        %v5349 = vsel %vm5348, %v5346, %v5343
        %v5350 = vadd.f32 %v5273, 1.0
        %v5351 = vlog2.pop %v5350
        %v5352 = vmul.f32 %v5351, 0.6931472
        %v5353 = vmul.f32 -0.5, %v5273
        %v5354 = vadd.f32 %v5353, 1.0
        %v5355 = vmul.f32 %v5354, %v5273
        %v5356 = vand.u32 2147483647, %v5273
        %vm5357 = vcmp.lt.f32.partialorder %v5356, 0.0004427343
        %v5358 = vsel %vm5357, %v5355, %v5352
        %v5359 = vadd.f32 %v5275, 1.0
        %v5360 = vlog2.pop %v5359
        %v5361 = vmul.f32 %v5360, 0.6931472
        %v5362 = vmul.f32 -0.5, %v5275
        %v5363 = vadd.f32 %v5362, 1.0
        %v5364 = vmul.f32 %v5363, %v5275
        %v5365 = vand.u32 2147483647, %v5275
        %vm5366 = vcmp.lt.f32.partialorder %v5365, 0.0004427343
        %v5367 = vsel %vm5366, %v5364, %v5361
        %v5368 = vadd.f32 %v5277, 1.0
        %v5369 = vlog2.pop %v5368
        %v5370 = vmul.f32 %v5369, 0.6931472
        %v5371 = vmul.f32 -0.5, %v5277
        %v5372 = vadd.f32 %v5371, 1.0
        %v5373 = vmul.f32 %v5372, %v5277
        %v5374 = vand.u32 2147483647, %v5277
        %vm5375 = vcmp.lt.f32.partialorder %v5374, 0.0004427343
        %v5376 = vsel %vm5375, %v5373, %v5370
        %v5377 = vadd.f32 %v5279, 1.0
        %v5378 = vlog2.pop %v5377
        %v5379 = vmul.f32 %v5378, 0.6931472
        %v5380 = vmul.f32 -0.5, %v5279
        %v5381 = vadd.f32 %v5380, 1.0
        %v5382 = vmul.f32 %v5381, %v5279
        %v5383 = vand.u32 2147483647, %v5279
        %vm5384 = vcmp.lt.f32.partialorder %v5383, 0.0004427343
        %v5385 = vsel %vm5384, %v5382, %v5379
        %v5386 = vadd.f32 %v5281, 1.0
        %v5387 = vlog2.pop %v5386
        %v5388 = vmul.f32 %v5387, 0.6931472
        %v5389 = vmul.f32 -0.5, %v5281
        %v5390 = vadd.f32 %v5389, 1.0
        %v5391 = vmul.f32 %v5390, %v5281
        %v5392 = vand.u32 2147483647, %v5281
        %vm5393 = vcmp.lt.f32.partialorder %v5392, 0.0004427343
        %v5394 = vsel %vm5393, %v5391, %v5388
        %v5395 = vadd.f32 %v5283, 1.0
        %v5396 = vlog2.pop %v5395
        %v5397 = vmul.f32 %v5396, 0.6931472
        %v5398 = vmul.f32 -0.5, %v5283
        %v5399 = vadd.f32 %v5398, 1.0
        %v5400 = vmul.f32 %v5399, %v5283
        %v5401 = vand.u32 2147483647, %v5283
        %vm5402 = vcmp.lt.f32.partialorder %v5401, 0.0004427343
        %v5403 = vsel %vm5402, %v5400, %v5397
        %v5404 = vadd.f32 %v5285, 1.0
        %v5405 = vlog2.pop %v5404
        %v5406 = vmul.f32 %v5405, 0.6931472
        %v5407 = vmul.f32 -0.5, %v5285
        %v5408 = vadd.f32 %v5407, 1.0
        %v5409 = vmul.f32 %v5408, %v5285
        %v5410 = vand.u32 2147483647, %v5285
        %vm5411 = vcmp.lt.f32.partialorder %v5410, 0.0004427343
        %v5412 = vsel %vm5411, %v5409, %v5406
        %v5413 = vadd.f32 %v5287, 1.0
        %v5414 = vlog2.pop %v5413
        %v5415 = vmul.f32 %v5414, 0.6931472
        %v5416 = vmul.f32 -0.5, %v5287
        %v5417 = vadd.f32 %v5416, 1.0
        %v5418 = vmul.f32 %v5417, %v5287
        %v5419 = vand.u32 2147483647, %v5287
        %vm5420 = vcmp.lt.f32.partialorder %v5419, 0.0004427343
        %v5421 = vsel %vm5420, %v5418, %v5415
        %v5422 = vadd.f32 %v5289, 1.0
        %v5423 = vlog2.pop %v5422
        %v5424 = vmul.f32 %v5423, 0.6931472
        %v5425 = vmul.f32 -0.5, %v5289
        %v5426 = vadd.f32 %v5425, 1.0
        %v5427 = vmul.f32 %v5426, %v5289
        %v5428 = vand.u32 2147483647, %v5289
        %vm5429 = vcmp.lt.f32.partialorder %v5428, 0.0004427343
        %v5430 = vsel %vm5429, %v5427, %v5424
        %v5431 = vadd.f32 %v5291, 1.0
        %v5432 = vlog2.pop %v5431
        %v5433 = vmul.f32 %v5432, 0.6931472
        %v5434 = vmul.f32 -0.5, %v5291
        %v5435 = vadd.f32 %v5434, 1.0
        %v5436 = vmul.f32 %v5435, %v5291
        %v5437 = vand.u32 2147483647, %v5291
        %vm5438 = vcmp.lt.f32.partialorder %v5437, 0.0004427343
        %v5439 = vsel %vm5438, %v5436, %v5433
        %v5440 = vadd.f32 %v5293, 1.0
        %v5441 = vlog2.pop %v5440
        %v5442 = vmul.f32 %v5441, 0.6931472
        %v5443 = vmul.f32 -0.5, %v5293
        %v5444 = vadd.f32 %v5443, 1.0
        %v5445 = vmul.f32 %v5444, %v5293
        %v5446 = vand.u32 2147483647, %v5293
        %vm5447 = vcmp.lt.f32.partialorder %v5446, 0.0004427343
        %v5448 = vsel %vm5447, %v5445, %v5442
        %v5449 = vadd.f32 %v5295, 1.0
        %v5450 = vlog2.pop %v5449
        %v5451 = vmul.f32 %v5450, 0.6931472
        %v5452 = vmul.f32 -0.5, %v5295
        %v5453 = vadd.f32 %v5452, 1.0
        %v5454 = vmul.f32 %v5453, %v5295
        %v5455 = vand.u32 2147483647, %v5295
        %vm5456 = vcmp.lt.f32.partialorder %v5455, 0.0004427343
        %v5457 = vsel %vm5456, %v5454, %v5451
        %v5458 = vadd.f32 %v5297, 1.0
        %v5459 = vlog2.pop %v5458
        %v5460 = vmul.f32 %v5459, 0.6931472
        %v5461 = vmul.f32 -0.5, %v5297
        %v5462 = vadd.f32 %v5461, 1.0
        %v5463 = vmul.f32 %v5462, %v5297
        %v5464 = vand.u32 2147483647, %v5297
        %vm5465 = vcmp.lt.f32.partialorder %v5464, 0.0004427343
        %v5466 = vsel %vm5465, %v5463, %v5460
        %v5467 = vadd.f32 %v5299, 1.0
        %v5468 = vlog2.pop %v5467
        %v5469 = vmul.f32 %v5468, 0.6931472
        %v5470 = vmul.f32 -0.5, %v5299
        %v5471 = vadd.f32 %v5470, 1.0
        %v5472 = vmul.f32 %v5471, %v5299
        %v5473 = vand.u32 2147483647, %v5299
        %vm5474 = vcmp.lt.f32.partialorder %v5473, 0.0004427343
        %v5475 = vsel %vm5474, %v5472, %v5469
        %v5476 = vadd.f32 %v5301, 1.0
        %v5477 = vlog2.pop %v5476
        %v5478 = vmul.f32 %v5477, 0.6931472
        %v5479 = vmul.f32 -0.5, %v5301
        %v5480 = vadd.f32 %v5479, 1.0
        %v5481 = vmul.f32 %v5480, %v5301
        %v5482 = vand.u32 2147483647, %v5301
        %vm5483 = vcmp.lt.f32.partialorder %v5482, 0.0004427343
        %v5484 = vsel %vm5483, %v5481, %v5478
        %v5485 = vadd.f32 %v5303, 1.0
        %v5486 = vlog2.pop %v5485
        %v5487 = vmul.f32 %v5486, 0.6931472
        %v5488 = vmul.f32 -0.5, %v5303
        %v5489 = vadd.f32 %v5488, 1.0
        %v5490 = vmul.f32 %v5489, %v5303
        %v5491 = vand.u32 2147483647, %v5303
        %vm5492 = vcmp.lt.f32.partialorder %v5491, 0.0004427343
        %v5493 = vsel %vm5492, %v5490, %v5487
        %v5494 = vadd.f32 %v5305, 1.0
        %v5495 = vlog2.pop %v5494
        %v5496 = vmul.f32 %v5495, 0.6931472
        %v5497 = vmul.f32 -0.5, %v5305
        %v5498 = vadd.f32 %v5497, 1.0
        %v5499 = vmul.f32 %v5498, %v5305
        %v5500 = vand.u32 2147483647, %v5305
        %vm5501 = vcmp.lt.f32.partialorder %v5500, 0.0004427343
        %v5502 = vsel %vm5501, %v5499, %v5496
        %v5503 = vadd.f32 %v5307, 1.0
        %v5504 = vlog2.pop %v5503
        %v5505 = vmul.f32 %v5504, 0.6931472
        %v5506 = vmul.f32 -0.5, %v5307
        %v5507 = vadd.f32 %v5506, 1.0
        %v5508 = vmul.f32 %v5507, %v5307
        %v5509 = vand.u32 2147483647, %v5307
        %vm5510 = vcmp.lt.f32.partialorder %v5509, 0.0004427343
        %v5511 = vsel %vm5510, %v5508, %v5505
        %v5512 = vadd.f32 %v5309, 1.0
        %v5513 = vlog2.pop %v5512
        %v5514 = vmul.f32 %v5513, 0.6931472
        %v5515 = vmul.f32 -0.5, %v5309
        %v5516 = vadd.f32 %v5515, 1.0
        %v5517 = vmul.f32 %v5516, %v5309
        %v5518 = vand.u32 2147483647, %v5309
        %vm5519 = vcmp.lt.f32.partialorder %v5518, 0.0004427343
        %v5520 = vsel %vm5519, %v5517, %v5514
        %v5521 = vadd.f32 %v5311, 1.0
        %v5522 = vlog2.pop %v5521
        %v5523 = vmul.f32 %v5522, 0.6931472
        %v5524 = vmul.f32 -0.5, %v5311
        %v5525 = vadd.f32 %v5524, 1.0
        %v5526 = vmul.f32 %v5525, %v5311
        %v5527 = vand.u32 2147483647, %v5311
        %vm5528 = vcmp.lt.f32.partialorder %v5527, 0.0004427343
        %v5529 = vsel %vm5528, %v5526, %v5523
        %v5530 = vadd.f32 %v5313, 1.0
        %v5531 = vlog2.pop %v5530
        %v5532 = vmul.f32 %v5531, 0.6931472
        %v5533 = vmul.f32 -0.5, %v5313
        %v5534 = vadd.f32 %v5533, 1.0
        %v5535 = vmul.f32 %v5534, %v5313
        %v5536 = vand.u32 2147483647, %v5313
        %vm5537 = vcmp.lt.f32.partialorder %v5536, 0.0004427343
        %v5538 = vsel %vm5537, %v5535, %v5532
        %v5539 = vadd.f32 %v5315, 1.0
        %v5540 = vlog2.pop %v5539
        %v5541 = vmul.f32 %v5540, 0.6931472
        %v5542 = vmul.f32 -0.5, %v5315
        %v5543 = vadd.f32 %v5542, 1.0
        %v5544 = vmul.f32 %v5543, %v5315
        %v5545 = vand.u32 2147483647, %v5315
        %vm5546 = vcmp.lt.f32.partialorder %v5545, 0.0004427343
        %v5547 = vsel %vm5546, %v5544, %v5541
        %v5548 = vadd.f32 %v5317, 1.0
        %v5549 = vlog2.pop %v5548
        %v5550 = vmul.f32 %v5549, 0.6931472
        %v5551 = vmul.f32 -0.5, %v5317
        %v5552 = vadd.f32 %v5551, 1.0
        %v5553 = vmul.f32 %v5552, %v5317
        %v5554 = vand.u32 2147483647, %v5317
        %vm5555 = vcmp.lt.f32.partialorder %v5554, 0.0004427343
        %v5556 = vsel %vm5555, %v5553, %v5550
        %v5557 = vadd.f32 %v5319, 1.0
        %v5558 = vlog2.pop %v5557
        %v5559 = vmul.f32 %v5558, 0.6931472
        %v5560 = vmul.f32 -0.5, %v5319
        %v5561 = vadd.f32 %v5560, 1.0
        %v5562 = vmul.f32 %v5561, %v5319
        %v5563 = vand.u32 2147483647, %v5319
        %vm5564 = vcmp.lt.f32.partialorder %v5563, 0.0004427343
        %v5565 = vsel %vm5564, %v5562, %v5559
        %v5566 = vadd.f32 %v5321, 1.0
        %v5567 = vlog2.pop %v5566
        %v5568 = vmul.f32 %v5567, 0.6931472
        %v5569 = vmul.f32 -0.5, %v5321
        %v5570 = vadd.f32 %v5569, 1.0
        %v5571 = vmul.f32 %v5570, %v5321
        %v5572 = vand.u32 2147483647, %v5321
        %vm5573 = vcmp.lt.f32.partialorder %v5572, 0.0004427343
        %v5574 = vsel %vm5573, %v5571, %v5568
        %v5575 = vadd.f32 %v5323, 1.0
        %v5576 = vlog2.pop %v5575
        %v5577 = vmul.f32 %v5576, 0.6931472
        %v5578 = vmul.f32 -0.5, %v5323
        %v5579 = vadd.f32 %v5578, 1.0
        %v5580 = vmul.f32 %v5579, %v5323
        %v5581 = vand.u32 2147483647, %v5323
        %vm5582 = vcmp.lt.f32.partialorder %v5581, 0.0004427343
        %v5583 = vsel %vm5582, %v5580, %v5577
        %v5584 = vadd.f32 %v5325, 1.0
        %v5585 = vlog2.pop %v5584
        %v5586 = vmul.f32 %v5585, 0.6931472
        %v5587 = vmul.f32 -0.5, %v5325
        %v5588 = vadd.f32 %v5587, 1.0
        %v5589 = vmul.f32 %v5588, %v5325
        %v5590 = vand.u32 2147483647, %v5325
        %vm5591 = vcmp.lt.f32.partialorder %v5590, 0.0004427343
        %v5592 = vsel %vm5591, %v5589, %v5586
        %v5593 = vadd.f32 %v5327, 1.0
        %v5594 = vlog2.pop %v5593
        %v5595 = vmul.f32 %v5594, 0.6931472
        %v5596 = vmul.f32 -0.5, %v5327
        %v5597 = vadd.f32 %v5596, 1.0
        %v5598 = vmul.f32 %v5597, %v5327
        %v5599 = vand.u32 2147483647, %v5327
        %vm5600 = vcmp.lt.f32.partialorder %v5599, 0.0004427343
        %v5601 = vsel %vm5600, %v5598, %v5595
        %v5602 = vadd.f32 %v5329, 1.0
        %v5603 = vlog2.pop %v5602
        %v5604 = vmul.f32 %v5603, 0.6931472
        %v5605 = vmul.f32 -0.5, %v5329
        %v5606 = vadd.f32 %v5605, 1.0
        %v5607 = vmul.f32 %v5606, %v5329
        %v5608 = vand.u32 2147483647, %v5329
        %vm5609 = vcmp.lt.f32.partialorder %v5608, 0.0004427343
        %v5610 = vsel %vm5609, %v5607, %v5604
        %v5611 = vadd.f32 %v5331, 1.0
        %v5612 = vlog2.pop %v5611
        %v5613 = vmul.f32 %v5612, 0.6931472
        %v5614 = vmul.f32 -0.5, %v5331
        %v5615 = vadd.f32 %v5614, 1.0
        %v5616 = vmul.f32 %v5615, %v5331
        %v5617 = vand.u32 2147483647, %v5331
        %vm5618 = vcmp.lt.f32.partialorder %v5617, 0.0004427343
        %v5619 = vsel %vm5618, %v5616, %v5613
        %v5620 = vsel %vm4820, %v5236, %v5340
        %v5621 = vsel %vm4821, %v5237, %v5349
        %v5622 = vsel %vm4822, %v5238, %v5358
        %v5623 = vsel %vm4823, %v5239, %v5367
        %v5624 = vsel %vm4824, %v5240, %v5376
        %v5625 = vsel %vm4825, %v5241, %v5385
        %v5626 = vsel %vm4826, %v5242, %v5394
        %v5627 = vsel %vm4827, %v5243, %v5403
        %v5628 = vsel %vm4828, %v5244, %v5412
        %v5629 = vsel %vm4829, %v5245, %v5421
        %v5630 = vsel %vm4830, %v5246, %v5430
        %v5631 = vsel %vm4831, %v5247, %v5439
        %v5632 = vsel %vm4832, %v5248, %v5448
        %v5633 = vsel %vm4833, %v5249, %v5457
        %v5634 = vsel %vm4834, %v5250, %v5466
        %v5635 = vsel %vm4835, %v5251, %v5475
        %v5636 = vsel %vm4836, %v5252, %v5484
        %v5637 = vsel %vm4837, %v5253, %v5493
        %v5638 = vsel %vm4838, %v5254, %v5502
        %v5639 = vsel %vm4839, %v5255, %v5511
        %v5640 = vsel %vm4840, %v5256, %v5520
        %v5641 = vsel %vm4841, %v5257, %v5529
        %v5642 = vsel %vm4842, %v5258, %v5538
        %v5643 = vsel %vm4843, %v5259, %v5547
        %v5644 = vsel %vm4844, %v5260, %v5556
        %v5645 = vsel %vm4845, %v5261, %v5565
        %v5646 = vsel %vm4846, %v5262, %v5574
        %v5647 = vsel %vm4847, %v5263, %v5583
        %v5648 = vsel %vm4848, %v5264, %v5592
        %v5649 = vsel %vm4849, %v5265, %v5601
        %v5650 = vsel %vm4850, %v5266, %v5610
        %v5651 = vsel %vm4851, %v5267, %v5619
        %v5652 = vadd.f32 %v5620, 1e-06
        %v5653 = vadd.f32 %v5621, 1e-06
        %v5654 = vadd.f32 %v5622, 1e-06
        %v5655 = vadd.f32 %v5623, 1e-06
        %v5656 = vadd.f32 %v5624, 1e-06
        %v5657 = vadd.f32 %v5625, 1e-06
        %v5658 = vadd.f32 %v5626, 1e-06
        %v5659 = vadd.f32 %v5627, 1e-06
        %v5660 = vadd.f32 %v5628, 1e-06
        %v5661 = vadd.f32 %v5629, 1e-06
        %v5662 = vadd.f32 %v5630, 1e-06
        %v5663 = vadd.f32 %v5631, 1e-06
        %v5664 = vadd.f32 %v5632, 1e-06
        %v5665 = vadd.f32 %v5633, 1e-06
        %v5666 = vadd.f32 %v5634, 1e-06
        %v5667 = vadd.f32 %v5635, 1e-06
        %v5668 = vadd.f32 %v5636, 1e-06
        %v5669 = vadd.f32 %v5637, 1e-06
        %v5670 = vadd.f32 %v5638, 1e-06
        %v5671 = vadd.f32 %v5639, 1e-06
        %v5672 = vadd.f32 %v5640, 1e-06
        %v5673 = vadd.f32 %v5641, 1e-06
        %v5674 = vadd.f32 %v5642, 1e-06
        %v5675 = vadd.f32 %v5643, 1e-06
        %v5676 = vadd.f32 %v5644, 1e-06
        %v5677 = vadd.f32 %v5645, 1e-06
        %v5678 = vadd.f32 %v5646, 1e-06
        %v5679 = vadd.f32 %v5647, 1e-06
        %v5680 = vadd.f32 %v5648, 1e-06
        %v5681 = vadd.f32 %v5649, 1e-06
        %v5682 = vadd.f32 %v5650, 1e-06
        %v5683 = vadd.f32 %v5651, 1e-06
        %v5684 = vsel %vm4787, %v4788, %v5652
        %v5685 = vsel %vm4787, %v4789, %v5653
        %v5686 = vsel %vm4787, %v4790, %v5654
        %v5687 = vsel %vm4787, %v4791, %v5655
        %v5688 = vsel %vm4787, %v4792, %v5656
        %v5689 = vsel %vm4787, %v4793, %v5657
        %v5690 = vsel %vm4787, %v4794, %v5658
        %v5691 = vsel %vm4787, %v4795, %v5659
        %v5692 = vsel %vm4787, %v4796, %v5660
        %v5693 = vsel %vm4787, %v4797, %v5661
        %v5694 = vsel %vm4787, %v4798, %v5662
        %v5695 = vsel %vm4787, %v4799, %v5663
        %v5696 = vsel %vm4787, %v4800, %v5664
        %v5697 = vsel %vm4787, %v4801, %v5665
        %v5698 = vsel %vm4787, %v4802, %v5666
        %v5699 = vsel %vm4787, %v4803, %v5667
        %v5700 = vsel %vm4787, %v4804, %v5668
        %v5701 = vsel %vm4787, %v4805, %v5669
        %v5702 = vsel %vm4787, %v4806, %v5670
        %v5703 = vsel %vm4787, %v4807, %v5671
        %v5704 = vsel %vm4787, %v4808, %v5672
        %v5705 = vsel %vm4787, %v4809, %v5673
        %v5706 = vsel %vm4787, %v4810, %v5674
        %v5707 = vsel %vm4787, %v4811, %v5675
        %v5708 = vsel %vm4787, %v4812, %v5676
        %v5709 = vsel %vm4787, %v4813, %v5677
        %v5710 = vsel %vm4787, %v4814, %v5678
        %v5711 = vsel %vm4787, %v4815, %v5679
        %v5712 = vsel %vm4787, %v4816, %v5680
        %v5713 = vsel %vm4787, %v4817, %v5681
        %v5714 = vsel %vm4787, %v4818, %v5682
        %v5715 = vsel %vm4787, %v4819, %v5683
        %5716 = vst [vmem:[%s378] sm:$0xff] %v5684
        %5717 = vst [vmem:[%s378 + $0x8] sm:$0xff] %v5685
        %5718 = vst [vmem:[%s378 + $0x10] sm:$0xff] %v5686
        %5719 = vst [vmem:[%s378 + $0x18] sm:$0xff] %v5687
        %5720 = vst [vmem:[%s378 + $0x20] sm:$0xff] %v5688
        %5721 = vst [vmem:[%s378 + $0x28] sm:$0xff] %v5689
        %5722 = vst [vmem:[%s378 + $0x30] sm:$0xff] %v5690
        %5723 = vst [vmem:[%s378 + $0x38] sm:$0xff] %v5691
        %5724 = vst [vmem:[%s378 + $0x40] sm:$0xff] %v5692
        %5725 = vst [vmem:[%s378 + $0x48] sm:$0xff] %v5693
        %5726 = vst [vmem:[%s378 + $0x50] sm:$0xff] %v5694
        %5727 = vst [vmem:[%s378 + $0x58] sm:$0xff] %v5695
        %5728 = vst [vmem:[%s378 + $0x60] sm:$0xff] %v5696
        %5729 = vst [vmem:[%s378 + $0x68] sm:$0xff] %v5697
        %5730 = vst [vmem:[%s378 + $0x70] sm:$0xff] %v5698
        %5731 = vst [vmem:[%s378 + $0x78] sm:$0xff] %v5699
        %5732 = vst [vmem:[%s378 + $0x80] sm:$0xff] %v5700
        %5733 = vst [vmem:[%s378 + $0x88] sm:$0xff] %v5701
        %5734 = vst [vmem:[%s378 + $0x90] sm:$0xff] %v5702
        %5735 = vst [vmem:[%s378 + $0x98] sm:$0xff] %v5703
        %5736 = vst [vmem:[%s378 + $0xa0] sm:$0xff] %v5704
        %5737 = vst [vmem:[%s378 + $0xa8] sm:$0xff] %v5705
        %5738 = vst [vmem:[%s378 + $0xb0] sm:$0xff] %v5706
        %5739 = vst [vmem:[%s378 + $0xb8] sm:$0xff] %v5707
        %5740 = vst [vmem:[%s378 + $0xc0] sm:$0xff] %v5708
        %5741 = vst [vmem:[%s378 + $0xc8] sm:$0xff] %v5709
        %5742 = vst [vmem:[%s378 + $0xd0] sm:$0xff] %v5710
        %5743 = vst [vmem:[%s378 + $0xd8] sm:$0xff] %v5711
        %5744 = vst [vmem:[%s378 + $0xe0] sm:$0xff] %v5712
        %5745 = vst [vmem:[%s378 + $0xe8] sm:$0xff] %v5713
        %5746 = vst [vmem:[%s378 + $0xf0] sm:$0xff] %v5714
        %5747 = vst [vmem:[%s378 + $0xf8] sm:$0xff] %v5715
        %s5748 = sand.u32 %s187, 1
        %s5749 = scalar_lea.sflag [#allocation4], %s5748
        %s5750 = sand.u32 %s187, 1
        %s5751 = smul.addr %s5750, 256
        %s5752 = scalar_lea.vmem [#allocation13], %s5751
        // Predicated region
        $region73: #{tpu_custom_call.1} parent=47 // pred_check
          %p5753 = pneg %p197
        $region74: #{tpu_custom_call.1} parent=47 // pred_check_branch
          %5755 = sbr.rel (%p5753) target = $region76
        $region75: #{tpu_custom_call.1} parent=47 // pred_region
          %s5756 = smul.u32 32, %s27
          %5758 = vsyncadd %s5749, 0
          %s5759 = smul.addr %s5756, 8
          %s5760 = scalar_lea.hbm %s7, %s5759
          %s5761 = sshll.u32 %s5752, 4
          %s5762 = int_to_ptr.vmem [resolvable:$true] %s5761
          %s5763 = sshll.u32 %s5760, 4
          %s5764 = int_to_ptr.hbm [resolvable:$true] %s5763
          %5769 = dma.vmem_to_hbm [thread:$0]  %s5762, 4096, %s5764, %s5749, 128, 128, 8
        $region76: #{tpu_custom_call.1} parent=47 // pred_fallthru
          _
      $region48: #{tpu_custom_call.1} parent=5 // pred_fallthru
        _
      %p5770 = scmp.le.s32.totalorder 2, %s22
      // Predicated region
      $region77: #{tpu_custom_call.1} parent=5 // pred_check
        %p5771 = pneg %p5770
      $region78: #{tpu_custom_call.1} parent=5 // pred_check_branch
        %5773 = sbr.rel (%p5771) target = $region80
      $region79: #{tpu_custom_call.1} parent=5 // pred_region
        %s5774 = ssub.s32 %s22, 2
        // Predicated region
        $region81: #{tpu_custom_call.1} parent=79 // pred_check
          %p5775 = pneg %p203
        $region82: #{tpu_custom_call.1} parent=79 // pred_check_branch
          %5777 = sbr.rel (%p5775) target = $region84
        $region83: #{tpu_custom_call.1} parent=79 // pred_region
          %s5778 = sand.u32 %s188, 1
          %s5779 = scalar_lea.sflag [#allocation4], %s5778
          %s5780 = sand.u32 %s188, 1
          %s5781 = smul.addr %s5780, 256
          %s5782 = scalar_lea.vmem [#allocation13], %s5781
          %5784 = dma.done %s5779, 4096
        $region84: #{tpu_custom_call.1} parent=79 // pred_fallthru
          _
      $region80: #{tpu_custom_call.1} parent=5 // pred_fallthru
        _
    $region6: #{tpu_custom_call.1} parent=1 // loop_footer
      %s26 = sadd.s32 1, %s22
    $region7: #{tpu_custom_call.1} parent=1 // loop_footer_branch
      %21 = sbr.rel target = $region3
    $region8: #{tpu_custom_call.1} parent=1 // loop_exit
      _
    %5785 = vsyncpa [#allocation3], 1
    %s5786 = scalar_lea.sflag [#allocation3], 1
    %5787 = vsyncpa %s5786, 1
    %5788 = vsyncpa [#allocation6], 1
    %5789 = vsyncpa [#allocation9], 1
    %5790 = vsyncpa [#allocation12], 1
    %5791 = vsyncpa [#allocation4], 1
    %s5792 = scalar_lea.sflag [#allocation4], 1
    %5793 = vsyncpa %s5792, 1

</llo_original>
